<compile_context>
chip_gen: v7x
topology: tpu7x:2x2x1
jax: 0.10.0
libtpu: 0.0.40
codegen_flags: <defaults>
</compile_context>

<pallas_src>
import math
from functools import partial

import jax
import jax.numpy as jnp
from jax.experimental import pallas as pl
from jax.experimental.pallas import tpu as pltpu

NEG_INF = -1e9


# ------------------------------ fused kernel --------------------------------

def _encoder_stack_kernel(x_ref, bias_ref,
                          inw_ref, inb_ref, outw_ref, outb_ref,
                          ln1g_ref, ln1b_ref,
                          l1w_ref, l1b_ref, l2w_ref, l2b_ref,
                          ln2g_ref, ln2b_ref,
                          o_ref, *, num_layers, nhead, d_model, eps):
    """Full post-norm TransformerEncoder stack for ONE batch element.

    x_ref:    (S, D) f32 activations of this batch element (batch-major grid).
    bias_ref: (1, S) f32 additive key-padding bias (0 / -1e9) for this batch.
    Weights are stacked with a leading layer dim and stay VMEM-resident
    (constant index_map) across the batch grid.
    """
    f32 = jnp.float32
    bf16 = jnp.bfloat16
    D = d_model
    hd = D // nhead

    x = x_ref[...]                        # (S, D) f32
    bias = bias_ref[...][None, :, :]      # (1, 1, S): broadcasts over (H, S, S)

    def layernorm(h, g, b):
        mu = jnp.mean(h, axis=-1, keepdims=True)
        d = h - mu
        var = jnp.mean(d * d, axis=-1, keepdims=True)
        return d * jax.lax.rsqrt(var + eps) * g + b

    # TODO(synk): for large num_layers, move the layer loop onto an "arbitrary"
    # grid axis (or lax.fori_loop) with per-layer weight streaming from HBM
    # (BlockSpec(memory_space=pl.ANY) + pltpu.make_async_copy double-buffering)
    # so vreg live ranges stay bounded and all weights need not fit VMEM (v7x: 64 MiB).
    for l in range(num_layers):           # static unroll (L is tiny here)
        # ---- fused QKV projection; 1/sqrt(hd) pre-folded into Q weights/bias ----
        qkv = jnp.dot(x.astype(bf16), inw_ref[l],
                      preferred_element_type=f32) + inb_ref[l]
        qkv = qkv.astype(bf16)            # (S, 3D)

        # Head-major (H, S, hd) views built by leading-axis stacking of static
        # lane slices (cheap tile placement; avoids an in-kernel (1,0,2) transpose).
        q3 = jnp.stack([qkv[:, h * hd:(h + 1) * hd] for h in range(nhead)], 0)
        k3 = jnp.stack([qkv[:, D + h * hd:D + (h + 1) * hd] for h in range(nhead)], 0)
        v3 = jnp.stack([qkv[:, 2 * D + h * hd:2 * D + (h + 1) * hd] for h in range(nhead)], 0)

        # ---- head-batched attention: one dot_general over the head axis ----
        # TODO(synk): hd=8 contractions underfill the MXU; for tiny head_dim a
        # VPU broadcast-mul + 8-wide reduce would free MXU passes (v6e/v7x).
        s = jnp.einsum('hqd,hkd->hqk', q3, k3,
                       preferred_element_type=f32) + bias         # (H, S, S)
        m = jnp.max(s, axis=-1, keepdims=True)
        e = jnp.exp(s - m)
        denom = jnp.sum(e, axis=-1, keepdims=True)
        p = (e * pl.reciprocal(denom, approx=True)).astype(bf16)
        o3 = jnp.einsum('hqk,hkd->hqd', p, v3,
                        preferred_element_type=f32)               # (H, S, hd)

        # ---- out-projection fused per head: attn = b_out + sum_h o_h @ Wo_h ----
        # (no (H,S,hd)->(S,D) concat; the K=hd pass is amortized over D columns)
        attn = outb_ref[l]                                        # (1, D) f32
        for h in range(nhead):
            attn = attn + jnp.dot(o3[h].astype(bf16), outw_ref[l, h],
                                  preferred_element_type=f32)

        # ---- add & norm 1 (f32) ----
        h1 = layernorm(x + attn, ln1g_ref[l], ln1b_ref[l])

        # ---- feed-forward: linear -> ReLU -> linear ----
        # TODO(synk): on v6e/v7x the 4D-wide FFN intermediates could stay bf16
        # to halve vreg pressure (not on v5e: no bf16 VPU path).
        f = jnp.dot(h1.astype(bf16), l1w_ref[l],
                    preferred_element_type=f32) + l1b_ref[l]
        f = jnp.maximum(f, 0.0)
        f = jnp.dot(f.astype(bf16), l2w_ref[l],
                    preferred_element_type=f32) + l2b_ref[l]

        # ---- add & norm 2 (f32) ----
        x = layernorm(h1 + f, ln2g_ref[l], ln2b_ref[l])

    # TODO(synk): for D < 128, a lane-dense (S*D/128, 128) output presentation
    # would avoid masked partial stores; kept (S, D) here for clarity.
    o_ref[...] = x


# ------------------------------ model glue ----------------------------------

def _embed(params, tokens):
    # tokens: (B, S) int32 -> (S, B, D) float32 embeddings, as in the reference.
    B, S = tokens.shape
    inp = tokens.T                                               # input.transpose(0, 1)
    # NOTE: reference scales by sqrt(input.size(-1)) AFTER the transpose, i.e. sqrt(batch).
    tok_e = jnp.take(params['tok_emb'], inp, axis=0) * math.sqrt(B)
    time_idx = jnp.broadcast_to(jnp.arange(S, dtype=jnp.int32)[:, None], (S, B))
    time_e = jnp.take(params['time_emb'], time_idx, axis=0)
    return jnp.concatenate([tok_e, time_e], axis=-1)             # (S, B, D)


def _const_spec(arr):
    # Full-array block with a constant index_map: weight stays VMEM-resident
    # across the batch grid (no per-step re-DMA).
    nd = arr.ndim
    return pl.BlockSpec(arr.shape, lambda b, _nd=nd: (0,) * _nd)


def encoder_transformer_forward(params, tokens, nhead, mask=None):
    B, S = tokens.shape
    x = _embed(params, tokens)                                   # (S, B, D)
    D = x.shape[-1]
    # Batch-major re-layout: each batch element's attention is a contiguous
    # (S, S) block; no (S*B)^2 score matrix / block-diagonal bias needed.
    x_bsd = jnp.transpose(x, (1, 0, 2)).astype(jnp.float32)      # (B, S, D)
    if mask is None:
        bias = jnp.zeros((B, 1, S), jnp.float32)
    else:  # mask: (B, S) bool, True = padded key position
        bias = jnp.where(mask, NEG_INF, 0.0).astype(jnp.float32)[:, None, :]

    W = params['layers']
    L = W['in_proj_w'].shape[0]
    kern = partial(_encoder_stack_kernel, num_layers=L, nhead=nhead,
                   d_model=D, eps=1e-5)
    weights = (W['in_proj_w'], W['in_proj_b'], W['out_proj_w'], W['out_proj_b'],
               W['ln1_g'], W['ln1_b'], W['lin1_w'], W['lin1_b'],
               W['lin2_w'], W['lin2_b'], W['ln2_g'], W['ln2_b'])

    out_bsd = pl.pallas_call(
        kern,
        grid=(B,),
        out_shape=jax.ShapeDtypeStruct((B, S, D), jnp.float32),
        in_specs=[pl.BlockSpec((None, S, D), lambda b: (b, 0, 0)),   # per-batch activations
                  pl.BlockSpec((None, 1, S), lambda b: (b, 0, 0))]   # per-batch padding bias
                 + [_const_spec(a) for a in weights],                # VMEM-resident weights
        out_specs=pl.BlockSpec((None, S, D), lambda b: (b, 0, 0)),
        compiler_params=pltpu.CompilerParams(
            dimension_semantics=("parallel",)),   # v7x: both TensorCores split batches
    )(x_bsd, bias, *weights)
    return jnp.transpose(out_bsd, (1, 0, 2))                     # (S, B, D) as in PyTorch


# --------------------------- synthetic parameters ----------------------------

def init_params(key, vocab_size, embedding_size, hidden_size, num_layers, nhead,
                padding_idx):
    half = embedding_size // 2
    D = hidden_size
    hd = D // nhead
    q_scale = 1.0 / math.sqrt(hd)        # folded into Q weights/bias at init time
    keys = jax.random.split(key, 2 + num_layers)
    tok_emb = jax.random.normal(keys[0], (vocab_size, half), jnp.float32) * 0.1
    tok_emb = tok_emb.at[padding_idx].set(0.0)                   # padding_idx row zeroed
    time_emb = jax.random.normal(keys[1], (100, half), jnp.float32) * 0.1

    def bvec(k, n):       # biases kept in f32 (added to f32 accumulators)
        return jax.random.normal(k, (1, n), jnp.float32) * 0.02

    per = {k: [] for k in ('in_proj_w', 'in_proj_b', 'out_proj_w', 'out_proj_b',
                           'lin1_w', 'lin1_b', 'lin2_w', 'lin2_b')}
    for i in range(num_layers):
        lk = jax.random.split(keys[2 + i], 8)
        # QKV projection, stored pre-transposed (in, out); Q third pre-scaled by 1/sqrt(hd).
        w_in = jax.random.normal(lk[0], (D, 3 * D), jnp.float32) * 0.05
        w_in = w_in.at[:, :D].multiply(q_scale)
        b_in = jax.random.normal(lk[1], (1, 3 * D), jnp.float32) * 0.02
        b_in = b_in.at[:, :D].multiply(q_scale)
        per['in_proj_w'].append(w_in.astype(jnp.bfloat16))
        per['in_proj_b'].append(b_in)
        # Out-projection stored per head: (H, hd, D) == reshape of the (D, D) matrix rows.
        w_out = jax.random.normal(lk[2], (D, D), jnp.float32) * 0.05
        per['out_proj_w'].append(w_out.reshape(nhead, hd, D).astype(jnp.bfloat16))
        per['out_proj_b'].append(bvec(lk[3], D))
        per['lin1_w'].append((jax.random.normal(lk[4], (D, 4 * D), jnp.float32) * 0.05)
                             .astype(jnp.bfloat16))
        per['lin1_b'].append(bvec(lk[5], 4 * D))
        per['lin2_w'].append((jax.random.normal(lk[6], (4 * D, D), jnp.float32) * 0.05)
                             .astype(jnp.bfloat16))
        per['lin2_b'].append(bvec(lk[7], D))
    layers = {k: jnp.stack(v) for k, v in per.items()}           # leading layer dim
    L = num_layers
    layers.update(
        ln1_g=jnp.ones((L, 1, D), jnp.float32), ln1_b=jnp.zeros((L, 1, D), jnp.float32),
        ln2_g=jnp.ones((L, 1, D), jnp.float32), ln2_b=jnp.zeros((L, 1, D), jnp.float32),
    )
    return dict(tok_emb=tok_emb, time_emb=time_emb, layers=layers)


# --------------------------- pure-JAX reference ------------------------------

def reference_forward(params, tokens, nhead, mask=None):
    # Conventional (B, H, S, hd) formulation in f32, for numerical validation.
    # NOTE: the stored Q weights/bias are pre-scaled by 1/sqrt(hd) (see init_params),
    # so no extra score scaling is applied here either.
    B, S = tokens.shape
    x = _embed(params, tokens)                                   # (S, B, D)
    D = x.shape[-1]
    hd = D // nhead
    W = params['layers']
    L = W['in_proj_w'].shape[0]

    def ln(h, g, b, eps=1e-5):
        mu = jnp.mean(h, axis=-1, keepdims=True)
        var = jnp.mean((h - mu) ** 2, axis=-1, keepdims=True)
        return (h - mu) * jax.lax.rsqrt(var + eps) * g + b

    for l in range(L):
        qkv = jnp.einsum('sbd,de->sbe', x, W['in_proj_w'][l].astype(jnp.float32))
        qkv = qkv + W['in_proj_b'][l][0]
        q, k, v = jnp.split(qkv, 3, axis=-1)

        def heads(t):
            return t.reshape(S, B, nhead, hd).transpose(1, 2, 0, 3)   # (B,H,S,hd)

        qh, kh, vh = heads(q), heads(k), heads(v)
        s = jnp.einsum('bhqd,bhkd->bhqk', qh, kh)
        if mask is not None:
            s = s + jnp.where(mask, NEG_INF, 0.0)[:, None, None, :]
        p = jax.nn.softmax(s, axis=-1)
        o = jnp.einsum('bhqk,bhkd->bhqd', p, vh)
        o = o.transpose(2, 0, 1, 3).reshape(S, B, D)
        wo = W['out_proj_w'][l].astype(jnp.float32).reshape(D, D)
        attn = jnp.einsum('sbd,de->sbe', o, wo) + W['out_proj_b'][l][0]
        h1 = ln(x + attn, W['ln1_g'][l][0], W['ln1_b'][l][0])
        f = jnp.einsum('sbd,de->sbe', h1, W['lin1_w'][l].astype(jnp.float32))
        f = jnp.maximum(f + W['lin1_b'][l][0], 0.0)
        f = jnp.einsum('sbe,ed->sbd', f, W['lin2_w'][l].astype(jnp.float32))
        f = f + W['lin2_b'][l][0]
        x = ln(h1 + f, W['ln2_g'][l][0], W['ln2_b'][l][0])
    return x


if __name__ == "__main__":
    vocab_size = 50
    embedding_size = 32
    hidden_size = 32       # d_model of the encoder (== embedding_size)
    padding_idx = 0
    dropout = 0.1          # eval mode -> identity (never active in this forward)
    num_layers = 2
    nhead = 4
    batch, seq = 2, 8

    key = jax.random.PRNGKey(0)
    pkey, dkey = jax.random.split(key)
    params = init_params(pkey, vocab_size, embedding_size, hidden_size,
                         num_layers, nhead, padding_idx)
    tokens = jax.random.randint(dkey, (batch, seq), 1, vocab_size, dtype=jnp.int32)

    fwd = jax.jit(partial(encoder_transformer_forward, nhead=nhead))

    # no-mask path
    out = fwd(params, tokens)
    jax.block_until_ready(out)
    assert out.shape == (seq, batch, hidden_size), out.shape
    assert bool(jnp.all(jnp.isfinite(out)))
    ref = reference_forward(params, tokens, nhead)
    assert bool(jnp.allclose(out, ref, atol=5e-2, rtol=5e-2)), \
        float(jnp.max(jnp.abs(out - ref)))

    # key-padding-mask path (True = padded key position)
    kp_mask = jnp.zeros((batch, seq), jnp.bool_).at[:, -2:].set(True)
    out_m = fwd(params, tokens, mask=kp_mask)
    jax.block_until_ready(out_m)
    assert bool(jnp.all(jnp.isfinite(out_m)))
    ref_m = reference_forward(params, tokens, nhead, mask=kp_mask)
    assert bool(jnp.allclose(out_m, ref_m, atol=5e-2, rtol=5e-2)), \
        float(jnp.max(jnp.abs(out_m - ref_m)))

    print("KERNEL_OK")
</pallas_src>

<mosaic_0001>
module attributes {stable_mosaic.version = 11 : i64} {
  func.func @_encoder_stack_kernel(%arg0: i32, %arg1: memref<1x8x32xf32, #tpu.memory_space<vmem>>, %arg2: memref<1x1x8xf32, #tpu.memory_space<vmem>>, %arg3: memref<2x32x96xbf16, #tpu.memory_space<vmem>>, %arg4: memref<2x1x96xf32, #tpu.memory_space<vmem>>, %arg5: memref<2x4x8x32xbf16, #tpu.memory_space<vmem>>, %arg6: memref<2x1x32xf32, #tpu.memory_space<vmem>>, %arg7: memref<2x1x32xf32, #tpu.memory_space<vmem>>, %arg8: memref<2x1x32xf32, #tpu.memory_space<vmem>>, %arg9: memref<2x32x128xbf16, #tpu.memory_space<vmem>>, %arg10: memref<2x1x128xf32, #tpu.memory_space<vmem>>, %arg11: memref<2x128x32xbf16, #tpu.memory_space<vmem>>, %arg12: memref<2x1x32xf32, #tpu.memory_space<vmem>>, %arg13: memref<2x1x32xf32, #tpu.memory_space<vmem>>, %arg14: memref<2x1x32xf32, #tpu.memory_space<vmem>>, %arg15: memref<1x8x32xf32, #tpu.memory_space<vmem>>) attributes {dimension_semantics = [#tpu.dimension_semantics<parallel>], iteration_bounds = array<i64: 2>, scalar_prefetch = 0 : i64, scratch_operands = 0 : i64, tpu.core_type = #tpu.core_type<tc>, window_params = [{transform_indices = @transform_0, window_bounds = array<i64: 1, 8, 32>}, {transform_indices = @transform_1, window_bounds = array<i64: 1, 1, 8>}, {pipeline_mode = #tpu.pipeline_mode<synchronous>, transform_indices = @transform_2, window_bounds = array<i64: 2, 32, 96>}, {pipeline_mode = #tpu.pipeline_mode<synchronous>, transform_indices = @transform_3, window_bounds = array<i64: 2, 1, 96>}, {pipeline_mode = #tpu.pipeline_mode<synchronous>, transform_indices = @transform_4, window_bounds = array<i64: 2, 4, 8, 32>}, {pipeline_mode = #tpu.pipeline_mode<synchronous>, transform_indices = @transform_5, window_bounds = array<i64: 2, 1, 32>}, {pipeline_mode = #tpu.pipeline_mode<synchronous>, transform_indices = @transform_6, window_bounds = array<i64: 2, 1, 32>}, {pipeline_mode = #tpu.pipeline_mode<synchronous>, transform_indices = @transform_7, window_bounds = array<i64: 2, 1, 32>}, {pipeline_mode = #tpu.pipeline_mode<synchronous>, transform_indices = @transform_8, window_bounds = array<i64: 2, 32, 128>}, {pipeline_mode = #tpu.pipeline_mode<synchronous>, transform_indices = @transform_9, window_bounds = array<i64: 2, 1, 128>}, {pipeline_mode = #tpu.pipeline_mode<synchronous>, transform_indices = @transform_10, window_bounds = array<i64: 2, 128, 32>}, {pipeline_mode = #tpu.pipeline_mode<synchronous>, transform_indices = @transform_11, window_bounds = array<i64: 2, 1, 32>}, {pipeline_mode = #tpu.pipeline_mode<synchronous>, transform_indices = @transform_12, window_bounds = array<i64: 2, 1, 32>}, {pipeline_mode = #tpu.pipeline_mode<synchronous>, transform_indices = @transform_13, window_bounds = array<i64: 2, 1, 32>}, {transform_indices = @transform_14, window_bounds = array<i64: 1, 8, 32>}]} {
    %c0 = arith.constant 0 : index
    %c0_0 = arith.constant 0 : index
    %c0_1 = arith.constant 0 : index
    %0 = vector.load %arg1[%c0, %c0_0, %c0_1] : memref<1x8x32xf32, #tpu.memory_space<vmem>>, vector<1x8x32xf32>
    %1 = vector.shape_cast %0 : vector<1x8x32xf32> to vector<8x32xf32>
    %c0_2 = arith.constant 0 : index
    %c0_3 = arith.constant 0 : index
    %c0_4 = arith.constant 0 : index
    %2 = vector.load %arg2[%c0_2, %c0_3, %c0_4] : memref<1x1x8xf32, #tpu.memory_space<vmem>>, vector<1x1x8xf32>
    %3 = vector.shape_cast %2 : vector<1x1x8xf32> to vector<1x8xf32>
    %4 = vector.shape_cast %3 : vector<1x8xf32> to vector<1x1x8xf32>
    %5 = arith.truncf %1 : vector<8x32xf32> to vector<8x32xbf16>
    %c0_5 = arith.constant 0 : index
    %c0_6 = arith.constant 0 : index
    %c0_7 = arith.constant 0 : index
    %6 = vector.load %arg3[%c0_5, %c0_6, %c0_7] : memref<2x32x96xbf16, #tpu.memory_space<vmem>>, vector<1x32x96xbf16>
    %7 = vector.shape_cast %6 : vector<1x32x96xbf16> to vector<32x96xbf16>
    %cst = arith.constant dense<0.000000e+00> : vector<8x96xf32>
    %8 = tpu.matmul %5, %7, %cst {dimension_numbers = #tpu.dot_dimension_numbers<[1], [0], [0], [1], [0, 0, 1, 1], [], []>} : vector<8x32xbf16>, vector<32x96xbf16>, vector<8x96xf32> -> vector<8x96xf32>
    %c0_8 = arith.constant 0 : index
    %c0_9 = arith.constant 0 : index
    %c0_10 = arith.constant 0 : index
    %9 = vector.load %arg4[%c0_8, %c0_9, %c0_10] : memref<2x1x96xf32, #tpu.memory_space<vmem>>, vector<1x1x96xf32>
    %10 = vector.shape_cast %9 : vector<1x1x96xf32> to vector<1x96xf32>
    %11 = vector.broadcast %10 : vector<1x96xf32> to vector<8x96xf32>
    %12 = arith.addf %8, %11 : vector<8x96xf32>
    %13 = arith.truncf %12 : vector<8x96xf32> to vector<8x96xbf16>
    %14 = vector.extract_strided_slice %13 {offsets = [0, 0], sizes = [8, 8], strides = [1, 1]} : vector<8x96xbf16> to vector<8x8xbf16>
    %15 = vector.extract_strided_slice %13 {offsets = [0, 8], sizes = [8, 8], strides = [1, 1]} : vector<8x96xbf16> to vector<8x8xbf16>
    %16 = vector.extract_strided_slice %13 {offsets = [0, 16], sizes = [8, 8], strides = [1, 1]} : vector<8x96xbf16> to vector<8x8xbf16>
    %17 = vector.extract_strided_slice %13 {offsets = [0, 24], sizes = [8, 8], strides = [1, 1]} : vector<8x96xbf16> to vector<8x8xbf16>
    %18 = vector.shape_cast %14 : vector<8x8xbf16> to vector<1x8x8xbf16>
    %19 = vector.shape_cast %15 : vector<8x8xbf16> to vector<1x8x8xbf16>
    %20 = vector.shape_cast %16 : vector<8x8xbf16> to vector<1x8x8xbf16>
    %21 = vector.shape_cast %17 : vector<8x8xbf16> to vector<1x8x8xbf16>
    %22 = tpu.concatenate %18, %19, %20, %21 in 0 : vector<1x8x8xbf16>, vector<1x8x8xbf16>, vector<1x8x8xbf16>, vector<1x8x8xbf16> -> vector<4x8x8xbf16>
    %23 = vector.extract_strided_slice %13 {offsets = [0, 32], sizes = [8, 8], strides = [1, 1]} : vector<8x96xbf16> to vector<8x8xbf16>
    %24 = vector.extract_strided_slice %13 {offsets = [0, 40], sizes = [8, 8], strides = [1, 1]} : vector<8x96xbf16> to vector<8x8xbf16>
    %25 = vector.extract_strided_slice %13 {offsets = [0, 48], sizes = [8, 8], strides = [1, 1]} : vector<8x96xbf16> to vector<8x8xbf16>
    %26 = vector.extract_strided_slice %13 {offsets = [0, 56], sizes = [8, 8], strides = [1, 1]} : vector<8x96xbf16> to vector<8x8xbf16>
    %27 = vector.shape_cast %23 : vector<8x8xbf16> to vector<1x8x8xbf16>
    %28 = vector.shape_cast %24 : vector<8x8xbf16> to vector<1x8x8xbf16>
    %29 = vector.shape_cast %25 : vector<8x8xbf16> to vector<1x8x8xbf16>
    %30 = vector.shape_cast %26 : vector<8x8xbf16> to vector<1x8x8xbf16>
    %31 = tpu.concatenate %27, %28, %29, %30 in 0 : vector<1x8x8xbf16>, vector<1x8x8xbf16>, vector<1x8x8xbf16>, vector<1x8x8xbf16> -> vector<4x8x8xbf16>
    %32 = vector.extract_strided_slice %13 {offsets = [0, 64], sizes = [8, 8], strides = [1, 1]} : vector<8x96xbf16> to vector<8x8xbf16>
    %33 = vector.extract_strided_slice %13 {offsets = [0, 72], sizes = [8, 8], strides = [1, 1]} : vector<8x96xbf16> to vector<8x8xbf16>
    %34 = vector.extract_strided_slice %13 {offsets = [0, 80], sizes = [8, 8], strides = [1, 1]} : vector<8x96xbf16> to vector<8x8xbf16>
    %35 = vector.extract_strided_slice %13 {offsets = [0, 88], sizes = [8, 8], strides = [1, 1]} : vector<8x96xbf16> to vector<8x8xbf16>
    %36 = vector.shape_cast %32 : vector<8x8xbf16> to vector<1x8x8xbf16>
    %37 = vector.shape_cast %33 : vector<8x8xbf16> to vector<1x8x8xbf16>
    %38 = vector.shape_cast %34 : vector<8x8xbf16> to vector<1x8x8xbf16>
    %39 = vector.shape_cast %35 : vector<8x8xbf16> to vector<1x8x8xbf16>
    %40 = tpu.concatenate %36, %37, %38, %39 in 0 : vector<1x8x8xbf16>, vector<1x8x8xbf16>, vector<1x8x8xbf16>, vector<1x8x8xbf16> -> vector<4x8x8xbf16>
    "tpu.trace_start"() <{level = 10 : i32, message = "hqd,hkd->hqk"}> : () -> ()
    %cst_11 = arith.constant dense<0.000000e+00> : vector<4x8x8xf32>
    %41 = tpu.matmul %22, %31, %cst_11 {dimension_numbers = #tpu.dot_dimension_numbers<[2], [2], [1], [1], [0, 0, 0, 1, 1, 1], [0], [0]>} : vector<4x8x8xbf16>, vector<4x8x8xbf16>, vector<4x8x8xf32> -> vector<4x8x8xf32>
    "tpu.trace_stop"() : () -> ()
    %42 = vector.broadcast %4 : vector<1x1x8xf32> to vector<4x8x8xf32>
    %43 = arith.addf %41, %42 : vector<4x8x8xf32>
    %cst_12 = arith.constant dense<0xFF800000> : vector<4x8xf32>
    %44 = vector.multi_reduction <maximumf>, %43, %cst_12 [2] : vector<4x8x8xf32> to vector<4x8xf32>
    %45 = vector.shape_cast %44 : vector<4x8xf32> to vector<4x8x1xf32>
    %46 = vector.broadcast %45 : vector<4x8x1xf32> to vector<4x8x8xf32>
    %47 = arith.subf %43, %46 : vector<4x8x8xf32>
    %48 = math.exp %47 : vector<4x8x8xf32>
    %cst_13 = arith.constant dense<0.000000e+00> : vector<4x8xf32>
    %49 = vector.multi_reduction <add>, %48, %cst_13 [2] : vector<4x8x8xf32> to vector<4x8xf32>
    %50 = vector.shape_cast %49 : vector<4x8xf32> to vector<4x8x1xf32>
    %51 = tpu.reciprocal %50 {approx = true} : vector<4x8x1xf32> -> vector<4x8x1xf32>
    %52 = vector.broadcast %51 : vector<4x8x1xf32> to vector<4x8x8xf32>
    %53 = arith.mulf %48, %52 : vector<4x8x8xf32>
    %54 = arith.truncf %53 : vector<4x8x8xf32> to vector<4x8x8xbf16>
    "tpu.trace_start"() <{level = 10 : i32, message = "hqk,hkd->hqd"}> : () -> ()
    %cst_14 = arith.constant dense<0.000000e+00> : vector<4x8x8xf32>
    %55 = tpu.matmul %54, %40, %cst_14 {dimension_numbers = #tpu.dot_dimension_numbers<[2], [1], [1], [2], [0, 0, 0, 1, 1, 2], [0], [0]>} : vector<4x8x8xbf16>, vector<4x8x8xbf16>, vector<4x8x8xf32> -> vector<4x8x8xf32>
    "tpu.trace_stop"() : () -> ()
    %c0_15 = arith.constant 0 : index
    %c0_16 = arith.constant 0 : index
    %c0_17 = arith.constant 0 : index
    %56 = vector.load %arg6[%c0_15, %c0_16, %c0_17] : memref<2x1x32xf32, #tpu.memory_space<vmem>>, vector<1x1x32xf32>
    %57 = vector.shape_cast %56 : vector<1x1x32xf32> to vector<1x32xf32>
    %58 = vector.extract_strided_slice %55 {offsets = [0, 0, 0], sizes = [1, 8, 8], strides = [1, 1, 1]} : vector<4x8x8xf32> to vector<1x8x8xf32>
    %59 = vector.shape_cast %58 : vector<1x8x8xf32> to vector<8x8xf32>
    %60 = arith.truncf %59 : vector<8x8xf32> to vector<8x8xbf16>
    %c0_18 = arith.constant 0 : index
    %c0_19 = arith.constant 0 : index
    %c0_20 = arith.constant 0 : index
    %c0_21 = arith.constant 0 : index
    %61 = vector.load %arg5[%c0_18, %c0_19, %c0_20, %c0_21] : memref<2x4x8x32xbf16, #tpu.memory_space<vmem>>, vector<1x1x8x32xbf16>
    %62 = vector.shape_cast %61 : vector<1x1x8x32xbf16> to vector<8x32xbf16>
    %cst_22 = arith.constant dense<0.000000e+00> : vector<8x32xf32>
    %63 = tpu.matmul %60, %62, %cst_22 {dimension_numbers = #tpu.dot_dimension_numbers<[1], [0], [0], [1], [0, 0, 1, 1], [], []>} : vector<8x8xbf16>, vector<8x32xbf16>, vector<8x32xf32> -> vector<8x32xf32>
    %64 = vector.broadcast %57 : vector<1x32xf32> to vector<8x32xf32>
    %65 = arith.addf %64, %63 : vector<8x32xf32>
    %66 = vector.extract_strided_slice %55 {offsets = [1, 0, 0], sizes = [1, 8, 8], strides = [1, 1, 1]} : vector<4x8x8xf32> to vector<1x8x8xf32>
    %67 = vector.shape_cast %66 : vector<1x8x8xf32> to vector<8x8xf32>
    %68 = arith.truncf %67 : vector<8x8xf32> to vector<8x8xbf16>
    %c0_23 = arith.constant 0 : index
    %c1 = arith.constant 1 : index
    %c0_24 = arith.constant 0 : index
    %c0_25 = arith.constant 0 : index
    %69 = vector.load %arg5[%c0_23, %c1, %c0_24, %c0_25] : memref<2x4x8x32xbf16, #tpu.memory_space<vmem>>, vector<1x1x8x32xbf16>
    %70 = vector.shape_cast %69 : vector<1x1x8x32xbf16> to vector<8x32xbf16>
    %cst_26 = arith.constant dense<0.000000e+00> : vector<8x32xf32>
    %71 = tpu.matmul %68, %70, %cst_26 {dimension_numbers = #tpu.dot_dimension_numbers<[1], [0], [0], [1], [0, 0, 1, 1], [], []>} : vector<8x8xbf16>, vector<8x32xbf16>, vector<8x32xf32> -> vector<8x32xf32>
    %72 = arith.addf %65, %71 : vector<8x32xf32>
    %73 = vector.extract_strided_slice %55 {offsets = [2, 0, 0], sizes = [1, 8, 8], strides = [1, 1, 1]} : vector<4x8x8xf32> to vector<1x8x8xf32>
    %74 = vector.shape_cast %73 : vector<1x8x8xf32> to vector<8x8xf32>
    %75 = arith.truncf %74 : vector<8x8xf32> to vector<8x8xbf16>
    %c0_27 = arith.constant 0 : index
    %c2 = arith.constant 2 : index
    %c0_28 = arith.constant 0 : index
    %c0_29 = arith.constant 0 : index
    %76 = vector.load %arg5[%c0_27, %c2, %c0_28, %c0_29] : memref<2x4x8x32xbf16, #tpu.memory_space<vmem>>, vector<1x1x8x32xbf16>
    %77 = vector.shape_cast %76 : vector<1x1x8x32xbf16> to vector<8x32xbf16>
    %cst_30 = arith.constant dense<0.000000e+00> : vector<8x32xf32>
    %78 = tpu.matmul %75, %77, %cst_30 {dimension_numbers = #tpu.dot_dimension_numbers<[1], [0], [0], [1], [0, 0, 1, 1], [], []>} : vector<8x8xbf16>, vector<8x32xbf16>, vector<8x32xf32> -> vector<8x32xf32>
    %79 = arith.addf %72, %78 : vector<8x32xf32>
    %80 = vector.extract_strided_slice %55 {offsets = [3, 0, 0], sizes = [1, 8, 8], strides = [1, 1, 1]} : vector<4x8x8xf32> to vector<1x8x8xf32>
    %81 = vector.shape_cast %80 : vector<1x8x8xf32> to vector<8x8xf32>
    %82 = arith.truncf %81 : vector<8x8xf32> to vector<8x8xbf16>
    %c0_31 = arith.constant 0 : index
    %c3 = arith.constant 3 : index
    %c0_32 = arith.constant 0 : index
    %c0_33 = arith.constant 0 : index
    %83 = vector.load %arg5[%c0_31, %c3, %c0_32, %c0_33] : memref<2x4x8x32xbf16, #tpu.memory_space<vmem>>, vector<1x1x8x32xbf16>
    %84 = vector.shape_cast %83 : vector<1x1x8x32xbf16> to vector<8x32xbf16>
    %cst_34 = arith.constant dense<0.000000e+00> : vector<8x32xf32>
    %85 = tpu.matmul %82, %84, %cst_34 {dimension_numbers = #tpu.dot_dimension_numbers<[1], [0], [0], [1], [0, 0, 1, 1], [], []>} : vector<8x8xbf16>, vector<8x32xbf16>, vector<8x32xf32> -> vector<8x32xf32>
    %86 = arith.addf %79, %85 : vector<8x32xf32>
    %87 = arith.addf %1, %86 : vector<8x32xf32>
    %c0_35 = arith.constant 0 : index
    %c0_36 = arith.constant 0 : index
    %c0_37 = arith.constant 0 : index
    %88 = vector.load %arg7[%c0_35, %c0_36, %c0_37] : memref<2x1x32xf32, #tpu.memory_space<vmem>>, vector<1x1x32xf32>
    %89 = vector.shape_cast %88 : vector<1x1x32xf32> to vector<1x32xf32>
    %c0_38 = arith.constant 0 : index
    %c0_39 = arith.constant 0 : index
    %c0_40 = arith.constant 0 : index
    %90 = vector.load %arg8[%c0_38, %c0_39, %c0_40] : memref<2x1x32xf32, #tpu.memory_space<vmem>>, vector<1x1x32xf32>
    %91 = vector.shape_cast %90 : vector<1x1x32xf32> to vector<1x32xf32>
    %cst_41 = arith.constant dense<0.000000e+00> : vector<8xf32>
    %92 = vector.multi_reduction <add>, %87, %cst_41 [1] : vector<8x32xf32> to vector<8xf32>
    %93 = vector.shape_cast %92 : vector<8xf32> to vector<8x1xf32>
    %cst_42 = arith.constant 3.200000e+01 : f32
    %94 = vector.broadcast %cst_42 : f32 to vector<8x1xf32>
    %95 = arith.divf %93, %94 : vector<8x1xf32>
    %96 = vector.broadcast %95 : vector<8x1xf32> to vector<8x32xf32>
    %97 = arith.subf %87, %96 : vector<8x32xf32>
    %98 = arith.mulf %97, %97 : vector<8x32xf32>
    %cst_43 = arith.constant dense<0.000000e+00> : vector<8xf32>
    %99 = vector.multi_reduction <add>, %98, %cst_43 [1] : vector<8x32xf32> to vector<8xf32>
    %100 = vector.shape_cast %99 : vector<8xf32> to vector<8x1xf32>
    %cst_44 = arith.constant 3.200000e+01 : f32
    %101 = vector.broadcast %cst_44 : f32 to vector<8x1xf32>
    %102 = arith.divf %100, %101 : vector<8x1xf32>
    %cst_45 = arith.constant 9.99999974E-6 : f32
    %103 = vector.broadcast %cst_45 : f32 to vector<8x1xf32>
    %104 = arith.addf %102, %103 : vector<8x1xf32>
    %105 = math.rsqrt %104 : vector<8x1xf32>
    %106 = vector.broadcast %105 : vector<8x1xf32> to vector<8x32xf32>
    %107 = arith.mulf %97, %106 : vector<8x32xf32>
    %108 = vector.broadcast %89 : vector<1x32xf32> to vector<8x32xf32>
    %109 = arith.mulf %107, %108 : vector<8x32xf32>
    %110 = vector.broadcast %91 : vector<1x32xf32> to vector<8x32xf32>
    %111 = arith.addf %109, %110 : vector<8x32xf32>
    %112 = arith.truncf %111 : vector<8x32xf32> to vector<8x32xbf16>
    %c0_46 = arith.constant 0 : index
    %c0_47 = arith.constant 0 : index
    %c0_48 = arith.constant 0 : index
    %113 = vector.load %arg9[%c0_46, %c0_47, %c0_48] : memref<2x32x128xbf16, #tpu.memory_space<vmem>>, vector<1x32x128xbf16>
    %114 = vector.shape_cast %113 : vector<1x32x128xbf16> to vector<32x128xbf16>
    %cst_49 = arith.constant dense<0.000000e+00> : vector<8x128xf32>
    %115 = tpu.matmul %112, %114, %cst_49 {dimension_numbers = #tpu.dot_dimension_numbers<[1], [0], [0], [1], [0, 0, 1, 1], [], []>} : vector<8x32xbf16>, vector<32x128xbf16>, vector<8x128xf32> -> vector<8x128xf32>
    %c0_50 = arith.constant 0 : index
    %c0_51 = arith.constant 0 : index
    %c0_52 = arith.constant 0 : index
    %116 = vector.load %arg10[%c0_50, %c0_51, %c0_52] : memref<2x1x128xf32, #tpu.memory_space<vmem>>, vector<1x1x128xf32>
    %117 = vector.shape_cast %116 : vector<1x1x128xf32> to vector<1x128xf32>
    %118 = vector.broadcast %117 : vector<1x128xf32> to vector<8x128xf32>
    %119 = arith.addf %115, %118 : vector<8x128xf32>
    %cst_53 = arith.constant 0.000000e+00 : f32
    %120 = vector.broadcast %cst_53 : f32 to vector<8x128xf32>
    %121 = arith.maximumf %119, %120 : vector<8x128xf32>
    %122 = arith.truncf %121 : vector<8x128xf32> to vector<8x128xbf16>
    %c0_54 = arith.constant 0 : index
    %c0_55 = arith.constant 0 : index
    %c0_56 = arith.constant 0 : index
    %123 = vector.load %arg11[%c0_54, %c0_55, %c0_56] : memref<2x128x32xbf16, #tpu.memory_space<vmem>>, vector<1x128x32xbf16>
    %124 = vector.shape_cast %123 : vector<1x128x32xbf16> to vector<128x32xbf16>
    %cst_57 = arith.constant dense<0.000000e+00> : vector<8x32xf32>
    %125 = tpu.matmul %122, %124, %cst_57 {dimension_numbers = #tpu.dot_dimension_numbers<[1], [0], [0], [1], [0, 0, 1, 1], [], []>} : vector<8x128xbf16>, vector<128x32xbf16>, vector<8x32xf32> -> vector<8x32xf32>
    %c0_58 = arith.constant 0 : index
    %c0_59 = arith.constant 0 : index
    %c0_60 = arith.constant 0 : index
    %126 = vector.load %arg12[%c0_58, %c0_59, %c0_60] : memref<2x1x32xf32, #tpu.memory_space<vmem>>, vector<1x1x32xf32>
    %127 = vector.shape_cast %126 : vector<1x1x32xf32> to vector<1x32xf32>
    %128 = vector.broadcast %127 : vector<1x32xf32> to vector<8x32xf32>
    %129 = arith.addf %125, %128 : vector<8x32xf32>
    %130 = arith.addf %111, %129 : vector<8x32xf32>
    %c0_61 = arith.constant 0 : index
    %c0_62 = arith.constant 0 : index
    %c0_63 = arith.constant 0 : index
    %131 = vector.load %arg13[%c0_61, %c0_62, %c0_63] : memref<2x1x32xf32, #tpu.memory_space<vmem>>, vector<1x1x32xf32>
    %132 = vector.shape_cast %131 : vector<1x1x32xf32> to vector<1x32xf32>
    %c0_64 = arith.constant 0 : index
    %c0_65 = arith.constant 0 : index
    %c0_66 = arith.constant 0 : index
    %133 = vector.load %arg14[%c0_64, %c0_65, %c0_66] : memref<2x1x32xf32, #tpu.memory_space<vmem>>, vector<1x1x32xf32>
    %134 = vector.shape_cast %133 : vector<1x1x32xf32> to vector<1x32xf32>
    %cst_67 = arith.constant dense<0.000000e+00> : vector<8xf32>
    %135 = vector.multi_reduction <add>, %130, %cst_67 [1] : vector<8x32xf32> to vector<8xf32>
    %136 = vector.shape_cast %135 : vector<8xf32> to vector<8x1xf32>
    %cst_68 = arith.constant 3.200000e+01 : f32
    %137 = vector.broadcast %cst_68 : f32 to vector<8x1xf32>
    %138 = arith.divf %136, %137 : vector<8x1xf32>
    %139 = vector.broadcast %138 : vector<8x1xf32> to vector<8x32xf32>
    %140 = arith.subf %130, %139 : vector<8x32xf32>
    %141 = arith.mulf %140, %140 : vector<8x32xf32>
    %cst_69 = arith.constant dense<0.000000e+00> : vector<8xf32>
    %142 = vector.multi_reduction <add>, %141, %cst_69 [1] : vector<8x32xf32> to vector<8xf32>
    %143 = vector.shape_cast %142 : vector<8xf32> to vector<8x1xf32>
    %cst_70 = arith.constant 3.200000e+01 : f32
    %144 = vector.broadcast %cst_70 : f32 to vector<8x1xf32>
    %145 = arith.divf %143, %144 : vector<8x1xf32>
    %cst_71 = arith.constant 9.99999974E-6 : f32
    %146 = vector.broadcast %cst_71 : f32 to vector<8x1xf32>
    %147 = arith.addf %145, %146 : vector<8x1xf32>
    %148 = math.rsqrt %147 : vector<8x1xf32>
    %149 = vector.broadcast %148 : vector<8x1xf32> to vector<8x32xf32>
    %150 = arith.mulf %140, %149 : vector<8x32xf32>
    %151 = vector.broadcast %132 : vector<1x32xf32> to vector<8x32xf32>
    %152 = arith.mulf %150, %151 : vector<8x32xf32>
    %153 = vector.broadcast %134 : vector<1x32xf32> to vector<8x32xf32>
    %154 = arith.addf %152, %153 : vector<8x32xf32>
    %155 = arith.truncf %154 : vector<8x32xf32> to vector<8x32xbf16>
    %c1_72 = arith.constant 1 : index
    %c0_73 = arith.constant 0 : index
    %c0_74 = arith.constant 0 : index
    %156 = vector.load %arg3[%c1_72, %c0_73, %c0_74] : memref<2x32x96xbf16, #tpu.memory_space<vmem>>, vector<1x32x96xbf16>
    %157 = vector.shape_cast %156 : vector<1x32x96xbf16> to vector<32x96xbf16>
    %cst_75 = arith.constant dense<0.000000e+00> : vector<8x96xf32>
    %158 = tpu.matmul %155, %157, %cst_75 {dimension_numbers = #tpu.dot_dimension_numbers<[1], [0], [0], [1], [0, 0, 1, 1], [], []>} : vector<8x32xbf16>, vector<32x96xbf16>, vector<8x96xf32> -> vector<8x96xf32>
    %c1_76 = arith.constant 1 : index
    %c0_77 = arith.constant 0 : index
    %c0_78 = arith.constant 0 : index
    %159 = vector.load %arg4[%c1_76, %c0_77, %c0_78] : memref<2x1x96xf32, #tpu.memory_space<vmem>>, vector<1x1x96xf32>
    %160 = vector.shape_cast %159 : vector<1x1x96xf32> to vector<1x96xf32>
    %161 = vector.broadcast %160 : vector<1x96xf32> to vector<8x96xf32>
    %162 = arith.addf %158, %161 : vector<8x96xf32>
    %163 = arith.truncf %162 : vector<8x96xf32> to vector<8x96xbf16>
    %164 = vector.extract_strided_slice %163 {offsets = [0, 0], sizes = [8, 8], strides = [1, 1]} : vector<8x96xbf16> to vector<8x8xbf16>
    %165 = vector.extract_strided_slice %163 {offsets = [0, 8], sizes = [8, 8], strides = [1, 1]} : vector<8x96xbf16> to vector<8x8xbf16>
    %166 = vector.extract_strided_slice %163 {offsets = [0, 16], sizes = [8, 8], strides = [1, 1]} : vector<8x96xbf16> to vector<8x8xbf16>
    %167 = vector.extract_strided_slice %163 {offsets = [0, 24], sizes = [8, 8], strides = [1, 1]} : vector<8x96xbf16> to vector<8x8xbf16>
    %168 = vector.shape_cast %164 : vector<8x8xbf16> to vector<1x8x8xbf16>
    %169 = vector.shape_cast %165 : vector<8x8xbf16> to vector<1x8x8xbf16>
    %170 = vector.shape_cast %166 : vector<8x8xbf16> to vector<1x8x8xbf16>
    %171 = vector.shape_cast %167 : vector<8x8xbf16> to vector<1x8x8xbf16>
    %172 = tpu.concatenate %168, %169, %170, %171 in 0 : vector<1x8x8xbf16>, vector<1x8x8xbf16>, vector<1x8x8xbf16>, vector<1x8x8xbf16> -> vector<4x8x8xbf16>
    %173 = vector.extract_strided_slice %163 {offsets = [0, 32], sizes = [8, 8], strides = [1, 1]} : vector<8x96xbf16> to vector<8x8xbf16>
    %174 = vector.extract_strided_slice %163 {offsets = [0, 40], sizes = [8, 8], strides = [1, 1]} : vector<8x96xbf16> to vector<8x8xbf16>
    %175 = vector.extract_strided_slice %163 {offsets = [0, 48], sizes = [8, 8], strides = [1, 1]} : vector<8x96xbf16> to vector<8x8xbf16>
    %176 = vector.extract_strided_slice %163 {offsets = [0, 56], sizes = [8, 8], strides = [1, 1]} : vector<8x96xbf16> to vector<8x8xbf16>
    %177 = vector.shape_cast %173 : vector<8x8xbf16> to vector<1x8x8xbf16>
    %178 = vector.shape_cast %174 : vector<8x8xbf16> to vector<1x8x8xbf16>
    %179 = vector.shape_cast %175 : vector<8x8xbf16> to vector<1x8x8xbf16>
    %180 = vector.shape_cast %176 : vector<8x8xbf16> to vector<1x8x8xbf16>
    %181 = tpu.concatenate %177, %178, %179, %180 in 0 : vector<1x8x8xbf16>, vector<1x8x8xbf16>, vector<1x8x8xbf16>, vector<1x8x8xbf16> -> vector<4x8x8xbf16>
    %182 = vector.extract_strided_slice %163 {offsets = [0, 64], sizes = [8, 8], strides = [1, 1]} : vector<8x96xbf16> to vector<8x8xbf16>
    %183 = vector.extract_strided_slice %163 {offsets = [0, 72], sizes = [8, 8], strides = [1, 1]} : vector<8x96xbf16> to vector<8x8xbf16>
    %184 = vector.extract_strided_slice %163 {offsets = [0, 80], sizes = [8, 8], strides = [1, 1]} : vector<8x96xbf16> to vector<8x8xbf16>
    %185 = vector.extract_strided_slice %163 {offsets = [0, 88], sizes = [8, 8], strides = [1, 1]} : vector<8x96xbf16> to vector<8x8xbf16>
    %186 = vector.shape_cast %182 : vector<8x8xbf16> to vector<1x8x8xbf16>
    %187 = vector.shape_cast %183 : vector<8x8xbf16> to vector<1x8x8xbf16>
    %188 = vector.shape_cast %184 : vector<8x8xbf16> to vector<1x8x8xbf16>
    %189 = vector.shape_cast %185 : vector<8x8xbf16> to vector<1x8x8xbf16>
    %190 = tpu.concatenate %186, %187, %188, %189 in 0 : vector<1x8x8xbf16>, vector<1x8x8xbf16>, vector<1x8x8xbf16>, vector<1x8x8xbf16> -> vector<4x8x8xbf16>
    "tpu.trace_start"() <{level = 10 : i32, message = "hqd,hkd->hqk"}> : () -> ()
    %cst_79 = arith.constant dense<0.000000e+00> : vector<4x8x8xf32>
    %191 = tpu.matmul %172, %181, %cst_79 {dimension_numbers = #tpu.dot_dimension_numbers<[2], [2], [1], [1], [0, 0, 0, 1, 1, 1], [0], [0]>} : vector<4x8x8xbf16>, vector<4x8x8xbf16>, vector<4x8x8xf32> -> vector<4x8x8xf32>
    "tpu.trace_stop"() : () -> ()
    %192 = vector.broadcast %4 : vector<1x1x8xf32> to vector<4x8x8xf32>
    %193 = arith.addf %191, %192 : vector<4x8x8xf32>
    %cst_80 = arith.constant dense<0xFF800000> : vector<4x8xf32>
    %194 = vector.multi_reduction <maximumf>, %193, %cst_80 [2] : vector<4x8x8xf32> to vector<4x8xf32>
    %195 = vector.shape_cast %194 : vector<4x8xf32> to vector<4x8x1xf32>
    %196 = vector.broadcast %195 : vector<4x8x1xf32> to vector<4x8x8xf32>
    %197 = arith.subf %193, %196 : vector<4x8x8xf32>
    %198 = math.exp %197 : vector<4x8x8xf32>
    %cst_81 = arith.constant dense<0.000000e+00> : vector<4x8xf32>
    %199 = vector.multi_reduction <add>, %198, %cst_81 [2] : vector<4x8x8xf32> to vector<4x8xf32>
    %200 = vector.shape_cast %199 : vector<4x8xf32> to vector<4x8x1xf32>
    %201 = tpu.reciprocal %200 {approx = true} : vector<4x8x1xf32> -> vector<4x8x1xf32>
    %202 = vector.broadcast %201 : vector<4x8x1xf32> to vector<4x8x8xf32>
    %203 = arith.mulf %198, %202 : vector<4x8x8xf32>
    %204 = arith.truncf %203 : vector<4x8x8xf32> to vector<4x8x8xbf16>
    "tpu.trace_start"() <{level = 10 : i32, message = "hqk,hkd->hqd"}> : () -> ()
    %cst_82 = arith.constant dense<0.000000e+00> : vector<4x8x8xf32>
    %205 = tpu.matmul %204, %190, %cst_82 {dimension_numbers = #tpu.dot_dimension_numbers<[2], [1], [1], [2], [0, 0, 0, 1, 1, 2], [0], [0]>} : vector<4x8x8xbf16>, vector<4x8x8xbf16>, vector<4x8x8xf32> -> vector<4x8x8xf32>
    "tpu.trace_stop"() : () -> ()
    %c1_83 = arith.constant 1 : index
    %c0_84 = arith.constant 0 : index
    %c0_85 = arith.constant 0 : index
    %206 = vector.load %arg6[%c1_83, %c0_84, %c0_85] : memref<2x1x32xf32, #tpu.memory_space<vmem>>, vector<1x1x32xf32>
    %207 = vector.shape_cast %206 : vector<1x1x32xf32> to vector<1x32xf32>
    %208 = vector.extract_strided_slice %205 {offsets = [0, 0, 0], sizes = [1, 8, 8], strides = [1, 1, 1]} : vector<4x8x8xf32> to vector<1x8x8xf32>
    %209 = vector.shape_cast %208 : vector<1x8x8xf32> to vector<8x8xf32>
    %210 = arith.truncf %209 : vector<8x8xf32> to vector<8x8xbf16>
    %c1_86 = arith.constant 1 : index
    %c0_87 = arith.constant 0 : index
    %c0_88 = arith.constant 0 : index
    %c0_89 = arith.constant 0 : index
    %211 = vector.load %arg5[%c1_86, %c0_87, %c0_88, %c0_89] : memref<2x4x8x32xbf16, #tpu.memory_space<vmem>>, vector<1x1x8x32xbf16>
    %212 = vector.shape_cast %211 : vector<1x1x8x32xbf16> to vector<8x32xbf16>
    %cst_90 = arith.constant dense<0.000000e+00> : vector<8x32xf32>
    %213 = tpu.matmul %210, %212, %cst_90 {dimension_numbers = #tpu.dot_dimension_numbers<[1], [0], [0], [1], [0, 0, 1, 1], [], []>} : vector<8x8xbf16>, vector<8x32xbf16>, vector<8x32xf32> -> vector<8x32xf32>
    %214 = vector.broadcast %207 : vector<1x32xf32> to vector<8x32xf32>
    %215 = arith.addf %214, %213 : vector<8x32xf32>
    %216 = vector.extract_strided_slice %205 {offsets = [1, 0, 0], sizes = [1, 8, 8], strides = [1, 1, 1]} : vector<4x8x8xf32> to vector<1x8x8xf32>
    %217 = vector.shape_cast %216 : vector<1x8x8xf32> to vector<8x8xf32>
    %218 = arith.truncf %217 : vector<8x8xf32> to vector<8x8xbf16>
    %c1_91 = arith.constant 1 : index
    %c1_92 = arith.constant 1 : index
    %c0_93 = arith.constant 0 : index
    %c0_94 = arith.constant 0 : index
    %219 = vector.load %arg5[%c1_91, %c1_92, %c0_93, %c0_94] : memref<2x4x8x32xbf16, #tpu.memory_space<vmem>>, vector<1x1x8x32xbf16>
    %220 = vector.shape_cast %219 : vector<1x1x8x32xbf16> to vector<8x32xbf16>
    %cst_95 = arith.constant dense<0.000000e+00> : vector<8x32xf32>
    %221 = tpu.matmul %218, %220, %cst_95 {dimension_numbers = #tpu.dot_dimension_numbers<[1], [0], [0], [1], [0, 0, 1, 1], [], []>} : vector<8x8xbf16>, vector<8x32xbf16>, vector<8x32xf32> -> vector<8x32xf32>
    %222 = arith.addf %215, %221 : vector<8x32xf32>
    %223 = vector.extract_strided_slice %205 {offsets = [2, 0, 0], sizes = [1, 8, 8], strides = [1, 1, 1]} : vector<4x8x8xf32> to vector<1x8x8xf32>
    %224 = vector.shape_cast %223 : vector<1x8x8xf32> to vector<8x8xf32>
    %225 = arith.truncf %224 : vector<8x8xf32> to vector<8x8xbf16>
    %c1_96 = arith.constant 1 : index
    %c2_97 = arith.constant 2 : index
    %c0_98 = arith.constant 0 : index
    %c0_99 = arith.constant 0 : index
    %226 = vector.load %arg5[%c1_96, %c2_97, %c0_98, %c0_99] : memref<2x4x8x32xbf16, #tpu.memory_space<vmem>>, vector<1x1x8x32xbf16>
    %227 = vector.shape_cast %226 : vector<1x1x8x32xbf16> to vector<8x32xbf16>
    %cst_100 = arith.constant dense<0.000000e+00> : vector<8x32xf32>
    %228 = tpu.matmul %225, %227, %cst_100 {dimension_numbers = #tpu.dot_dimension_numbers<[1], [0], [0], [1], [0, 0, 1, 1], [], []>} : vector<8x8xbf16>, vector<8x32xbf16>, vector<8x32xf32> -> vector<8x32xf32>
    %229 = arith.addf %222, %228 : vector<8x32xf32>
    %230 = vector.extract_strided_slice %205 {offsets = [3, 0, 0], sizes = [1, 8, 8], strides = [1, 1, 1]} : vector<4x8x8xf32> to vector<1x8x8xf32>
    %231 = vector.shape_cast %230 : vector<1x8x8xf32> to vector<8x8xf32>
    %232 = arith.truncf %231 : vector<8x8xf32> to vector<8x8xbf16>
    %c1_101 = arith.constant 1 : index
    %c3_102 = arith.constant 3 : index
    %c0_103 = arith.constant 0 : index
    %c0_104 = arith.constant 0 : index
    %233 = vector.load %arg5[%c1_101, %c3_102, %c0_103, %c0_104] : memref<2x4x8x32xbf16, #tpu.memory_space<vmem>>, vector<1x1x8x32xbf16>
    %234 = vector.shape_cast %233 : vector<1x1x8x32xbf16> to vector<8x32xbf16>
    %cst_105 = arith.constant dense<0.000000e+00> : vector<8x32xf32>
    %235 = tpu.matmul %232, %234, %cst_105 {dimension_numbers = #tpu.dot_dimension_numbers<[1], [0], [0], [1], [0, 0, 1, 1], [], []>} : vector<8x8xbf16>, vector<8x32xbf16>, vector<8x32xf32> -> vector<8x32xf32>
    %236 = arith.addf %229, %235 : vector<8x32xf32>
    %237 = arith.addf %154, %236 : vector<8x32xf32>
    %c1_106 = arith.constant 1 : index
    %c0_107 = arith.constant 0 : index
    %c0_108 = arith.constant 0 : index
    %238 = vector.load %arg7[%c1_106, %c0_107, %c0_108] : memref<2x1x32xf32, #tpu.memory_space<vmem>>, vector<1x1x32xf32>
    %239 = vector.shape_cast %238 : vector<1x1x32xf32> to vector<1x32xf32>
    %c1_109 = arith.constant 1 : index
    %c0_110 = arith.constant 0 : index
    %c0_111 = arith.constant 0 : index
    %240 = vector.load %arg8[%c1_109, %c0_110, %c0_111] : memref<2x1x32xf32, #tpu.memory_space<vmem>>, vector<1x1x32xf32>
    %241 = vector.shape_cast %240 : vector<1x1x32xf32> to vector<1x32xf32>
    %cst_112 = arith.constant dense<0.000000e+00> : vector<8xf32>
    %242 = vector.multi_reduction <add>, %237, %cst_112 [1] : vector<8x32xf32> to vector<8xf32>
    %243 = vector.shape_cast %242 : vector<8xf32> to vector<8x1xf32>
    %cst_113 = arith.constant 3.200000e+01 : f32
    %244 = vector.broadcast %cst_113 : f32 to vector<8x1xf32>
    %245 = arith.divf %243, %244 : vector<8x1xf32>
    %246 = vector.broadcast %245 : vector<8x1xf32> to vector<8x32xf32>
    %247 = arith.subf %237, %246 : vector<8x32xf32>
    %248 = arith.mulf %247, %247 : vector<8x32xf32>
    %cst_114 = arith.constant dense<0.000000e+00> : vector<8xf32>
    %249 = vector.multi_reduction <add>, %248, %cst_114 [1] : vector<8x32xf32> to vector<8xf32>
    %250 = vector.shape_cast %249 : vector<8xf32> to vector<8x1xf32>
    %cst_115 = arith.constant 3.200000e+01 : f32
    %251 = vector.broadcast %cst_115 : f32 to vector<8x1xf32>
    %252 = arith.divf %250, %251 : vector<8x1xf32>
    %cst_116 = arith.constant 9.99999974E-6 : f32
    %253 = vector.broadcast %cst_116 : f32 to vector<8x1xf32>
    %254 = arith.addf %252, %253 : vector<8x1xf32>
    %255 = math.rsqrt %254 : vector<8x1xf32>
    %256 = vector.broadcast %255 : vector<8x1xf32> to vector<8x32xf32>
    %257 = arith.mulf %247, %256 : vector<8x32xf32>
    %258 = vector.broadcast %239 : vector<1x32xf32> to vector<8x32xf32>
    %259 = arith.mulf %257, %258 : vector<8x32xf32>
    %260 = vector.broadcast %241 : vector<1x32xf32> to vector<8x32xf32>
    %261 = arith.addf %259, %260 : vector<8x32xf32>
    %262 = arith.truncf %261 : vector<8x32xf32> to vector<8x32xbf16>
    %c1_117 = arith.constant 1 : index
    %c0_118 = arith.constant 0 : index
    %c0_119 = arith.constant 0 : index
    %263 = vector.load %arg9[%c1_117, %c0_118, %c0_119] : memref<2x32x128xbf16, #tpu.memory_space<vmem>>, vector<1x32x128xbf16>
    %264 = vector.shape_cast %263 : vector<1x32x128xbf16> to vector<32x128xbf16>
    %cst_120 = arith.constant dense<0.000000e+00> : vector<8x128xf32>
    %265 = tpu.matmul %262, %264, %cst_120 {dimension_numbers = #tpu.dot_dimension_numbers<[1], [0], [0], [1], [0, 0, 1, 1], [], []>} : vector<8x32xbf16>, vector<32x128xbf16>, vector<8x128xf32> -> vector<8x128xf32>
    %c1_121 = arith.constant 1 : index
    %c0_122 = arith.constant 0 : index
    %c0_123 = arith.constant 0 : index
    %266 = vector.load %arg10[%c1_121, %c0_122, %c0_123] : memref<2x1x128xf32, #tpu.memory_space<vmem>>, vector<1x1x128xf32>
    %267 = vector.shape_cast %266 : vector<1x1x128xf32> to vector<1x128xf32>
    %268 = vector.broadcast %267 : vector<1x128xf32> to vector<8x128xf32>
    %269 = arith.addf %265, %268 : vector<8x128xf32>
    %cst_124 = arith.constant 0.000000e+00 : f32
    %270 = vector.broadcast %cst_124 : f32 to vector<8x128xf32>
    %271 = arith.maximumf %269, %270 : vector<8x128xf32>
    %272 = arith.truncf %271 : vector<8x128xf32> to vector<8x128xbf16>
    %c1_125 = arith.constant 1 : index
    %c0_126 = arith.constant 0 : index
    %c0_127 = arith.constant 0 : index
    %273 = vector.load %arg11[%c1_125, %c0_126, %c0_127] : memref<2x128x32xbf16, #tpu.memory_space<vmem>>, vector<1x128x32xbf16>
    %274 = vector.shape_cast %273 : vector<1x128x32xbf16> to vector<128x32xbf16>
    %cst_128 = arith.constant dense<0.000000e+00> : vector<8x32xf32>
    %275 = tpu.matmul %272, %274, %cst_128 {dimension_numbers = #tpu.dot_dimension_numbers<[1], [0], [0], [1], [0, 0, 1, 1], [], []>} : vector<8x128xbf16>, vector<128x32xbf16>, vector<8x32xf32> -> vector<8x32xf32>
    %c1_129 = arith.constant 1 : index
    %c0_130 = arith.constant 0 : index
    %c0_131 = arith.constant 0 : index
    %276 = vector.load %arg12[%c1_129, %c0_130, %c0_131] : memref<2x1x32xf32, #tpu.memory_space<vmem>>, vector<1x1x32xf32>
    %277 = vector.shape_cast %276 : vector<1x1x32xf32> to vector<1x32xf32>
    %278 = vector.broadcast %277 : vector<1x32xf32> to vector<8x32xf32>
    %279 = arith.addf %275, %278 : vector<8x32xf32>
    %280 = arith.addf %261, %279 : vector<8x32xf32>
    %c1_132 = arith.constant 1 : index
    %c0_133 = arith.constant 0 : index
    %c0_134 = arith.constant 0 : index
    %281 = vector.load %arg13[%c1_132, %c0_133, %c0_134] : memref<2x1x32xf32, #tpu.memory_space<vmem>>, vector<1x1x32xf32>
    %282 = vector.shape_cast %281 : vector<1x1x32xf32> to vector<1x32xf32>
    %c1_135 = arith.constant 1 : index
    %c0_136 = arith.constant 0 : index
    %c0_137 = arith.constant 0 : index
    %283 = vector.load %arg14[%c1_135, %c0_136, %c0_137] : memref<2x1x32xf32, #tpu.memory_space<vmem>>, vector<1x1x32xf32>
    %284 = vector.shape_cast %283 : vector<1x1x32xf32> to vector<1x32xf32>
    %cst_138 = arith.constant dense<0.000000e+00> : vector<8xf32>
    %285 = vector.multi_reduction <add>, %280, %cst_138 [1] : vector<8x32xf32> to vector<8xf32>
    %286 = vector.shape_cast %285 : vector<8xf32> to vector<8x1xf32>
    %cst_139 = arith.constant 3.200000e+01 : f32
    %287 = vector.broadcast %cst_139 : f32 to vector<8x1xf32>
    %288 = arith.divf %286, %287 : vector<8x1xf32>
    %289 = vector.broadcast %288 : vector<8x1xf32> to vector<8x32xf32>
    %290 = arith.subf %280, %289 : vector<8x32xf32>
    %291 = arith.mulf %290, %290 : vector<8x32xf32>
    %cst_140 = arith.constant dense<0.000000e+00> : vector<8xf32>
    %292 = vector.multi_reduction <add>, %291, %cst_140 [1] : vector<8x32xf32> to vector<8xf32>
    %293 = vector.shape_cast %292 : vector<8xf32> to vector<8x1xf32>
    %cst_141 = arith.constant 3.200000e+01 : f32
    %294 = vector.broadcast %cst_141 : f32 to vector<8x1xf32>
    %295 = arith.divf %293, %294 : vector<8x1xf32>
    %cst_142 = arith.constant 9.99999974E-6 : f32
    %296 = vector.broadcast %cst_142 : f32 to vector<8x1xf32>
    %297 = arith.addf %295, %296 : vector<8x1xf32>
    %298 = math.rsqrt %297 : vector<8x1xf32>
    %299 = vector.broadcast %298 : vector<8x1xf32> to vector<8x32xf32>
    %300 = arith.mulf %290, %299 : vector<8x32xf32>
    %301 = vector.broadcast %282 : vector<1x32xf32> to vector<8x32xf32>
    %302 = arith.mulf %300, %301 : vector<8x32xf32>
    %303 = vector.broadcast %284 : vector<1x32xf32> to vector<8x32xf32>
    %304 = arith.addf %302, %303 : vector<8x32xf32>
    %c0_143 = arith.constant 0 : index
    %c0_144 = arith.constant 0 : index
    %c0_145 = arith.constant 0 : index
    %305 = vector.load %arg15[%c0_143, %c0_144, %c0_145] : memref<1x8x32xf32, #tpu.memory_space<vmem>>, vector<1x8x32xf32>
    %306 = vector.shape_cast %305 : vector<1x8x32xf32> to vector<8x32xf32>
    %307 = vector.shape_cast %304 : vector<8x32xf32> to vector<1x8x32xf32>
    tpu.vector_store %arg15[%c0_143, %c0_144, %c0_145], %307 {strides = array<i32>} : memref<1x8x32xf32, #tpu.memory_space<vmem>>, vector<1x8x32xf32>,
    return
  }
  func.func @transform_0(%arg0: i32) -> (i32, i32, i32) {
    %c0_i32 = arith.constant 0 : i32
    %c0_i32_0 = arith.constant 0 : i32
    %c0_i32_1 = arith.constant 0 : i32
    return %arg0, %c0_i32, %c0_i32_0 : i32, i32, i32
  }
  func.func @transform_1(%arg0: i32) -> (i32, i32, i32) {
    %c0_i32 = arith.constant 0 : i32
    %c0_i32_0 = arith.constant 0 : i32
    %c0_i32_1 = arith.constant 0 : i32
    return %arg0, %c0_i32, %c0_i32_0 : i32, i32, i32
  }
  func.func @transform_2(%arg0: i32) -> (i32, i32, i32) {
    %c0_i32 = arith.constant 0 : i32
    %c0_i32_0 = arith.constant 0 : i32
    %c0_i32_1 = arith.constant 0 : i32
    %c0_i32_2 = arith.constant 0 : i32
    return %c0_i32, %c0_i32_0, %c0_i32_1 : i32, i32, i32
  }
  func.func @transform_3(%arg0: i32) -> (i32, i32, i32) {
    %c0_i32 = arith.constant 0 : i32
    %c0_i32_0 = arith.constant 0 : i32
    %c0_i32_1 = arith.constant 0 : i32
    %c0_i32_2 = arith.constant 0 : i32
    return %c0_i32, %c0_i32_0, %c0_i32_1 : i32, i32, i32
  }
  func.func @transform_4(%arg0: i32) -> (i32, i32, i32, i32) {
    %c0_i32 = arith.constant 0 : i32
    %c0_i32_0 = arith.constant 0 : i32
    %c0_i32_1 = arith.constant 0 : i32
    %c0_i32_2 = arith.constant 0 : i32
    %c0_i32_3 = arith.constant 0 : i32
    return %c0_i32, %c0_i32_0, %c0_i32_1, %c0_i32_2 : i32, i32, i32, i32
  }
  func.func @transform_5(%arg0: i32) -> (i32, i32, i32) {
    %c0_i32 = arith.constant 0 : i32
    %c0_i32_0 = arith.constant 0 : i32
    %c0_i32_1 = arith.constant 0 : i32
    %c0_i32_2 = arith.constant 0 : i32
    return %c0_i32, %c0_i32_0, %c0_i32_1 : i32, i32, i32
  }
  func.func @transform_6(%arg0: i32) -> (i32, i32, i32) {
    %c0_i32 = arith.constant 0 : i32
    %c0_i32_0 = arith.constant 0 : i32
    %c0_i32_1 = arith.constant 0 : i32
    %c0_i32_2 = arith.constant 0 : i32
    return %c0_i32, %c0_i32_0, %c0_i32_1 : i32, i32, i32
  }
  func.func @transform_7(%arg0: i32) -> (i32, i32, i32) {
    %c0_i32 = arith.constant 0 : i32
    %c0_i32_0 = arith.constant 0 : i32
    %c0_i32_1 = arith.constant 0 : i32
    %c0_i32_2 = arith.constant 0 : i32
    return %c0_i32, %c0_i32_0, %c0_i32_1 : i32, i32, i32
  }
  func.func @transform_8(%arg0: i32) -> (i32, i32, i32) {
    %c0_i32 = arith.constant 0 : i32
    %c0_i32_0 = arith.constant 0 : i32
    %c0_i32_1 = arith.constant 0 : i32
    %c0_i32_2 = arith.constant 0 : i32
    return %c0_i32, %c0_i32_0, %c0_i32_1 : i32, i32, i32
  }
  func.func @transform_9(%arg0: i32) -> (i32, i32, i32) {
    %c0_i32 = arith.constant 0 : i32
    %c0_i32_0 = arith.constant 0 : i32
    %c0_i32_1 = arith.constant 0 : i32
    %c0_i32_2 = arith.constant 0 : i32
    return %c0_i32, %c0_i32_0, %c0_i32_1 : i32, i32, i32
  }
  func.func @transform_10(%arg0: i32) -> (i32, i32, i32) {
    %c0_i32 = arith.constant 0 : i32
    %c0_i32_0 = arith.constant 0 : i32
    %c0_i32_1 = arith.constant 0 : i32
    %c0_i32_2 = arith.constant 0 : i32
    return %c0_i32, %c0_i32_0, %c0_i32_1 : i32, i32, i32
  }
  func.func @transform_11(%arg0: i32) -> (i32, i32, i32) {
    %c0_i32 = arith.constant 0 : i32
    %c0_i32_0 = arith.constant 0 : i32
    %c0_i32_1 = arith.constant 0 : i32
    %c0_i32_2 = arith.constant 0 : i32
    return %c0_i32, %c0_i32_0, %c0_i32_1 : i32, i32, i32
  }
  func.func @transform_12(%arg0: i32) -> (i32, i32, i32) {
    %c0_i32 = arith.constant 0 : i32
    %c0_i32_0 = arith.constant 0 : i32
    %c0_i32_1 = arith.constant 0 : i32
    %c0_i32_2 = arith.constant 0 : i32
    return %c0_i32, %c0_i32_0, %c0_i32_1 : i32, i32, i32
  }
  func.func @transform_13(%arg0: i32) -> (i32, i32, i32) {
    %c0_i32 = arith.constant 0 : i32
    %c0_i32_0 = arith.constant 0 : i32
    %c0_i32_1 = arith.constant 0 : i32
    %c0_i32_2 = arith.constant 0 : i32
    return %c0_i32, %c0_i32_0, %c0_i32_1 : i32, i32, i32
  }
  func.func @transform_14(%arg0: i32) -> (i32, i32, i32) {
    %c0_i32 = arith.constant 0 : i32
    %c0_i32_0 = arith.constant 0 : i32
    %c0_i32_1 = arith.constant 0 : i32
    return %arg0, %c0_i32, %c0_i32_0 : i32, i32, i32
  }
}

</mosaic_0001>

<llo_original>
// kernel: encoder_transformer_forward.1
$region0: #{encoder_transformer_forward.1}
  #allocation0 [shape = 'u32[]', space=smem, size = 0x4, offset = 0x4, fixed_abs, tag = 'smem constant byte address 0x4 - core index']
  #allocation1 [shape = 'u32[144,128]{1,0:T(1,128)}', space=vmem, size = 0x12000, scoped, tag = 'internal scratch']
  %s0 = inlined_call_operand.vmem [shape: f32[2,8,32], index: 0, kind: input, shape index: {}]
  %s1 = inlined_call_operand.vmem [shape: f32[2,1,8], index: 1, kind: input, shape index: {}]
  %s2 = inlined_call_operand.vmem [shape: bf16[2,32,96], index: 2, kind: input, shape index: {}]
  %s3 = inlined_call_operand.vmem [shape: f32[2,1,96], index: 3, kind: input, shape index: {}]
  %s4 = inlined_call_operand.vmem [shape: bf16[2,4,8,32], index: 4, kind: input, shape index: {}]
  %s5 = inlined_call_operand.vmem [shape: f32[2,1,32], index: 5, kind: input, shape index: {}]
  %s6 = inlined_call_operand.vmem [shape: f32[2,1,32], index: 6, kind: input, shape index: {}]
  %s7 = inlined_call_operand.vmem [shape: f32[2,1,32], index: 7, kind: input, shape index: {}]
  %s8 = inlined_call_operand.vmem [shape: bf16[2,32,128], index: 8, kind: input, shape index: {}]
  %s9 = inlined_call_operand.vmem [shape: f32[2,1,128], index: 9, kind: input, shape index: {}]
  %s10 = inlined_call_operand.vmem [shape: bf16[2,128,32], index: 10, kind: input, shape index: {}]
  %s11 = inlined_call_operand.vmem [shape: f32[2,1,32], index: 11, kind: input, shape index: {}]
  %s12 = inlined_call_operand.vmem [shape: f32[2,1,32], index: 12, kind: input, shape index: {}]
  %s13 = inlined_call_operand.vmem [shape: f32[2,1,32], index: 13, kind: input, shape index: {}]
  %s14 = inlined_call_operand.vmem [shape: f32[2,8,32], index: 14, kind: output, shape index: {}]
  %s15 = sld [smem:[#allocation0]]
  $region89: #{encoder_transformer_forward.1} parent=0
    _
  %s17 = ssub.s32 1, %s15
  %s18 = scalar_select 0, %s17, %s15
  loop: start=0, step=1, limit=4
  $region2: #{encoder_transformer_forward.1} parent=0 // loop_pre_header
    _
  $region3: #{encoder_transformer_forward.1} parent=0 // loop_header
    %s20 = sphi 0, %s24
    %p21 = scmp.ge.s32.totalorder %s20, 4
    %s30 = sphi 0, %s32
    %s33 = sphi 0, %s30
    %s34 = sphi 0, %s33
    %s50 = sphi 0, %s34
    %s56 = sphi 0, %s58
    %s59 = sphi 0, %s56
    %s60 = sphi 0, %s59
    %s76 = sphi 0, %s60
    %s80 = sphi 0, %s80
    %s82 = sphi 0, %s80
    %s83 = sphi 0, %s82
    %s97 = sphi 0, %s83
    %s101 = sphi 0, %s101
    %s103 = sphi 0, %s101
    %s104 = sphi 0, %s103
    %s118 = sphi 0, %s104
    %s122 = sphi 0, %s122
    %s124 = sphi 0, %s122
    %s125 = sphi 0, %s124
    %s139 = sphi 0, %s125
    %s143 = sphi 0, %s143
    %s145 = sphi 0, %s143
    %s146 = sphi 0, %s145
    %s160 = sphi 0, %s146
    %s164 = sphi 0, %s164
    %s166 = sphi 0, %s164
    %s167 = sphi 0, %s166
    %s181 = sphi 0, %s167
    %s185 = sphi 0, %s185
    %s187 = sphi 0, %s185
    %s188 = sphi 0, %s187
    %s202 = sphi 0, %s188
    %s206 = sphi 0, %s206
    %s208 = sphi 0, %s206
    %s209 = sphi 0, %s208
    %s223 = sphi 0, %s209
    %s227 = sphi 0, %s227
    %s229 = sphi 0, %s227
    %s230 = sphi 0, %s229
    %s244 = sphi 0, %s230
    %s248 = sphi 0, %s248
    %s250 = sphi 0, %s248
    %s251 = sphi 0, %s250
    %s265 = sphi 0, %s251
    %s269 = sphi 0, %s269
    %s271 = sphi 0, %s269
    %s272 = sphi 0, %s271
    %s286 = sphi 0, %s272
    %s290 = sphi 0, %s290
    %s292 = sphi 0, %s290
    %s293 = sphi 0, %s292
    %s307 = sphi 0, %s293
    %s311 = sphi 0, %s311
    %s313 = sphi 0, %s311
    %s314 = sphi 0, %s313
    %s328 = sphi 0, %s314
    %s334 = sphi 0, %s336
    %s337 = sphi 0, %s334
    %s338 = sphi 0, %s337
    %s354 = sphi 0, %s338
  $region4: #{encoder_transformer_forward.1} parent=0 // loop_header_branch
    %23 = sbr.rel (%p21) target = $region8
  $region5: #{encoder_transformer_forward.1} parent=0 // loop_body
    %s25 = ssub.s32 %s20, 1
    %s26 = ssub.s32 %s20, 2
    %s27 = sadd.s32 %s20, 1
    %s28 = ssub.s32 %s20, %s27
    %p29 = scmp.eq.s32.totalorder %s28, 0
    %s31 = sadd.s32 %s30, 1
    %s32 = scalar_select %p29, %s30, %s31
    %p35 = pneg %p29
    %p36 = scmp.eq.s32.totalorder %s20, 1
    %p37 = por %p35, %p36
    %p38 = scmp.ne.s32.totalorder %s30, %s33
    %p39 = scmp.eq.s32.totalorder %s20, 0
    %p40 = por %p38, %p39
    %p41 = scmp.ne.s32.totalorder %s30, %s33
    %p42 = scmp.eq.s32.totalorder %s25, 1
    %p43 = por %p41, %p42
    %p44 = scmp.ne.s32.totalorder %s33, %s34
    %p45 = scmp.eq.s32.totalorder %s25, 0
    %p46 = por %p44, %p45
    %p47 = scmp.ne.s32.totalorder %s33, %s34
    %p48 = scmp.eq.s32.totalorder %s26, 1
    %p49 = por %p47, %p48
    %p51 = scmp.ne.s32.totalorder %s34, %s50
    %p52 = scmp.eq.s32.totalorder %s26, 0
    %p53 = por %p51, %p52
    %s54 = ssub.s32 %s20, %s27
    %p55 = scmp.eq.s32.totalorder %s54, 0
    %s57 = sadd.s32 %s56, 1
    %s58 = scalar_select %p55, %s56, %s57
    %p61 = pneg %p55
    %p62 = scmp.eq.s32.totalorder %s20, 1
    %p63 = por %p61, %p62
    %p64 = scmp.ne.s32.totalorder %s56, %s59
    %p65 = scmp.eq.s32.totalorder %s20, 0
    %p66 = por %p64, %p65
    %p67 = scmp.ne.s32.totalorder %s56, %s59
    %p68 = scmp.eq.s32.totalorder %s25, 1
    %p69 = por %p67, %p68
    %p70 = scmp.ne.s32.totalorder %s59, %s60
    %p71 = scmp.eq.s32.totalorder %s25, 0
    %p72 = por %p70, %p71
    %p73 = scmp.ne.s32.totalorder %s59, %s60
    %p74 = scmp.eq.s32.totalorder %s26, 1
    %p75 = por %p73, %p74
    %p77 = scmp.ne.s32.totalorder %s60, %s76
    %p78 = scmp.eq.s32.totalorder %s26, 0
    %p79 = por %p77, %p78
    %s81 = sadd.s32 %s80, 1
    %p84 = scmp.eq.s32.totalorder %s20, 1
    %p85 = scmp.ne.s32.totalorder %s80, %s82
    %p86 = scmp.eq.s32.totalorder %s20, 0
    %p87 = por %p85, %p86
    %p88 = scmp.ne.s32.totalorder %s80, %s82
    %p89 = scmp.eq.s32.totalorder %s25, 1
    %p90 = por %p88, %p89
    %p91 = scmp.ne.s32.totalorder %s82, %s83
    %p92 = scmp.eq.s32.totalorder %s25, 0
    %p93 = por %p91, %p92
    %p94 = scmp.ne.s32.totalorder %s82, %s83
    %p95 = scmp.eq.s32.totalorder %s26, 1
    %p96 = por %p94, %p95
    %p98 = scmp.ne.s32.totalorder %s83, %s97
    %p99 = scmp.eq.s32.totalorder %s26, 0
    %p100 = por %p98, %p99
    %s102 = sadd.s32 %s101, 1
    %p105 = scmp.eq.s32.totalorder %s20, 1
    %p106 = scmp.ne.s32.totalorder %s101, %s103
    %p107 = scmp.eq.s32.totalorder %s20, 0
    %p108 = por %p106, %p107
    %p109 = scmp.ne.s32.totalorder %s101, %s103
    %p110 = scmp.eq.s32.totalorder %s25, 1
    %p111 = por %p109, %p110
    %p112 = scmp.ne.s32.totalorder %s103, %s104
    %p113 = scmp.eq.s32.totalorder %s25, 0
    %p114 = por %p112, %p113
    %p115 = scmp.ne.s32.totalorder %s103, %s104
    %p116 = scmp.eq.s32.totalorder %s26, 1
    %p117 = por %p115, %p116
    %p119 = scmp.ne.s32.totalorder %s104, %s118
    %p120 = scmp.eq.s32.totalorder %s26, 0
    %p121 = por %p119, %p120
    %s123 = sadd.s32 %s122, 1
    %p126 = scmp.eq.s32.totalorder %s20, 1
    %p127 = scmp.ne.s32.totalorder %s122, %s124
    %p128 = scmp.eq.s32.totalorder %s20, 0
    %p129 = por %p127, %p128
    %p130 = scmp.ne.s32.totalorder %s122, %s124
    %p131 = scmp.eq.s32.totalorder %s25, 1
    %p132 = por %p130, %p131
    %p133 = scmp.ne.s32.totalorder %s124, %s125
    %p134 = scmp.eq.s32.totalorder %s25, 0
    %p135 = por %p133, %p134
    %p136 = scmp.ne.s32.totalorder %s124, %s125
    %p137 = scmp.eq.s32.totalorder %s26, 1
    %p138 = por %p136, %p137
    %p140 = scmp.ne.s32.totalorder %s125, %s139
    %p141 = scmp.eq.s32.totalorder %s26, 0
    %p142 = por %p140, %p141
    %s144 = sadd.s32 %s143, 1
    %p147 = scmp.eq.s32.totalorder %s20, 1
    %p148 = scmp.ne.s32.totalorder %s143, %s145
    %p149 = scmp.eq.s32.totalorder %s20, 0
    %p150 = por %p148, %p149
    %p151 = scmp.ne.s32.totalorder %s143, %s145
    %p152 = scmp.eq.s32.totalorder %s25, 1
    %p153 = por %p151, %p152
    %p154 = scmp.ne.s32.totalorder %s145, %s146
    %p155 = scmp.eq.s32.totalorder %s25, 0
    %p156 = por %p154, %p155
    %p157 = scmp.ne.s32.totalorder %s145, %s146
    %p158 = scmp.eq.s32.totalorder %s26, 1
    %p159 = por %p157, %p158
    %p161 = scmp.ne.s32.totalorder %s146, %s160
    %p162 = scmp.eq.s32.totalorder %s26, 0
    %p163 = por %p161, %p162
    %s165 = sadd.s32 %s164, 1
    %p168 = scmp.eq.s32.totalorder %s20, 1
    %p169 = scmp.ne.s32.totalorder %s164, %s166
    %p170 = scmp.eq.s32.totalorder %s20, 0
    %p171 = por %p169, %p170
    %p172 = scmp.ne.s32.totalorder %s164, %s166
    %p173 = scmp.eq.s32.totalorder %s25, 1
    %p174 = por %p172, %p173
    %p175 = scmp.ne.s32.totalorder %s166, %s167
    %p176 = scmp.eq.s32.totalorder %s25, 0
    %p177 = por %p175, %p176
    %p178 = scmp.ne.s32.totalorder %s166, %s167
    %p179 = scmp.eq.s32.totalorder %s26, 1
    %p180 = por %p178, %p179
    %p182 = scmp.ne.s32.totalorder %s167, %s181
    %p183 = scmp.eq.s32.totalorder %s26, 0
    %p184 = por %p182, %p183
    %s186 = sadd.s32 %s185, 1
    %p189 = scmp.eq.s32.totalorder %s20, 1
    %p190 = scmp.ne.s32.totalorder %s185, %s187
    %p191 = scmp.eq.s32.totalorder %s20, 0
    %p192 = por %p190, %p191
    %p193 = scmp.ne.s32.totalorder %s185, %s187
    %p194 = scmp.eq.s32.totalorder %s25, 1
    %p195 = por %p193, %p194
    %p196 = scmp.ne.s32.totalorder %s187, %s188
    %p197 = scmp.eq.s32.totalorder %s25, 0
    %p198 = por %p196, %p197
    %p199 = scmp.ne.s32.totalorder %s187, %s188
    %p200 = scmp.eq.s32.totalorder %s26, 1
    %p201 = por %p199, %p200
    %p203 = scmp.ne.s32.totalorder %s188, %s202
    %p204 = scmp.eq.s32.totalorder %s26, 0
    %p205 = por %p203, %p204
    %s207 = sadd.s32 %s206, 1
    %p210 = scmp.eq.s32.totalorder %s20, 1
    %p211 = scmp.ne.s32.totalorder %s206, %s208
    %p212 = scmp.eq.s32.totalorder %s20, 0
    %p213 = por %p211, %p212
    %p214 = scmp.ne.s32.totalorder %s206, %s208
    %p215 = scmp.eq.s32.totalorder %s25, 1
    %p216 = por %p214, %p215
    %p217 = scmp.ne.s32.totalorder %s208, %s209
    %p218 = scmp.eq.s32.totalorder %s25, 0
    %p219 = por %p217, %p218
    %p220 = scmp.ne.s32.totalorder %s208, %s209
    %p221 = scmp.eq.s32.totalorder %s26, 1
    %p222 = por %p220, %p221
    %p224 = scmp.ne.s32.totalorder %s209, %s223
    %p225 = scmp.eq.s32.totalorder %s26, 0
    %p226 = por %p224, %p225
    %s228 = sadd.s32 %s227, 1
    %p231 = scmp.eq.s32.totalorder %s20, 1
    %p232 = scmp.ne.s32.totalorder %s227, %s229
    %p233 = scmp.eq.s32.totalorder %s20, 0
    %p234 = por %p232, %p233
    %p235 = scmp.ne.s32.totalorder %s227, %s229
    %p236 = scmp.eq.s32.totalorder %s25, 1
    %p237 = por %p235, %p236
    %p238 = scmp.ne.s32.totalorder %s229, %s230
    %p239 = scmp.eq.s32.totalorder %s25, 0
    %p240 = por %p238, %p239
    %p241 = scmp.ne.s32.totalorder %s229, %s230
    %p242 = scmp.eq.s32.totalorder %s26, 1
    %p243 = por %p241, %p242
    %p245 = scmp.ne.s32.totalorder %s230, %s244
    %p246 = scmp.eq.s32.totalorder %s26, 0
    %p247 = por %p245, %p246
    %s249 = sadd.s32 %s248, 1
    %p252 = scmp.eq.s32.totalorder %s20, 1
    %p253 = scmp.ne.s32.totalorder %s248, %s250
    %p254 = scmp.eq.s32.totalorder %s20, 0
    %p255 = por %p253, %p254
    %p256 = scmp.ne.s32.totalorder %s248, %s250
    %p257 = scmp.eq.s32.totalorder %s25, 1
    %p258 = por %p256, %p257
    %p259 = scmp.ne.s32.totalorder %s250, %s251
    %p260 = scmp.eq.s32.totalorder %s25, 0
    %p261 = por %p259, %p260
    %p262 = scmp.ne.s32.totalorder %s250, %s251
    %p263 = scmp.eq.s32.totalorder %s26, 1
    %p264 = por %p262, %p263
    %p266 = scmp.ne.s32.totalorder %s251, %s265
    %p267 = scmp.eq.s32.totalorder %s26, 0
    %p268 = por %p266, %p267
    %s270 = sadd.s32 %s269, 1
    %p273 = scmp.eq.s32.totalorder %s20, 1
    %p274 = scmp.ne.s32.totalorder %s269, %s271
    %p275 = scmp.eq.s32.totalorder %s20, 0
    %p276 = por %p274, %p275
    %p277 = scmp.ne.s32.totalorder %s269, %s271
    %p278 = scmp.eq.s32.totalorder %s25, 1
    %p279 = por %p277, %p278
    %p280 = scmp.ne.s32.totalorder %s271, %s272
    %p281 = scmp.eq.s32.totalorder %s25, 0
    %p282 = por %p280, %p281
    %p283 = scmp.ne.s32.totalorder %s271, %s272
    %p284 = scmp.eq.s32.totalorder %s26, 1
    %p285 = por %p283, %p284
    %p287 = scmp.ne.s32.totalorder %s272, %s286
    %p288 = scmp.eq.s32.totalorder %s26, 0
    %p289 = por %p287, %p288
    %s291 = sadd.s32 %s290, 1
    %p294 = scmp.eq.s32.totalorder %s20, 1
    %p295 = scmp.ne.s32.totalorder %s290, %s292
    %p296 = scmp.eq.s32.totalorder %s20, 0
    %p297 = por %p295, %p296
    %p298 = scmp.ne.s32.totalorder %s290, %s292
    %p299 = scmp.eq.s32.totalorder %s25, 1
    %p300 = por %p298, %p299
    %p301 = scmp.ne.s32.totalorder %s292, %s293
    %p302 = scmp.eq.s32.totalorder %s25, 0
    %p303 = por %p301, %p302
    %p304 = scmp.ne.s32.totalorder %s292, %s293
    %p305 = scmp.eq.s32.totalorder %s26, 1
    %p306 = por %p304, %p305
    %p308 = scmp.ne.s32.totalorder %s293, %s307
    %p309 = scmp.eq.s32.totalorder %s26, 0
    %p310 = por %p308, %p309
    %s312 = sadd.s32 %s311, 1
    %p315 = scmp.eq.s32.totalorder %s20, 1
    %p316 = scmp.ne.s32.totalorder %s311, %s313
    %p317 = scmp.eq.s32.totalorder %s20, 0
    %p318 = por %p316, %p317
    %p319 = scmp.ne.s32.totalorder %s311, %s313
    %p320 = scmp.eq.s32.totalorder %s25, 1
    %p321 = por %p319, %p320
    %p322 = scmp.ne.s32.totalorder %s313, %s314
    %p323 = scmp.eq.s32.totalorder %s25, 0
    %p324 = por %p322, %p323
    %p325 = scmp.ne.s32.totalorder %s313, %s314
    %p326 = scmp.eq.s32.totalorder %s26, 1
    %p327 = por %p325, %p326
    %p329 = scmp.ne.s32.totalorder %s314, %s328
    %p330 = scmp.eq.s32.totalorder %s26, 0
    %p331 = por %p329, %p330
    %s332 = ssub.s32 %s20, %s27
    %p333 = scmp.eq.s32.totalorder %s332, 0
    %s335 = sadd.s32 %s334, 1
    %s336 = scalar_select %p333, %s334, %s335
    %p339 = pneg %p333
    %p340 = scmp.eq.s32.totalorder %s20, 1
    %p341 = por %p339, %p340
    %p342 = scmp.ne.s32.totalorder %s334, %s337
    %p343 = scmp.eq.s32.totalorder %s20, 0
    %p344 = por %p342, %p343
    %p345 = scmp.ne.s32.totalorder %s334, %s337
    %p346 = scmp.eq.s32.totalorder %s25, 1
    %p347 = por %p345, %p346
    %p348 = scmp.ne.s32.totalorder %s337, %s338
    %p349 = scmp.eq.s32.totalorder %s25, 0
    %p350 = por %p348, %p349
    %p351 = scmp.ne.s32.totalorder %s337, %s338
    %p352 = scmp.eq.s32.totalorder %s26, 1
    %p353 = por %p351, %p352
    %p355 = scmp.ne.s32.totalorder %s338, %s354
    %p356 = scmp.eq.s32.totalorder %s26, 0
    %p357 = por %p355, %p356
    %p358 = scmp.le.s32.totalorder 1, %s20
    %p359 = scmp.lt.s32.totalorder %s20, 3
    %p360 = pnand %p358, %p359
    %p361 = pneg %p360
    // Predicated region
    $region9: #{encoder_transformer_forward.1} parent=5 // pred_check
      _
    $region10: #{encoder_transformer_forward.1} parent=5 // pred_check_branch
      %363 = sbr.rel (%p360) target = $region12
    $region11: #{encoder_transformer_forward.1} parent=5 // pred_region
      %s364 = ssub.s32 %s20, 1
      // Predicated region
      $region13: #{encoder_transformer_forward.1} parent=11 // pred_check
        %p365 = pneg %p93
      $region14: #{encoder_transformer_forward.1} parent=11 // pred_check_branch
        %367 = sbr.rel (%p365) target = $region16
      $region15: #{encoder_transformer_forward.1} parent=11 // pred_region
        _
      $region16: #{encoder_transformer_forward.1} parent=11 // pred_fallthru
        _
      // Predicated region
      $region17: #{encoder_transformer_forward.1} parent=11 // pred_check
        %p368 = pneg %p114
      $region18: #{encoder_transformer_forward.1} parent=11 // pred_check_branch
        %370 = sbr.rel (%p368) target = $region20
      $region19: #{encoder_transformer_forward.1} parent=11 // pred_region
        _
      $region20: #{encoder_transformer_forward.1} parent=11 // pred_fallthru
        _
      // Predicated region
      $region21: #{encoder_transformer_forward.1} parent=11 // pred_check
        %p371 = pneg %p135
      $region22: #{encoder_transformer_forward.1} parent=11 // pred_check_branch
        %373 = sbr.rel (%p371) target = $region24
      $region23: #{encoder_transformer_forward.1} parent=11 // pred_region
        _
      $region24: #{encoder_transformer_forward.1} parent=11 // pred_fallthru
        _
      // Predicated region
      $region25: #{encoder_transformer_forward.1} parent=11 // pred_check
        %p374 = pneg %p156
      $region26: #{encoder_transformer_forward.1} parent=11 // pred_check_branch
        %376 = sbr.rel (%p374) target = $region28
      $region27: #{encoder_transformer_forward.1} parent=11 // pred_region
        _
      $region28: #{encoder_transformer_forward.1} parent=11 // pred_fallthru
        _
      // Predicated region
      $region29: #{encoder_transformer_forward.1} parent=11 // pred_check
        %p377 = pneg %p177
      $region30: #{encoder_transformer_forward.1} parent=11 // pred_check_branch
        %379 = sbr.rel (%p377) target = $region32
      $region31: #{encoder_transformer_forward.1} parent=11 // pred_region
        _
      $region32: #{encoder_transformer_forward.1} parent=11 // pred_fallthru
        _
      // Predicated region
      $region33: #{encoder_transformer_forward.1} parent=11 // pred_check
        %p380 = pneg %p198
      $region34: #{encoder_transformer_forward.1} parent=11 // pred_check_branch
        %382 = sbr.rel (%p380) target = $region36
      $region35: #{encoder_transformer_forward.1} parent=11 // pred_region
        _
      $region36: #{encoder_transformer_forward.1} parent=11 // pred_fallthru
        _
      // Predicated region
      $region37: #{encoder_transformer_forward.1} parent=11 // pred_check
        %p383 = pneg %p219
      $region38: #{encoder_transformer_forward.1} parent=11 // pred_check_branch
        %385 = sbr.rel (%p383) target = $region40
      $region39: #{encoder_transformer_forward.1} parent=11 // pred_region
        _
      $region40: #{encoder_transformer_forward.1} parent=11 // pred_fallthru
        _
      // Predicated region
      $region41: #{encoder_transformer_forward.1} parent=11 // pred_check
        %p386 = pneg %p240
      $region42: #{encoder_transformer_forward.1} parent=11 // pred_check_branch
        %388 = sbr.rel (%p386) target = $region44
      $region43: #{encoder_transformer_forward.1} parent=11 // pred_region
        _
      $region44: #{encoder_transformer_forward.1} parent=11 // pred_fallthru
        _
      // Predicated region
      $region45: #{encoder_transformer_forward.1} parent=11 // pred_check
        %p389 = pneg %p261
      $region46: #{encoder_transformer_forward.1} parent=11 // pred_check_branch
        %391 = sbr.rel (%p389) target = $region48
      $region47: #{encoder_transformer_forward.1} parent=11 // pred_region
        _
      $region48: #{encoder_transformer_forward.1} parent=11 // pred_fallthru
        _
      // Predicated region
      $region49: #{encoder_transformer_forward.1} parent=11 // pred_check
        %p392 = pneg %p282
      $region50: #{encoder_transformer_forward.1} parent=11 // pred_check_branch
        %394 = sbr.rel (%p392) target = $region52
      $region51: #{encoder_transformer_forward.1} parent=11 // pred_region
        _
      $region52: #{encoder_transformer_forward.1} parent=11 // pred_fallthru
        _
      // Predicated region
      $region53: #{encoder_transformer_forward.1} parent=11 // pred_check
        %p395 = pneg %p303
      $region54: #{encoder_transformer_forward.1} parent=11 // pred_check_branch
        %397 = sbr.rel (%p395) target = $region56
      $region55: #{encoder_transformer_forward.1} parent=11 // pred_region
        _
      $region56: #{encoder_transformer_forward.1} parent=11 // pred_fallthru
        _
      // Predicated region
      $region57: #{encoder_transformer_forward.1} parent=11 // pred_check
        %p398 = pneg %p324
      $region58: #{encoder_transformer_forward.1} parent=11 // pred_check_branch
        %400 = sbr.rel (%p398) target = $region60
      $region59: #{encoder_transformer_forward.1} parent=11 // pred_region
        _
      $region60: #{encoder_transformer_forward.1} parent=11 // pred_fallthru
        _
    $region12: #{encoder_transformer_forward.1} parent=5 // pred_fallthru
      _
    %p401 = scmp.lt.s32.totalorder %s20, 2
    // Predicated region
    $region61: #{encoder_transformer_forward.1} parent=5 // pred_check
      %p402 = pneg %p401
    $region62: #{encoder_transformer_forward.1} parent=5 // pred_check_branch
      %404 = sbr.rel (%p402) target = $region64
    $region63: #{encoder_transformer_forward.1} parent=5 // pred_region
      // Predicated region
      $region65: #{encoder_transformer_forward.1} parent=63 // pred_check
        %p405 = pneg %p40
      $region66: #{encoder_transformer_forward.1} parent=63 // pred_check_branch
        %407 = sbr.rel (%p405) target = $region68
      $region67: #{encoder_transformer_forward.1} parent=63 // pred_region
        %p408 = scmp.lt.s32.totalorder %s20, 1
        %s409 = scalar_select %p408, %s20, 1
        %s410 = smul.addr %s409, 8
        %s411 = scalar_lea.vmem %s0, %s410
      $region68: #{encoder_transformer_forward.1} parent=63 // pred_fallthru
        _
      // Predicated region
      $region69: #{encoder_transformer_forward.1} parent=63 // pred_check
        %p412 = pneg %p66
      $region70: #{encoder_transformer_forward.1} parent=63 // pred_check_branch
        %414 = sbr.rel (%p412) target = $region72
      $region71: #{encoder_transformer_forward.1} parent=63 // pred_region
        %p415 = scmp.lt.s32.totalorder %s20, 1
        %s416 = scalar_select %p415, %s20, 1
        %s417 = scalar_lea.vmem %s1, %s416
      $region72: #{encoder_transformer_forward.1} parent=63 // pred_fallthru
        _
    $region64: #{encoder_transformer_forward.1} parent=5 // pred_fallthru
      _
    %p418 = scmp.le.s32.totalorder 1, %s20
    %p419 = scmp.lt.s32.totalorder %s20, 3
    %p420 = pnand %p418, %p419
    %p421 = pneg %p420
    // Predicated region
    $region73: #{encoder_transformer_forward.1} parent=5 // pred_check
      _
    $region74: #{encoder_transformer_forward.1} parent=5 // pred_check_branch
      %423 = sbr.rel (%p420) target = $region76
    $region75: #{encoder_transformer_forward.1} parent=5 // pred_region
      %s424 = ssub.s32 %s20, 1
      %p425 = scmp.lt.s32.totalorder %s25, 1
      %s426 = scalar_select %p425, %s25, 1
      %s427 = smul.addr %s426, 8
      %s428 = scalar_lea.vmem %s0, %s427
      %p429 = pneg %p46
      %p430 = pneg %p43
      %p431 = scmp.lt.s32.totalorder %s25, 1
      %s432 = scalar_select %p431, %s25, 1
      %s433 = scalar_lea.vmem %s1, %s432
      %p434 = pneg %p72
      %p435 = pneg %p69
      %p436 = pneg %p93
      %p437 = pneg %p90
      %p438 = pneg %p114
      %p439 = pneg %p111
      %p440 = pneg %p135
      %p441 = pneg %p132
      %p442 = pneg %p156
      %p443 = pneg %p153
      %p444 = pneg %p177
      %p445 = pneg %p174
      %p446 = pneg %p198
      %p447 = pneg %p195
      %p448 = pneg %p219
      %p449 = pneg %p216
      %p450 = pneg %p240
      %p451 = pneg %p237
      %p452 = pneg %p261
      %p453 = pneg %p258
      %p454 = pneg %p282
      %p455 = pneg %p279
      %p456 = pneg %p303
      %p457 = pneg %p300
      %p458 = pneg %p324
      %p459 = pneg %p321
      %p460 = pneg %p350
      %p461 = pneg %p347
      %p462 = scmp.lt.s32.totalorder %s25, 1
      %s463 = scalar_select %p462, %s25, 1
      %s464 = smul.addr %s463, 8
      %s465 = scalar_lea.vmem %s14, %s464
      %p466 = scmp.lt.s32.totalorder %s25, 1
      %s467 = scalar_select %p466, %s25, 1
      %s468 = smul.addr %s467, 8
      %s469 = scalar_lea.vmem %s0, %s468
      %p470 = scmp.lt.s32.totalorder %s25, 1
      %s471 = scalar_select %p470, %s25, 1
      %s472 = scalar_lea.vmem %s1, %s471
      %p473 = scmp.lt.s32.totalorder %s25, 1
      %s474 = scalar_select %p473, %s25, 1
      %s475 = smul.addr %s474, 8
      %s476 = scalar_lea.vmem %s14, %s475
      %v478 = vld [vmem:[%s469] sm:$0xff]
      %v479 = vld [vmem:[%s472] sm:$0x1]
      %v480 = vpack.c.bf16 %v478, %v478
      %v481 = vld [vmem:[%s2] sm:$0xf]
      %v482 = vld [vmem:[%s2 + $0x4] sm:$0xf]
      %v483 = vld [vmem:[%s2 + $0x8] sm:$0xf]
      %v484 = vld [vmem:[%s2 + $0xc] sm:$0xf]
      %v485 = vld [vmem:[%s3] sm:$0x1]
      %v487 = vlaneseq
      %v488 = vshrl.u32 %v487, 7
      %v489 = vsub.s32 0, %v488
      %v490 = vrot.slane %v485, %v489
      %v496 = vunpack.c.l.b16 %v481
      %v497 = vunpack.c.l.b16 %v482
      %v498 = vunpack.c.l.b16 %v483
      %v499 = vunpack.c.l.b16 %v484
      %v500 = vpack.c.b16 %v497, %v496
      %v501 = vpack.c.b16 %v499, %v498
      %vm504 = vcmask 261120
      %v506 = vsel %vm504, %v480, 0
      %508 = vmatprep.subr.bf16.mxu0 0
      %509 = vmatpush1.bf16.msra.mxu0 %v500
      %510 = vmatprep.subr.bf16.mxu0 0
      %511 = vmatpush1.bf16.msra.mxu0 %v501
      %512 = vmatprep.subr.bf16.mxu0 0
      %513 = vmatpush1.bf16.msra.mxu0 0
      %514 = vmatprep.subr.bf16.mxu0 0
      %515 = vmatpush1.bf16.msra.mxu0 0
      %516 = vmatprep.subr.bf16.mxu0 0
      %517 = vmatpush1.bf16.msra.mxu0 0
      %518 = vmatprep.subr.bf16.mxu0 0
      %519 = vmatpush1.bf16.msra.mxu0 0
      %520 = vmatprep.subr.bf16.mxu0 0
      %521 = vmatpush1.bf16.msra.mxu0 0
      %522 = vmatprep.subr.bf16.mxu0 0
      %523 = vmatpush1.bf16.msra.mxu0 0
      %524 = vmatprep.subr.bf16.mxu0 0
      %525 = vmatpush1.bf16.msra.mxu0 0
      %526 = vmatprep.subr.bf16.mxu0 0
      %527 = vmatpush1.bf16.msra.mxu0 0
      %528 = vmatprep.subr.bf16.mxu0 0
      %529 = vmatpush1.bf16.msra.mxu0 0
      %530 = vmatprep.subr.bf16.mxu0 0
      %531 = vmatpush1.bf16.msra.mxu0 0
      %532 = vmatprep.subr.bf16.mxu0 0
      %533 = vmatpush1.bf16.msra.mxu0 0
      %534 = vmatprep.subr.bf16.mxu0 0
      %535 = vmatpush1.bf16.msra.mxu0 0
      %536 = vmatprep.subr.bf16.mxu0 0
      %537 = vmatpush1.bf16.msra.mxu0 0
      %538 = vmatprep.subr.bf16.mxu0 0
      %539 = vmatpush1.bf16.msra.mxu0 0
      %540 = vmatprep.mubr.bf16.mxu0 0
      %541 = vmatmul.mubr.bf16.gmra.mrb[0].mxu0 %v506
      %v542 = vpop.f32.mrb[0].mxu0
      %v543 = vadd.f32 %v490, %v542
      %v544 = vpop.f32.mrb[0].mxu0
      %v545 = vpop.f32.mrb[0].mxu0
      %v546 = vpop.f32.mrb[0].mxu0
      %547 = vdwg.mxu0
      %v548 = vpack.c.bf16 %v543, %v543
      %550 = vrot.lane.b32.xlu0 %v548, 120
      %v551 = vpop.permute.xlu0 %550
      %552 = vrot.lane.b32.xlu0 %v548, 112
      %v553 = vpop.permute.xlu0 %552
      %554 = vrot.lane.b32.xlu0 %v548, 104
      %v555 = vpop.permute.xlu0 %554
      %v557 = vlaneseq
      %v558 = vshrl.u32 %v557, 7
      %v559 = vsub.s32 0, %v558
      %v560 = vrot.slane %v479, %v559
      %562 = vrot.lane.b32.xlu0 %v548, 96
      %v563 = vpop.permute.xlu0 %562
      %vm564 = vcmask 64512
      %v566 = vsel %vm564, %v548, 0
      %v569 = vsel %vm564, %v563, 0
      %571 = vmatprep.subr.bf16.mxu0 0
      %572 = vmatpush1.bf16.xpose.msra.mxu0 %v569
      %573 = vmatprep.subr.bf16.mxu0 0
      %574 = vmatpush1.bf16.xpose.msra.mxu0 0
      %575 = vmatprep.subr.bf16.mxu0 0
      %576 = vmatpush1.bf16.xpose.msra.mxu0 0
      %577 = vmatprep.subr.bf16.mxu0 0
      %578 = vmatpush1.bf16.xpose.msra.mxu0 0
      %579 = vmatprep.subr.bf16.mxu0 0
      %580 = vmatpush1.bf16.xpose.msra.mxu0 0
      %581 = vmatprep.subr.bf16.mxu0 0
      %582 = vmatpush1.bf16.xpose.msra.mxu0 0
      %583 = vmatprep.subr.bf16.mxu0 0
      %584 = vmatpush1.bf16.xpose.msra.mxu0 0
      %585 = vmatprep.subr.bf16.mxu0 0
      %586 = vmatpush1.bf16.xpose.msra.mxu0 0
      %587 = vmatprep.subr.bf16.mxu0 0
      %588 = vmatpush1.bf16.xpose.msra.mxu0 0
      %589 = vmatprep.subr.bf16.mxu0 0
      %590 = vmatpush1.bf16.xpose.msra.mxu0 0
      %591 = vmatprep.subr.bf16.mxu0 0
      %592 = vmatpush1.bf16.xpose.msra.mxu0 0
      %593 = vmatprep.subr.bf16.mxu0 0
      %594 = vmatpush1.bf16.xpose.msra.mxu0 0
      %595 = vmatprep.subr.bf16.mxu0 0
      %596 = vmatpush1.bf16.xpose.msra.mxu0 0
      %597 = vmatprep.subr.bf16.mxu0 0
      %598 = vmatpush1.bf16.xpose.msra.mxu0 0
      %599 = vmatprep.subr.bf16.mxu0 0
      %600 = vmatpush1.bf16.xpose.msra.mxu0 0
      %601 = vmatprep.subr.bf16.mxu0 0
      %602 = vmatpush1.bf16.xpose.msra.mxu0 0
      %603 = vmatprep.mubr.bf16.mxu0 0
      %604 = vmatmul.mubr.bf16.gmra.mrb[0].mxu0 %v566
      %v605 = vpop.f32.mrb[0].mxu0
      %v606 = vadd.f32 %v560, %v605
      %v607 = vpop.f32.mrb[0].mxu0
      %v608 = vpop.f32.mrb[0].mxu0
      %v609 = vpop.f32.mrb[0].mxu0
      %610 = vdwg.mxu0
      %611 = vrot.lane.b32.xlu0 %v551, 96
      %v612 = vpop.permute.xlu0 %611
      %v614 = vsel %vm564, %v551, 0
      %v617 = vsel %vm564, %v612, 0
      %619 = vmatprep.subr.bf16.mxu0 0
      %620 = vmatpush1.bf16.xpose.msra.mxu0 %v617
      %621 = vmatprep.subr.bf16.mxu0 0
      %622 = vmatpush1.bf16.xpose.msra.mxu0 0
      %623 = vmatprep.subr.bf16.mxu0 0
      %624 = vmatpush1.bf16.xpose.msra.mxu0 0
      %625 = vmatprep.subr.bf16.mxu0 0
      %626 = vmatpush1.bf16.xpose.msra.mxu0 0
      %627 = vmatprep.subr.bf16.mxu0 0
      %628 = vmatpush1.bf16.xpose.msra.mxu0 0
      %629 = vmatprep.subr.bf16.mxu0 0
      %630 = vmatpush1.bf16.xpose.msra.mxu0 0
      %631 = vmatprep.subr.bf16.mxu0 0
      %632 = vmatpush1.bf16.xpose.msra.mxu0 0
      %633 = vmatprep.subr.bf16.mxu0 0
      %634 = vmatpush1.bf16.xpose.msra.mxu0 0
      %635 = vmatprep.subr.bf16.mxu0 0
      %636 = vmatpush1.bf16.xpose.msra.mxu0 0
      %637 = vmatprep.subr.bf16.mxu0 0
      %638 = vmatpush1.bf16.xpose.msra.mxu0 0
      %639 = vmatprep.subr.bf16.mxu0 0
      %640 = vmatpush1.bf16.xpose.msra.mxu0 0
      %641 = vmatprep.subr.bf16.mxu0 0
      %642 = vmatpush1.bf16.xpose.msra.mxu0 0
      %643 = vmatprep.subr.bf16.mxu0 0
      %644 = vmatpush1.bf16.xpose.msra.mxu0 0
      %645 = vmatprep.subr.bf16.mxu0 0
      %646 = vmatpush1.bf16.xpose.msra.mxu0 0
      %647 = vmatprep.subr.bf16.mxu0 0
      %648 = vmatpush1.bf16.xpose.msra.mxu0 0
      %649 = vmatprep.subr.bf16.mxu0 0
      %650 = vmatpush1.bf16.xpose.msra.mxu0 0
      %651 = vmatprep.mubr.bf16.mxu0 0
      %652 = vmatmul.mubr.bf16.gmra.mrb[0].mxu0 %v614
      %v653 = vpop.f32.mrb[0].mxu0
      %v654 = vadd.f32 %v560, %v653
      %v655 = vpop.f32.mrb[0].mxu0
      %v656 = vpop.f32.mrb[0].mxu0
      %v657 = vpop.f32.mrb[0].mxu0
      %658 = vdwg.mxu0
      %659 = vrot.lane.b32.xlu0 %v553, 96
      %v660 = vpop.permute.xlu0 %659
      %v662 = vsel %vm564, %v553, 0
      %v665 = vsel %vm564, %v660, 0
      %667 = vmatprep.subr.bf16.mxu0 0
      %668 = vmatpush1.bf16.xpose.msra.mxu0 %v665
      %669 = vmatprep.subr.bf16.mxu0 0
      %670 = vmatpush1.bf16.xpose.msra.mxu0 0
      %671 = vmatprep.subr.bf16.mxu0 0
      %672 = vmatpush1.bf16.xpose.msra.mxu0 0
      %673 = vmatprep.subr.bf16.mxu0 0
      %674 = vmatpush1.bf16.xpose.msra.mxu0 0
      %675 = vmatprep.subr.bf16.mxu0 0
      %676 = vmatpush1.bf16.xpose.msra.mxu0 0
      %677 = vmatprep.subr.bf16.mxu0 0
      %678 = vmatpush1.bf16.xpose.msra.mxu0 0
      %679 = vmatprep.subr.bf16.mxu0 0
      %680 = vmatpush1.bf16.xpose.msra.mxu0 0
      %681 = vmatprep.subr.bf16.mxu0 0
      %682 = vmatpush1.bf16.xpose.msra.mxu0 0
      %683 = vmatprep.subr.bf16.mxu0 0
      %684 = vmatpush1.bf16.xpose.msra.mxu0 0
      %685 = vmatprep.subr.bf16.mxu0 0
      %686 = vmatpush1.bf16.xpose.msra.mxu0 0
      %687 = vmatprep.subr.bf16.mxu0 0
      %688 = vmatpush1.bf16.xpose.msra.mxu0 0
      %689 = vmatprep.subr.bf16.mxu0 0
      %690 = vmatpush1.bf16.xpose.msra.mxu0 0
      %691 = vmatprep.subr.bf16.mxu0 0
      %692 = vmatpush1.bf16.xpose.msra.mxu0 0
      %693 = vmatprep.subr.bf16.mxu0 0
      %694 = vmatpush1.bf16.xpose.msra.mxu0 0
      %695 = vmatprep.subr.bf16.mxu0 0
      %696 = vmatpush1.bf16.xpose.msra.mxu0 0
      %697 = vmatprep.subr.bf16.mxu0 0
      %698 = vmatpush1.bf16.xpose.msra.mxu0 0
      %699 = vmatprep.mubr.bf16.mxu0 0
      %700 = vmatmul.mubr.bf16.gmra.mrb[0].mxu0 %v662
      %v701 = vpop.f32.mrb[0].mxu0
      %v702 = vadd.f32 %v560, %v701
      %v703 = vpop.f32.mrb[0].mxu0
      %v704 = vpop.f32.mrb[0].mxu0
      %v705 = vpop.f32.mrb[0].mxu0
      %706 = vdwg.mxu0
      %707 = vrot.lane.b32.xlu0 %v555, 96
      %v708 = vpop.permute.xlu0 %707
      %v710 = vsel %vm564, %v555, 0
      %v713 = vsel %vm564, %v708, 0
      %715 = vmatprep.subr.bf16.mxu0 0
      %716 = vmatpush1.bf16.xpose.msra.mxu0 %v713
      %717 = vmatprep.subr.bf16.mxu0 0
      %718 = vmatpush1.bf16.xpose.msra.mxu0 0
      %719 = vmatprep.subr.bf16.mxu0 0
      %720 = vmatpush1.bf16.xpose.msra.mxu0 0
      %721 = vmatprep.subr.bf16.mxu0 0
      %722 = vmatpush1.bf16.xpose.msra.mxu0 0
      %723 = vmatprep.subr.bf16.mxu0 0
      %724 = vmatpush1.bf16.xpose.msra.mxu0 0
      %725 = vmatprep.subr.bf16.mxu0 0
      %726 = vmatpush1.bf16.xpose.msra.mxu0 0
      %727 = vmatprep.subr.bf16.mxu0 0
      %728 = vmatpush1.bf16.xpose.msra.mxu0 0
      %729 = vmatprep.subr.bf16.mxu0 0
      %730 = vmatpush1.bf16.xpose.msra.mxu0 0
      %731 = vmatprep.subr.bf16.mxu0 0
      %732 = vmatpush1.bf16.xpose.msra.mxu0 0
      %733 = vmatprep.subr.bf16.mxu0 0
      %734 = vmatpush1.bf16.xpose.msra.mxu0 0
      %735 = vmatprep.subr.bf16.mxu0 0
      %736 = vmatpush1.bf16.xpose.msra.mxu0 0
      %737 = vmatprep.subr.bf16.mxu0 0
      %738 = vmatpush1.bf16.xpose.msra.mxu0 0
      %739 = vmatprep.subr.bf16.mxu0 0
      %740 = vmatpush1.bf16.xpose.msra.mxu0 0
      %741 = vmatprep.subr.bf16.mxu0 0
      %742 = vmatpush1.bf16.xpose.msra.mxu0 0
      %743 = vmatprep.subr.bf16.mxu0 0
      %744 = vmatpush1.bf16.xpose.msra.mxu0 0
      %745 = vmatprep.subr.bf16.mxu0 0
      %746 = vmatpush1.bf16.xpose.msra.mxu0 0
      %747 = vmatprep.mubr.bf16.mxu0 0
      %748 = vmatmul.mubr.bf16.gmra.mrb[0].mxu0 %v710
      %v749 = vpop.f32.mrb[0].mxu0
      %v750 = vadd.f32 %v560, %v749
      %v751 = vpop.f32.mrb[0].mxu0
      %v752 = vpop.f32.mrb[0].mxu0
      %v753 = vpop.f32.mrb[0].mxu0
      %754 = vdwg.mxu0
      %v755 = vsel %vm564, %v606, -inf
      %756 = vmax.xlane.f32.xlu0 %v755
      %v757 = vpop.xlane.xlu0 %756
      %v758 = vsel %vm564, %v654, -inf
      %759 = vmax.xlane.f32.xlu0 %v758
      %v760 = vpop.xlane.xlu0 %759
      %v761 = vsel %vm564, %v702, -inf
      %762 = vmax.xlane.f32.xlu0 %v761
      %v763 = vpop.xlane.xlu0 %762
      %v764 = vsel %vm564, %v750, -inf
      %765 = vmax.xlane.f32.xlu0 %v764
      %v766 = vpop.xlane.xlu0 %765
      %v767 = vsub.f32 %v606, %v757
      %v768 = vsub.f32 %v654, %v760
      %v769 = vsub.f32 %v702, %v763
      %v770 = vsub.f32 %v750, %v766
      %v771 = vmul.f32 %v767, 1.442695
      %v772 = vpow.pop %v771
      %v773 = vmul.f32 %v768, 1.442695
      %v774 = vpow.pop %v773
      %v775 = vmul.f32 %v769, 1.442695
      %v776 = vpow.pop %v775
      %v777 = vmul.f32 %v770, 1.442695
      %v778 = vpow.pop %v777
      %v779 = vsel %vm564, %v772, 0.0
      %780 = vadd.xlane.f32.xlu0 %v779
      %v781 = vpop.xlane.xlu0 %780
      %v782 = vsel %vm564, %v774, 0.0
      %783 = vadd.xlane.f32.xlu0 %v782
      %v784 = vpop.xlane.xlu0 %783
      %v785 = vsel %vm564, %v776, 0.0
      %786 = vadd.xlane.f32.xlu0 %v785
      %v787 = vpop.xlane.xlu0 %786
      %v788 = vsel %vm564, %v778, 0.0
      %789 = vadd.xlane.f32.xlu0 %v788
      %v790 = vpop.xlane.xlu0 %789
      %v791 = vrcp.pop %v781
      %v792 = vrcp.pop %v784
      %v793 = vrcp.pop %v787
      %v794 = vrcp.pop %v790
      %v795 = vmul.f32 %v772, %v791
      %v796 = vmul.f32 %v774, %v792
      %v797 = vmul.f32 %v776, %v793
      %v798 = vmul.f32 %v778, %v794
      %v799 = vpack.c.bf16 %v795, %v795
      %v800 = vpack.c.bf16 %v796, %v796
      %v801 = vpack.c.bf16 %v797, %v797
      %v802 = vpack.c.bf16 %v798, %v798
      %803 = vrot.lane.b32.xlu0 %v548, 64
      %v804 = vpop.permute.xlu0 %803
      %v806 = vsel %vm564, %v799, 0
      %vm808 = vcmask 1043456
      %v810 = vsel %vm808, %v804, 0
      %812 = vmatprep.subr.bf16.mxu0 0
      %813 = vmatpush1.bf16.msra.mxu0 %v810
      %814 = vmatprep.subr.bf16.mxu0 0
      %815 = vmatpush1.bf16.msra.mxu0 0
      %816 = vmatprep.subr.bf16.mxu0 0
      %817 = vmatpush1.bf16.msra.mxu0 0
      %818 = vmatprep.subr.bf16.mxu0 0
      %819 = vmatpush1.bf16.msra.mxu0 0
      %820 = vmatprep.subr.bf16.mxu0 0
      %821 = vmatpush1.bf16.msra.mxu0 0
      %822 = vmatprep.subr.bf16.mxu0 0
      %823 = vmatpush1.bf16.msra.mxu0 0
      %824 = vmatprep.subr.bf16.mxu0 0
      %825 = vmatpush1.bf16.msra.mxu0 0
      %826 = vmatprep.subr.bf16.mxu0 0
      %827 = vmatpush1.bf16.msra.mxu0 0
      %828 = vmatprep.subr.bf16.mxu0 0
      %829 = vmatpush1.bf16.msra.mxu0 0
      %830 = vmatprep.subr.bf16.mxu0 0
      %831 = vmatpush1.bf16.msra.mxu0 0
      %832 = vmatprep.subr.bf16.mxu0 0
      %833 = vmatpush1.bf16.msra.mxu0 0
      %834 = vmatprep.subr.bf16.mxu0 0
      %835 = vmatpush1.bf16.msra.mxu0 0
      %836 = vmatprep.subr.bf16.mxu0 0
      %837 = vmatpush1.bf16.msra.mxu0 0
      %838 = vmatprep.subr.bf16.mxu0 0
      %839 = vmatpush1.bf16.msra.mxu0 0
      %840 = vmatprep.subr.bf16.mxu0 0
      %841 = vmatpush1.bf16.msra.mxu0 0
      %842 = vmatprep.subr.bf16.mxu0 0
      %843 = vmatpush1.bf16.msra.mxu0 0
      %844 = vmatprep.mubr.bf16.mxu0 0
      %845 = vmatmul.mubr.bf16.gmra.mrb[0].mxu0 %v806
      %v846 = vpop.f32.mrb[0].mxu0
      %v847 = vadd.f32 0.0, %v846
      %v848 = vpop.f32.mrb[0].mxu0
      %v849 = vpop.f32.mrb[0].mxu0
      %v850 = vpop.f32.mrb[0].mxu0
      %851 = vdwg.mxu0
      %852 = vrot.lane.b32.xlu0 %v551, 64
      %v853 = vpop.permute.xlu0 %852
      %v855 = vsel %vm564, %v800, 0
      %v858 = vsel %vm808, %v853, 0
      %860 = vmatprep.subr.bf16.mxu0 0
      %861 = vmatpush1.bf16.msra.mxu0 %v858
      %862 = vmatprep.subr.bf16.mxu0 0
      %863 = vmatpush1.bf16.msra.mxu0 0
      %864 = vmatprep.subr.bf16.mxu0 0
      %865 = vmatpush1.bf16.msra.mxu0 0
      %866 = vmatprep.subr.bf16.mxu0 0
      %867 = vmatpush1.bf16.msra.mxu0 0
      %868 = vmatprep.subr.bf16.mxu0 0
      %869 = vmatpush1.bf16.msra.mxu0 0
      %870 = vmatprep.subr.bf16.mxu0 0
      %871 = vmatpush1.bf16.msra.mxu0 0
      %872 = vmatprep.subr.bf16.mxu0 0
      %873 = vmatpush1.bf16.msra.mxu0 0
      %874 = vmatprep.subr.bf16.mxu0 0
      %875 = vmatpush1.bf16.msra.mxu0 0
      %876 = vmatprep.subr.bf16.mxu0 0
      %877 = vmatpush1.bf16.msra.mxu0 0
      %878 = vmatprep.subr.bf16.mxu0 0
      %879 = vmatpush1.bf16.msra.mxu0 0
      %880 = vmatprep.subr.bf16.mxu0 0
      %881 = vmatpush1.bf16.msra.mxu0 0
      %882 = vmatprep.subr.bf16.mxu0 0
      %883 = vmatpush1.bf16.msra.mxu0 0
      %884 = vmatprep.subr.bf16.mxu0 0
      %885 = vmatpush1.bf16.msra.mxu0 0
      %886 = vmatprep.subr.bf16.mxu0 0
      %887 = vmatpush1.bf16.msra.mxu0 0
      %888 = vmatprep.subr.bf16.mxu0 0
      %889 = vmatpush1.bf16.msra.mxu0 0
      %890 = vmatprep.subr.bf16.mxu0 0
      %891 = vmatpush1.bf16.msra.mxu0 0
      %892 = vmatprep.mubr.bf16.mxu0 0
      %893 = vmatmul.mubr.bf16.gmra.mrb[0].mxu0 %v855
      %v894 = vpop.f32.mrb[0].mxu0
      %v895 = vadd.f32 0.0, %v894
      %v896 = vpop.f32.mrb[0].mxu0
      %v897 = vpop.f32.mrb[0].mxu0
      %v898 = vpop.f32.mrb[0].mxu0
      %899 = vdwg.mxu0
      %900 = vrot.lane.b32.xlu0 %v553, 64
      %v901 = vpop.permute.xlu0 %900
      %v903 = vsel %vm564, %v801, 0
      %v906 = vsel %vm808, %v901, 0
      %908 = vmatprep.subr.bf16.mxu0 0
      %909 = vmatpush1.bf16.msra.mxu0 %v906
      %910 = vmatprep.subr.bf16.mxu0 0
      %911 = vmatpush1.bf16.msra.mxu0 0
      %912 = vmatprep.subr.bf16.mxu0 0
      %913 = vmatpush1.bf16.msra.mxu0 0
      %914 = vmatprep.subr.bf16.mxu0 0
      %915 = vmatpush1.bf16.msra.mxu0 0
      %916 = vmatprep.subr.bf16.mxu0 0
      %917 = vmatpush1.bf16.msra.mxu0 0
      %918 = vmatprep.subr.bf16.mxu0 0
      %919 = vmatpush1.bf16.msra.mxu0 0
      %920 = vmatprep.subr.bf16.mxu0 0
      %921 = vmatpush1.bf16.msra.mxu0 0
      %922 = vmatprep.subr.bf16.mxu0 0
      %923 = vmatpush1.bf16.msra.mxu0 0
      %924 = vmatprep.subr.bf16.mxu0 0
      %925 = vmatpush1.bf16.msra.mxu0 0
      %926 = vmatprep.subr.bf16.mxu0 0
      %927 = vmatpush1.bf16.msra.mxu0 0
      %928 = vmatprep.subr.bf16.mxu0 0
      %929 = vmatpush1.bf16.msra.mxu0 0
      %930 = vmatprep.subr.bf16.mxu0 0
      %931 = vmatpush1.bf16.msra.mxu0 0
      %932 = vmatprep.subr.bf16.mxu0 0
      %933 = vmatpush1.bf16.msra.mxu0 0
      %934 = vmatprep.subr.bf16.mxu0 0
      %935 = vmatpush1.bf16.msra.mxu0 0
      %936 = vmatprep.subr.bf16.mxu0 0
      %937 = vmatpush1.bf16.msra.mxu0 0
      %938 = vmatprep.subr.bf16.mxu0 0
      %939 = vmatpush1.bf16.msra.mxu0 0
      %940 = vmatprep.mubr.bf16.mxu0 0
      %941 = vmatmul.mubr.bf16.gmra.mrb[0].mxu0 %v903
      %v942 = vpop.f32.mrb[0].mxu0
      %v943 = vadd.f32 0.0, %v942
      %v944 = vpop.f32.mrb[0].mxu0
      %v945 = vpop.f32.mrb[0].mxu0
      %v946 = vpop.f32.mrb[0].mxu0
      %947 = vdwg.mxu0
      %948 = vrot.lane.b32.xlu0 %v555, 64
      %v949 = vpop.permute.xlu0 %948
      %v951 = vsel %vm564, %v802, 0
      %v954 = vsel %vm808, %v949, 0
      %956 = vmatprep.subr.bf16.mxu0 0
      %957 = vmatpush1.bf16.msra.mxu0 %v954
      %958 = vmatprep.subr.bf16.mxu0 0
      %959 = vmatpush1.bf16.msra.mxu0 0
      %960 = vmatprep.subr.bf16.mxu0 0
      %961 = vmatpush1.bf16.msra.mxu0 0
      %962 = vmatprep.subr.bf16.mxu0 0
      %963 = vmatpush1.bf16.msra.mxu0 0
      %964 = vmatprep.subr.bf16.mxu0 0
      %965 = vmatpush1.bf16.msra.mxu0 0
      %966 = vmatprep.subr.bf16.mxu0 0
      %967 = vmatpush1.bf16.msra.mxu0 0
      %968 = vmatprep.subr.bf16.mxu0 0
      %969 = vmatpush1.bf16.msra.mxu0 0
      %970 = vmatprep.subr.bf16.mxu0 0
      %971 = vmatpush1.bf16.msra.mxu0 0
      %972 = vmatprep.subr.bf16.mxu0 0
      %973 = vmatpush1.bf16.msra.mxu0 0
      %974 = vmatprep.subr.bf16.mxu0 0
      %975 = vmatpush1.bf16.msra.mxu0 0
      %976 = vmatprep.subr.bf16.mxu0 0
      %977 = vmatpush1.bf16.msra.mxu0 0
      %978 = vmatprep.subr.bf16.mxu0 0
      %979 = vmatpush1.bf16.msra.mxu0 0
      %980 = vmatprep.subr.bf16.mxu0 0
      %981 = vmatpush1.bf16.msra.mxu0 0
      %982 = vmatprep.subr.bf16.mxu0 0
      %983 = vmatpush1.bf16.msra.mxu0 0
      %984 = vmatprep.subr.bf16.mxu0 0
      %985 = vmatpush1.bf16.msra.mxu0 0
      %986 = vmatprep.subr.bf16.mxu0 0
      %987 = vmatpush1.bf16.msra.mxu0 0
      %988 = vmatprep.mubr.bf16.mxu0 0
      %989 = vmatmul.mubr.bf16.gmra.mrb[0].mxu0 %v951
      %v990 = vpop.f32.mrb[0].mxu0
      %v991 = vadd.f32 0.0, %v990
      %v992 = vpop.f32.mrb[0].mxu0
      %v993 = vpop.f32.mrb[0].mxu0
      %v994 = vpop.f32.mrb[0].mxu0
      %995 = vdwg.mxu0
      %v996 = vld [vmem:[%s5] sm:$0x1]
      %v997 = vpack.c.bf16 %v847, %v847
      %v998 = vld [vmem:[%s4] sm:$0xf]
      %v1000 = vsel %vm564, %v997, 0
      %v1003 = vsel %vm808, %v998, 0
      %1005 = vmatprep.subr.bf16.mxu0 0
      %1006 = vmatpush1.bf16.msra.mxu0 %v1003
      %1007 = vmatprep.subr.bf16.mxu0 0
      %1008 = vmatpush1.bf16.msra.mxu0 0
      %1009 = vmatprep.subr.bf16.mxu0 0
      %1010 = vmatpush1.bf16.msra.mxu0 0
      %1011 = vmatprep.subr.bf16.mxu0 0
      %1012 = vmatpush1.bf16.msra.mxu0 0
      %1013 = vmatprep.subr.bf16.mxu0 0
      %1014 = vmatpush1.bf16.msra.mxu0 0
      %1015 = vmatprep.subr.bf16.mxu0 0
      %1016 = vmatpush1.bf16.msra.mxu0 0
      %1017 = vmatprep.subr.bf16.mxu0 0
      %1018 = vmatpush1.bf16.msra.mxu0 0
      %1019 = vmatprep.subr.bf16.mxu0 0
      %1020 = vmatpush1.bf16.msra.mxu0 0
      %1021 = vmatprep.subr.bf16.mxu0 0
      %1022 = vmatpush1.bf16.msra.mxu0 0
      %1023 = vmatprep.subr.bf16.mxu0 0
      %1024 = vmatpush1.bf16.msra.mxu0 0
      %1025 = vmatprep.subr.bf16.mxu0 0
      %1026 = vmatpush1.bf16.msra.mxu0 0
      %1027 = vmatprep.subr.bf16.mxu0 0
      %1028 = vmatpush1.bf16.msra.mxu0 0
      %1029 = vmatprep.subr.bf16.mxu0 0
      %1030 = vmatpush1.bf16.msra.mxu0 0
      %1031 = vmatprep.subr.bf16.mxu0 0
      %1032 = vmatpush1.bf16.msra.mxu0 0
      %1033 = vmatprep.subr.bf16.mxu0 0
      %1034 = vmatpush1.bf16.msra.mxu0 0
      %1035 = vmatprep.subr.bf16.mxu0 0
      %1036 = vmatpush1.bf16.msra.mxu0 0
      %1037 = vmatprep.mubr.bf16.mxu0 0
      %1038 = vmatmul.mubr.bf16.gmra.mrb[0].mxu0 %v1000
      %v1039 = vpop.f32.mrb[0].mxu0
      %v1040 = vadd.f32 0.0, %v1039
      %v1041 = vpop.f32.mrb[0].mxu0
      %v1042 = vpop.f32.mrb[0].mxu0
      %v1043 = vpop.f32.mrb[0].mxu0
      %1044 = vdwg.mxu0
      %v1046 = vlaneseq
      %v1047 = vshrl.u32 %v1046, 7
      %v1048 = vsub.s32 0, %v1047
      %v1049 = vrot.slane %v996, %v1048
      %v1051 = vadd.f32 %v1049, %v1040
      %v1052 = vpack.c.bf16 %v895, %v895
      %s1053 = scalar_lea.vmem %s4, 4
      %v1054 = vld [vmem:[%s1053] sm:$0xf]
      %v1056 = vsel %vm564, %v1052, 0
      %v1059 = vsel %vm808, %v1054, 0
      %1061 = vmatprep.subr.bf16.mxu0 0
      %1062 = vmatpush1.bf16.msra.mxu0 %v1059
      %1063 = vmatprep.subr.bf16.mxu0 0
      %1064 = vmatpush1.bf16.msra.mxu0 0
      %1065 = vmatprep.subr.bf16.mxu0 0
      %1066 = vmatpush1.bf16.msra.mxu0 0
      %1067 = vmatprep.subr.bf16.mxu0 0
      %1068 = vmatpush1.bf16.msra.mxu0 0
      %1069 = vmatprep.subr.bf16.mxu0 0
      %1070 = vmatpush1.bf16.msra.mxu0 0
      %1071 = vmatprep.subr.bf16.mxu0 0
      %1072 = vmatpush1.bf16.msra.mxu0 0
      %1073 = vmatprep.subr.bf16.mxu0 0
      %1074 = vmatpush1.bf16.msra.mxu0 0
      %1075 = vmatprep.subr.bf16.mxu0 0
      %1076 = vmatpush1.bf16.msra.mxu0 0
      %1077 = vmatprep.subr.bf16.mxu0 0
      %1078 = vmatpush1.bf16.msra.mxu0 0
      %1079 = vmatprep.subr.bf16.mxu0 0
      %1080 = vmatpush1.bf16.msra.mxu0 0
      %1081 = vmatprep.subr.bf16.mxu0 0
      %1082 = vmatpush1.bf16.msra.mxu0 0
      %1083 = vmatprep.subr.bf16.mxu0 0
      %1084 = vmatpush1.bf16.msra.mxu0 0
      %1085 = vmatprep.subr.bf16.mxu0 0
      %1086 = vmatpush1.bf16.msra.mxu0 0
      %1087 = vmatprep.subr.bf16.mxu0 0
      %1088 = vmatpush1.bf16.msra.mxu0 0
      %1089 = vmatprep.subr.bf16.mxu0 0
      %1090 = vmatpush1.bf16.msra.mxu0 0
      %1091 = vmatprep.subr.bf16.mxu0 0
      %1092 = vmatpush1.bf16.msra.mxu0 0
      %1093 = vmatprep.mubr.bf16.mxu0 0
      %1094 = vmatmul.mubr.bf16.gmra.mrb[0].mxu0 %v1056
      %v1095 = vpop.f32.mrb[0].mxu0
      %v1096 = vadd.f32 0.0, %v1095
      %v1097 = vpop.f32.mrb[0].mxu0
      %v1098 = vpop.f32.mrb[0].mxu0
      %v1099 = vpop.f32.mrb[0].mxu0
      %1100 = vdwg.mxu0
      %v1101 = vadd.f32 %v1051, %v1096
      %v1102 = vpack.c.bf16 %v943, %v943
      %s1103 = scalar_lea.vmem %s4, 8
      %v1104 = vld [vmem:[%s1103] sm:$0xf]
      %v1106 = vsel %vm564, %v1102, 0
      %v1109 = vsel %vm808, %v1104, 0
      %1111 = vmatprep.subr.bf16.mxu0 0
      %1112 = vmatpush1.bf16.msra.mxu0 %v1109
      %1113 = vmatprep.subr.bf16.mxu0 0
      %1114 = vmatpush1.bf16.msra.mxu0 0
      %1115 = vmatprep.subr.bf16.mxu0 0
      %1116 = vmatpush1.bf16.msra.mxu0 0
      %1117 = vmatprep.subr.bf16.mxu0 0
      %1118 = vmatpush1.bf16.msra.mxu0 0
      %1119 = vmatprep.subr.bf16.mxu0 0
      %1120 = vmatpush1.bf16.msra.mxu0 0
      %1121 = vmatprep.subr.bf16.mxu0 0
      %1122 = vmatpush1.bf16.msra.mxu0 0
      %1123 = vmatprep.subr.bf16.mxu0 0
      %1124 = vmatpush1.bf16.msra.mxu0 0
      %1125 = vmatprep.subr.bf16.mxu0 0
      %1126 = vmatpush1.bf16.msra.mxu0 0
      %1127 = vmatprep.subr.bf16.mxu0 0
      %1128 = vmatpush1.bf16.msra.mxu0 0
      %1129 = vmatprep.subr.bf16.mxu0 0
      %1130 = vmatpush1.bf16.msra.mxu0 0
      %1131 = vmatprep.subr.bf16.mxu0 0
      %1132 = vmatpush1.bf16.msra.mxu0 0
      %1133 = vmatprep.subr.bf16.mxu0 0
      %1134 = vmatpush1.bf16.msra.mxu0 0
      %1135 = vmatprep.subr.bf16.mxu0 0
      %1136 = vmatpush1.bf16.msra.mxu0 0
      %1137 = vmatprep.subr.bf16.mxu0 0
      %1138 = vmatpush1.bf16.msra.mxu0 0
      %1139 = vmatprep.subr.bf16.mxu0 0
      %1140 = vmatpush1.bf16.msra.mxu0 0
      %1141 = vmatprep.subr.bf16.mxu0 0
      %1142 = vmatpush1.bf16.msra.mxu0 0
      %1143 = vmatprep.mubr.bf16.mxu0 0
      %1144 = vmatmul.mubr.bf16.gmra.mrb[0].mxu0 %v1106
      %v1145 = vpop.f32.mrb[0].mxu0
      %v1146 = vadd.f32 0.0, %v1145
      %v1147 = vpop.f32.mrb[0].mxu0
      %v1148 = vpop.f32.mrb[0].mxu0
      %v1149 = vpop.f32.mrb[0].mxu0
      %1150 = vdwg.mxu0
      %v1151 = vadd.f32 %v1101, %v1146
      %v1152 = vpack.c.bf16 %v991, %v991
      %s1153 = scalar_lea.vmem %s4, 12
      %v1154 = vld [vmem:[%s1153] sm:$0xf]
      %v1156 = vsel %vm564, %v1152, 0
      %v1159 = vsel %vm808, %v1154, 0
      %1161 = vmatprep.subr.bf16.mxu0 0
      %1162 = vmatpush1.bf16.msra.mxu0 %v1159
      %1163 = vmatprep.subr.bf16.mxu0 0
      %1164 = vmatpush1.bf16.msra.mxu0 0
      %1165 = vmatprep.subr.bf16.mxu0 0
      %1166 = vmatpush1.bf16.msra.mxu0 0
      %1167 = vmatprep.subr.bf16.mxu0 0
      %1168 = vmatpush1.bf16.msra.mxu0 0
      %1169 = vmatprep.subr.bf16.mxu0 0
      %1170 = vmatpush1.bf16.msra.mxu0 0
      %1171 = vmatprep.subr.bf16.mxu0 0
      %1172 = vmatpush1.bf16.msra.mxu0 0
      %1173 = vmatprep.subr.bf16.mxu0 0
      %1174 = vmatpush1.bf16.msra.mxu0 0
      %1175 = vmatprep.subr.bf16.mxu0 0
      %1176 = vmatpush1.bf16.msra.mxu0 0
      %1177 = vmatprep.subr.bf16.mxu0 0
      %1178 = vmatpush1.bf16.msra.mxu0 0
      %1179 = vmatprep.subr.bf16.mxu0 0
      %1180 = vmatpush1.bf16.msra.mxu0 0
      %1181 = vmatprep.subr.bf16.mxu0 0
      %1182 = vmatpush1.bf16.msra.mxu0 0
      %1183 = vmatprep.subr.bf16.mxu0 0
      %1184 = vmatpush1.bf16.msra.mxu0 0
      %1185 = vmatprep.subr.bf16.mxu0 0
      %1186 = vmatpush1.bf16.msra.mxu0 0
      %1187 = vmatprep.subr.bf16.mxu0 0
      %1188 = vmatpush1.bf16.msra.mxu0 0
      %1189 = vmatprep.subr.bf16.mxu0 0
      %1190 = vmatpush1.bf16.msra.mxu0 0
      %1191 = vmatprep.subr.bf16.mxu0 0
      %1192 = vmatpush1.bf16.msra.mxu0 0
      %1193 = vmatprep.mubr.bf16.mxu0 0
      %1194 = vmatmul.mubr.bf16.gmra.mrb[0].mxu0 %v1156
      %v1195 = vpop.f32.mrb[0].mxu0
      %v1196 = vadd.f32 0.0, %v1195
      %v1197 = vpop.f32.mrb[0].mxu0
      %v1198 = vpop.f32.mrb[0].mxu0
      %v1199 = vpop.f32.mrb[0].mxu0
      %1200 = vdwg.mxu0
      %v1201 = vadd.f32 %v1151, %v1196
      %v1202 = vadd.f32 %v478, %v1201
      %v1203 = vld [vmem:[%s6] sm:$0x1]
      %v1204 = vld [vmem:[%s7] sm:$0x1]
      %v1205 = vsel %vm504, %v1202, 0.0
      %1206 = vadd.xlane.f32.xlu0 %v1205
      %v1207 = vpop.xlane.xlu0 %1206
      %v1208 = vrcp.pop 32.0
      %v1209 = vmul.f32 %v1207, %v1208
      %v1210 = vsub.f32 %v1202, %v1209
      %v1211 = vmul.f32 %v1210, %v1210
      %v1212 = vsel %vm504, %v1211, 0.0
      %1213 = vadd.xlane.f32.xlu0 %v1212
      %v1214 = vpop.xlane.xlu0 %1213
      %v1215 = vmul.f32 %v1214, %v1208
      %v1216 = vadd.f32 %v1215, 1e-05
      %v1217 = vrsqrt.pop %v1216
      %v1218 = vmul.f32 %v1210, %v1217
      %v1220 = vlaneseq
      %v1221 = vshrl.u32 %v1220, 7
      %v1222 = vsub.s32 0, %v1221
      %v1223 = vrot.slane %v1203, %v1222
      %v1225 = vmul.f32 %v1218, %v1223
      %v1227 = vlaneseq
      %v1228 = vshrl.u32 %v1227, 7
      %v1229 = vsub.s32 0, %v1228
      %v1230 = vrot.slane %v1204, %v1229
      %v1232 = vadd.f32 %v1225, %v1230
      %v1233 = vpack.c.bf16 %v1232, %v1232
      %v1234 = vld [vmem:[%s8] sm:$0xf]
      %v1235 = vld [vmem:[%s8 + $0x4] sm:$0xf]
      %v1236 = vld [vmem:[%s8 + $0x8] sm:$0xf]
      %v1237 = vld [vmem:[%s8 + $0xc] sm:$0xf]
      %v1238 = vld [vmem:[%s9] sm:$0x1]
      %v1240 = vlaneseq
      %v1241 = vshrl.u32 %v1240, 7
      %v1242 = vsub.s32 0, %v1241
      %v1243 = vrot.slane %v1238, %v1242
      %v1249 = vunpack.c.l.b16 %v1234
      %v1250 = vunpack.c.l.b16 %v1235
      %v1251 = vunpack.c.l.b16 %v1236
      %v1252 = vunpack.c.l.b16 %v1237
      %v1253 = vpack.c.b16 %v1250, %v1249
      %v1254 = vpack.c.b16 %v1252, %v1251
      %v1258 = vsel %vm504, %v1233, 0
      %1260 = vmatprep.subr.bf16.mxu0 0
      %1261 = vmatpush1.bf16.msra.mxu0 %v1253
      %1262 = vmatprep.subr.bf16.mxu0 0
      %1263 = vmatpush1.bf16.msra.mxu0 %v1254
      %1264 = vmatprep.subr.bf16.mxu0 0
      %1265 = vmatpush1.bf16.msra.mxu0 0
      %1266 = vmatprep.subr.bf16.mxu0 0
      %1267 = vmatpush1.bf16.msra.mxu0 0
      %1268 = vmatprep.subr.bf16.mxu0 0
      %1269 = vmatpush1.bf16.msra.mxu0 0
      %1270 = vmatprep.subr.bf16.mxu0 0
      %1271 = vmatpush1.bf16.msra.mxu0 0
      %1272 = vmatprep.subr.bf16.mxu0 0
      %1273 = vmatpush1.bf16.msra.mxu0 0
      %1274 = vmatprep.subr.bf16.mxu0 0
      %1275 = vmatpush1.bf16.msra.mxu0 0
      %1276 = vmatprep.subr.bf16.mxu0 0
      %1277 = vmatpush1.bf16.msra.mxu0 0
      %1278 = vmatprep.subr.bf16.mxu0 0
      %1279 = vmatpush1.bf16.msra.mxu0 0
      %1280 = vmatprep.subr.bf16.mxu0 0
      %1281 = vmatpush1.bf16.msra.mxu0 0
      %1282 = vmatprep.subr.bf16.mxu0 0
      %1283 = vmatpush1.bf16.msra.mxu0 0
      %1284 = vmatprep.subr.bf16.mxu0 0
      %1285 = vmatpush1.bf16.msra.mxu0 0
      %1286 = vmatprep.subr.bf16.mxu0 0
      %1287 = vmatpush1.bf16.msra.mxu0 0
      %1288 = vmatprep.subr.bf16.mxu0 0
      %1289 = vmatpush1.bf16.msra.mxu0 0
      %1290 = vmatprep.subr.bf16.mxu0 0
      %1291 = vmatpush1.bf16.msra.mxu0 0
      %1292 = vmatprep.mubr.bf16.mxu0 0
      %1293 = vmatmul.mubr.bf16.gmra.mrb[0].mxu0 %v1258
      %v1294 = vpop.f32.mrb[0].mxu0
      %v1295 = vadd.f32 %v1243, %v1294
      %v1296 = vpop.f32.mrb[0].mxu0
      %v1297 = vpop.f32.mrb[0].mxu0
      %v1298 = vpop.f32.mrb[0].mxu0
      %1299 = vdwg.mxu0
      %v1300 = vmax.f32 %v1295, 0.0
      %v1301 = vpack.c.bf16 %v1300, %v1300
      %v1302 = vld [vmem:[%s10] sm:$0xf]
      %v1303 = vld [vmem:[%s10 + $0x4] sm:$0xf]
      %v1304 = vld [vmem:[%s10 + $0x8] sm:$0xf]
      %v1305 = vld [vmem:[%s10 + $0xc] sm:$0xf]
      %v1306 = vld [vmem:[%s10 + $0x10] sm:$0xf]
      %v1307 = vld [vmem:[%s10 + $0x14] sm:$0xf]
      %v1308 = vld [vmem:[%s10 + $0x18] sm:$0xf]
      %v1309 = vld [vmem:[%s10 + $0x1c] sm:$0xf]
      %v1310 = vld [vmem:[%s10 + $0x20] sm:$0xf]
      %v1311 = vld [vmem:[%s10 + $0x24] sm:$0xf]
      %v1312 = vld [vmem:[%s10 + $0x28] sm:$0xf]
      %v1313 = vld [vmem:[%s10 + $0x2c] sm:$0xf]
      %v1314 = vld [vmem:[%s10 + $0x30] sm:$0xf]
      %v1315 = vld [vmem:[%s10 + $0x34] sm:$0xf]
      %v1316 = vld [vmem:[%s10 + $0x38] sm:$0xf]
      %v1317 = vld [vmem:[%s10 + $0x3c] sm:$0xf]
      %v1318 = vld [vmem:[%s11] sm:$0x1]
      %v1320 = vlaneseq
      %v1321 = vshrl.u32 %v1320, 7
      %v1322 = vsub.s32 0, %v1321
      %v1323 = vrot.slane %v1318, %v1322
      %v1341 = vunpack.c.l.b16 %v1302
      %v1342 = vunpack.c.l.b16 %v1303
      %v1343 = vunpack.c.l.b16 %v1304
      %v1344 = vunpack.c.l.b16 %v1305
      %v1345 = vunpack.c.l.b16 %v1306
      %v1346 = vunpack.c.l.b16 %v1307
      %v1347 = vunpack.c.l.b16 %v1308
      %v1348 = vunpack.c.l.b16 %v1309
      %v1349 = vunpack.c.l.b16 %v1310
      %v1350 = vunpack.c.l.b16 %v1311
      %v1351 = vunpack.c.l.b16 %v1312
      %v1352 = vunpack.c.l.b16 %v1313
      %v1353 = vunpack.c.l.b16 %v1314
      %v1354 = vunpack.c.l.b16 %v1315
      %v1355 = vunpack.c.l.b16 %v1316
      %v1356 = vunpack.c.l.b16 %v1317
      %v1357 = vpack.c.b16 %v1342, %v1341
      %v1358 = vpack.c.b16 %v1344, %v1343
      %v1359 = vpack.c.b16 %v1346, %v1345
      %v1360 = vpack.c.b16 %v1348, %v1347
      %v1361 = vpack.c.b16 %v1350, %v1349
      %v1362 = vpack.c.b16 %v1352, %v1351
      %v1363 = vpack.c.b16 %v1354, %v1353
      %v1364 = vpack.c.b16 %v1356, %v1355
      %1373 = vmatprep.subr.bf16.mxu0 0
      %1374 = vmatpush1.bf16.msra.mxu0 %v1357
      %1375 = vmatprep.subr.bf16.mxu0 0
      %1376 = vmatpush1.bf16.msra.mxu0 %v1358
      %1377 = vmatprep.subr.bf16.mxu0 0
      %1378 = vmatpush1.bf16.msra.mxu0 %v1359
      %1379 = vmatprep.subr.bf16.mxu0 0
      %1380 = vmatpush1.bf16.msra.mxu0 %v1360
      %1381 = vmatprep.subr.bf16.mxu0 0
      %1382 = vmatpush1.bf16.msra.mxu0 %v1361
      %1383 = vmatprep.subr.bf16.mxu0 0
      %1384 = vmatpush1.bf16.msra.mxu0 %v1362
      %1385 = vmatprep.subr.bf16.mxu0 0
      %1386 = vmatpush1.bf16.msra.mxu0 %v1363
      %1387 = vmatprep.subr.bf16.mxu0 0
      %1388 = vmatpush1.bf16.msra.mxu0 %v1364
      %1389 = vmatprep.subr.bf16.mxu0 0
      %1390 = vmatpush1.bf16.msra.mxu0 0
      %1391 = vmatprep.subr.bf16.mxu0 0
      %1392 = vmatpush1.bf16.msra.mxu0 0
      %1393 = vmatprep.subr.bf16.mxu0 0
      %1394 = vmatpush1.bf16.msra.mxu0 0
      %1395 = vmatprep.subr.bf16.mxu0 0
      %1396 = vmatpush1.bf16.msra.mxu0 0
      %1397 = vmatprep.subr.bf16.mxu0 0
      %1398 = vmatpush1.bf16.msra.mxu0 0
      %1399 = vmatprep.subr.bf16.mxu0 0
      %1400 = vmatpush1.bf16.msra.mxu0 0
      %1401 = vmatprep.subr.bf16.mxu0 0
      %1402 = vmatpush1.bf16.msra.mxu0 0
      %1403 = vmatprep.subr.bf16.mxu0 0
      %1404 = vmatpush1.bf16.msra.mxu0 0
      %1405 = vmatprep.mubr.bf16.mxu0 0
      %1406 = vmatmul.mubr.bf16.gmra.mrb[0].mxu0 %v1301
      %v1407 = vpop.f32.mrb[0].mxu0
      %v1408 = vadd.f32 %v1323, %v1407
      %v1409 = vpop.f32.mrb[0].mxu0
      %v1410 = vpop.f32.mrb[0].mxu0
      %v1411 = vpop.f32.mrb[0].mxu0
      %1412 = vdwg.mxu0
      %v1413 = vadd.f32 %v1232, %v1408
      %v1414 = vld [vmem:[%s12] sm:$0x1]
      %v1415 = vld [vmem:[%s13] sm:$0x1]
      %v1416 = vsel %vm504, %v1413, 0.0
      %1417 = vadd.xlane.f32.xlu0 %v1416
      %v1418 = vpop.xlane.xlu0 %1417
      %v1419 = vmul.f32 %v1418, %v1208
      %v1420 = vsub.f32 %v1413, %v1419
      %v1421 = vmul.f32 %v1420, %v1420
      %v1422 = vsel %vm504, %v1421, 0.0
      %1423 = vadd.xlane.f32.xlu0 %v1422
      %v1424 = vpop.xlane.xlu0 %1423
      %v1425 = vmul.f32 %v1424, %v1208
      %v1426 = vadd.f32 %v1425, 1e-05
      %v1427 = vrsqrt.pop %v1426
      %v1428 = vmul.f32 %v1420, %v1427
      %v1430 = vlaneseq
      %v1431 = vshrl.u32 %v1430, 7
      %v1432 = vsub.s32 0, %v1431
      %v1433 = vrot.slane %v1414, %v1432
      %v1435 = vmul.f32 %v1428, %v1433
      %v1437 = vlaneseq
      %v1438 = vshrl.u32 %v1437, 7
      %v1439 = vsub.s32 0, %v1438
      %v1440 = vrot.slane %v1415, %v1439
      %v1442 = vadd.f32 %v1435, %v1440
      %v1443 = vpack.c.bf16 %v1442, %v1442
      %s1444 = scalar_lea.vmem %s2, 16
      %v1445 = vld [vmem:[%s1444] sm:$0xf]
      %v1446 = vld [vmem:[%s1444 + $0x4] sm:$0xf]
      %v1447 = vld [vmem:[%s1444 + $0x8] sm:$0xf]
      %v1448 = vld [vmem:[%s1444 + $0xc] sm:$0xf]
      %s1449 = scalar_lea.vmem %s3, 1
      %v1450 = vld [vmem:[%s1449] sm:$0x1]
      %v1452 = vlaneseq
      %v1453 = vshrl.u32 %v1452, 7
      %v1454 = vsub.s32 0, %v1453
      %v1455 = vrot.slane %v1450, %v1454
      %v1461 = vunpack.c.l.b16 %v1445
      %v1462 = vunpack.c.l.b16 %v1446
      %v1463 = vunpack.c.l.b16 %v1447
      %v1464 = vunpack.c.l.b16 %v1448
      %v1465 = vpack.c.b16 %v1462, %v1461
      %v1466 = vpack.c.b16 %v1464, %v1463
      %v1470 = vsel %vm504, %v1443, 0
      %1472 = vmatprep.subr.bf16.mxu0 0
      %1473 = vmatpush1.bf16.msra.mxu0 %v1465
      %1474 = vmatprep.subr.bf16.mxu0 0
      %1475 = vmatpush1.bf16.msra.mxu0 %v1466
      %1476 = vmatprep.subr.bf16.mxu0 0
      %1477 = vmatpush1.bf16.msra.mxu0 0
      %1478 = vmatprep.subr.bf16.mxu0 0
      %1479 = vmatpush1.bf16.msra.mxu0 0
      %1480 = vmatprep.subr.bf16.mxu0 0
      %1481 = vmatpush1.bf16.msra.mxu0 0
      %1482 = vmatprep.subr.bf16.mxu0 0
      %1483 = vmatpush1.bf16.msra.mxu0 0
      %1484 = vmatprep.subr.bf16.mxu0 0
      %1485 = vmatpush1.bf16.msra.mxu0 0
      %1486 = vmatprep.subr.bf16.mxu0 0
      %1487 = vmatpush1.bf16.msra.mxu0 0
      %1488 = vmatprep.subr.bf16.mxu0 0
      %1489 = vmatpush1.bf16.msra.mxu0 0
      %1490 = vmatprep.subr.bf16.mxu0 0
      %1491 = vmatpush1.bf16.msra.mxu0 0
      %1492 = vmatprep.subr.bf16.mxu0 0
      %1493 = vmatpush1.bf16.msra.mxu0 0
      %1494 = vmatprep.subr.bf16.mxu0 0
      %1495 = vmatpush1.bf16.msra.mxu0 0
      %1496 = vmatprep.subr.bf16.mxu0 0
      %1497 = vmatpush1.bf16.msra.mxu0 0
      %1498 = vmatprep.subr.bf16.mxu0 0
      %1499 = vmatpush1.bf16.msra.mxu0 0
      %1500 = vmatprep.subr.bf16.mxu0 0
      %1501 = vmatpush1.bf16.msra.mxu0 0
      %1502 = vmatprep.subr.bf16.mxu0 0
      %1503 = vmatpush1.bf16.msra.mxu0 0
      %1504 = vmatprep.mubr.bf16.mxu0 0
      %1505 = vmatmul.mubr.bf16.gmra.mrb[0].mxu0 %v1470
      %v1506 = vpop.f32.mrb[0].mxu0
      %v1507 = vadd.f32 %v1455, %v1506
      %v1508 = vpop.f32.mrb[0].mxu0
      %v1509 = vpop.f32.mrb[0].mxu0
      %v1510 = vpop.f32.mrb[0].mxu0
      %1511 = vdwg.mxu0
      %v1512 = vpack.c.bf16 %v1507, %v1507
      %1514 = vrot.lane.b32.xlu0 %v1512, 120
      %v1515 = vpop.permute.xlu0 %1514
      %1516 = vrot.lane.b32.xlu0 %v1512, 112
      %v1517 = vpop.permute.xlu0 %1516
      %1518 = vrot.lane.b32.xlu0 %v1512, 104
      %v1519 = vpop.permute.xlu0 %1518
      %1520 = vrot.lane.b32.xlu0 %v1512, 96
      %v1521 = vpop.permute.xlu0 %1520
      %v1523 = vsel %vm564, %v1512, 0
      %v1526 = vsel %vm564, %v1521, 0
      %1528 = vmatprep.subr.bf16.mxu0 0
      %1529 = vmatpush1.bf16.xpose.msra.mxu0 %v1526
      %1530 = vmatprep.subr.bf16.mxu0 0
      %1531 = vmatpush1.bf16.xpose.msra.mxu0 0
      %1532 = vmatprep.subr.bf16.mxu0 0
      %1533 = vmatpush1.bf16.xpose.msra.mxu0 0
      %1534 = vmatprep.subr.bf16.mxu0 0
      %1535 = vmatpush1.bf16.xpose.msra.mxu0 0
      %1536 = vmatprep.subr.bf16.mxu0 0
      %1537 = vmatpush1.bf16.xpose.msra.mxu0 0
      %1538 = vmatprep.subr.bf16.mxu0 0
      %1539 = vmatpush1.bf16.xpose.msra.mxu0 0
      %1540 = vmatprep.subr.bf16.mxu0 0
      %1541 = vmatpush1.bf16.xpose.msra.mxu0 0
      %1542 = vmatprep.subr.bf16.mxu0 0
      %1543 = vmatpush1.bf16.xpose.msra.mxu0 0
      %1544 = vmatprep.subr.bf16.mxu0 0
      %1545 = vmatpush1.bf16.xpose.msra.mxu0 0
      %1546 = vmatprep.subr.bf16.mxu0 0
      %1547 = vmatpush1.bf16.xpose.msra.mxu0 0
      %1548 = vmatprep.subr.bf16.mxu0 0
      %1549 = vmatpush1.bf16.xpose.msra.mxu0 0
      %1550 = vmatprep.subr.bf16.mxu0 0
      %1551 = vmatpush1.bf16.xpose.msra.mxu0 0
      %1552 = vmatprep.subr.bf16.mxu0 0
      %1553 = vmatpush1.bf16.xpose.msra.mxu0 0
      %1554 = vmatprep.subr.bf16.mxu0 0
      %1555 = vmatpush1.bf16.xpose.msra.mxu0 0
      %1556 = vmatprep.subr.bf16.mxu0 0
      %1557 = vmatpush1.bf16.xpose.msra.mxu0 0
      %1558 = vmatprep.subr.bf16.mxu0 0
      %1559 = vmatpush1.bf16.xpose.msra.mxu0 0
      %1560 = vmatprep.mubr.bf16.mxu0 0
      %1561 = vmatmul.mubr.bf16.gmra.mrb[0].mxu0 %v1523
      %v1562 = vpop.f32.mrb[0].mxu0
      %v1563 = vadd.f32 %v560, %v1562
      %v1564 = vpop.f32.mrb[0].mxu0
      %v1565 = vpop.f32.mrb[0].mxu0
      %v1566 = vpop.f32.mrb[0].mxu0
      %1567 = vdwg.mxu0
      %1568 = vrot.lane.b32.xlu0 %v1515, 96
      %v1569 = vpop.permute.xlu0 %1568
      %v1571 = vsel %vm564, %v1515, 0
      %v1574 = vsel %vm564, %v1569, 0
      %1576 = vmatprep.subr.bf16.mxu0 0
      %1577 = vmatpush1.bf16.xpose.msra.mxu0 %v1574
      %1578 = vmatprep.subr.bf16.mxu0 0
      %1579 = vmatpush1.bf16.xpose.msra.mxu0 0
      %1580 = vmatprep.subr.bf16.mxu0 0
      %1581 = vmatpush1.bf16.xpose.msra.mxu0 0
      %1582 = vmatprep.subr.bf16.mxu0 0
      %1583 = vmatpush1.bf16.xpose.msra.mxu0 0
      %1584 = vmatprep.subr.bf16.mxu0 0
      %1585 = vmatpush1.bf16.xpose.msra.mxu0 0
      %1586 = vmatprep.subr.bf16.mxu0 0
      %1587 = vmatpush1.bf16.xpose.msra.mxu0 0
      %1588 = vmatprep.subr.bf16.mxu0 0
      %1589 = vmatpush1.bf16.xpose.msra.mxu0 0
      %1590 = vmatprep.subr.bf16.mxu0 0
      %1591 = vmatpush1.bf16.xpose.msra.mxu0 0
      %1592 = vmatprep.subr.bf16.mxu0 0
      %1593 = vmatpush1.bf16.xpose.msra.mxu0 0
      %1594 = vmatprep.subr.bf16.mxu0 0
      %1595 = vmatpush1.bf16.xpose.msra.mxu0 0
      %1596 = vmatprep.subr.bf16.mxu0 0
      %1597 = vmatpush1.bf16.xpose.msra.mxu0 0
      %1598 = vmatprep.subr.bf16.mxu0 0
      %1599 = vmatpush1.bf16.xpose.msra.mxu0 0
      %1600 = vmatprep.subr.bf16.mxu0 0
      %1601 = vmatpush1.bf16.xpose.msra.mxu0 0
      %1602 = vmatprep.subr.bf16.mxu0 0
      %1603 = vmatpush1.bf16.xpose.msra.mxu0 0
      %1604 = vmatprep.subr.bf16.mxu0 0
      %1605 = vmatpush1.bf16.xpose.msra.mxu0 0
      %1606 = vmatprep.subr.bf16.mxu0 0
      %1607 = vmatpush1.bf16.xpose.msra.mxu0 0
      %1608 = vmatprep.mubr.bf16.mxu0 0
      %1609 = vmatmul.mubr.bf16.gmra.mrb[0].mxu0 %v1571
      %v1610 = vpop.f32.mrb[0].mxu0
      %v1611 = vadd.f32 %v560, %v1610
      %v1612 = vpop.f32.mrb[0].mxu0
      %v1613 = vpop.f32.mrb[0].mxu0
      %v1614 = vpop.f32.mrb[0].mxu0
      %1615 = vdwg.mxu0
      %1616 = vrot.lane.b32.xlu0 %v1517, 96
      %v1617 = vpop.permute.xlu0 %1616
      %v1619 = vsel %vm564, %v1517, 0
      %v1622 = vsel %vm564, %v1617, 0
      %1624 = vmatprep.subr.bf16.mxu0 0
      %1625 = vmatpush1.bf16.xpose.msra.mxu0 %v1622
      %1626 = vmatprep.subr.bf16.mxu0 0
      %1627 = vmatpush1.bf16.xpose.msra.mxu0 0
      %1628 = vmatprep.subr.bf16.mxu0 0
      %1629 = vmatpush1.bf16.xpose.msra.mxu0 0
      %1630 = vmatprep.subr.bf16.mxu0 0
      %1631 = vmatpush1.bf16.xpose.msra.mxu0 0
      %1632 = vmatprep.subr.bf16.mxu0 0
      %1633 = vmatpush1.bf16.xpose.msra.mxu0 0
      %1634 = vmatprep.subr.bf16.mxu0 0
      %1635 = vmatpush1.bf16.xpose.msra.mxu0 0
      %1636 = vmatprep.subr.bf16.mxu0 0
      %1637 = vmatpush1.bf16.xpose.msra.mxu0 0
      %1638 = vmatprep.subr.bf16.mxu0 0
      %1639 = vmatpush1.bf16.xpose.msra.mxu0 0
      %1640 = vmatprep.subr.bf16.mxu0 0
      %1641 = vmatpush1.bf16.xpose.msra.mxu0 0
      %1642 = vmatprep.subr.bf16.mxu0 0
      %1643 = vmatpush1.bf16.xpose.msra.mxu0 0
      %1644 = vmatprep.subr.bf16.mxu0 0
      %1645 = vmatpush1.bf16.xpose.msra.mxu0 0
      %1646 = vmatprep.subr.bf16.mxu0 0
      %1647 = vmatpush1.bf16.xpose.msra.mxu0 0
      %1648 = vmatprep.subr.bf16.mxu0 0
      %1649 = vmatpush1.bf16.xpose.msra.mxu0 0
      %1650 = vmatprep.subr.bf16.mxu0 0
      %1651 = vmatpush1.bf16.xpose.msra.mxu0 0
      %1652 = vmatprep.subr.bf16.mxu0 0
      %1653 = vmatpush1.bf16.xpose.msra.mxu0 0
      %1654 = vmatprep.subr.bf16.mxu0 0
      %1655 = vmatpush1.bf16.xpose.msra.mxu0 0
      %1656 = vmatprep.mubr.bf16.mxu0 0
      %1657 = vmatmul.mubr.bf16.gmra.mrb[0].mxu0 %v1619
      %v1658 = vpop.f32.mrb[0].mxu0
      %v1659 = vadd.f32 %v560, %v1658
      %v1660 = vpop.f32.mrb[0].mxu0
      %v1661 = vpop.f32.mrb[0].mxu0
      %v1662 = vpop.f32.mrb[0].mxu0
      %1663 = vdwg.mxu0
      %1664 = vrot.lane.b32.xlu0 %v1519, 96
      %v1665 = vpop.permute.xlu0 %1664
      %v1667 = vsel %vm564, %v1519, 0
      %v1670 = vsel %vm564, %v1665, 0
      %1672 = vmatprep.subr.bf16.mxu0 0
      %1673 = vmatpush1.bf16.xpose.msra.mxu0 %v1670
      %1674 = vmatprep.subr.bf16.mxu0 0
      %1675 = vmatpush1.bf16.xpose.msra.mxu0 0
      %1676 = vmatprep.subr.bf16.mxu0 0
      %1677 = vmatpush1.bf16.xpose.msra.mxu0 0
      %1678 = vmatprep.subr.bf16.mxu0 0
      %1679 = vmatpush1.bf16.xpose.msra.mxu0 0
      %1680 = vmatprep.subr.bf16.mxu0 0
      %1681 = vmatpush1.bf16.xpose.msra.mxu0 0
      %1682 = vmatprep.subr.bf16.mxu0 0
      %1683 = vmatpush1.bf16.xpose.msra.mxu0 0
      %1684 = vmatprep.subr.bf16.mxu0 0
      %1685 = vmatpush1.bf16.xpose.msra.mxu0 0
      %1686 = vmatprep.subr.bf16.mxu0 0
      %1687 = vmatpush1.bf16.xpose.msra.mxu0 0
      %1688 = vmatprep.subr.bf16.mxu0 0
      %1689 = vmatpush1.bf16.xpose.msra.mxu0 0
      %1690 = vmatprep.subr.bf16.mxu0 0
      %1691 = vmatpush1.bf16.xpose.msra.mxu0 0
      %1692 = vmatprep.subr.bf16.mxu0 0
      %1693 = vmatpush1.bf16.xpose.msra.mxu0 0
      %1694 = vmatprep.subr.bf16.mxu0 0
      %1695 = vmatpush1.bf16.xpose.msra.mxu0 0
      %1696 = vmatprep.subr.bf16.mxu0 0
      %1697 = vmatpush1.bf16.xpose.msra.mxu0 0
      %1698 = vmatprep.subr.bf16.mxu0 0
      %1699 = vmatpush1.bf16.xpose.msra.mxu0 0
      %1700 = vmatprep.subr.bf16.mxu0 0
      %1701 = vmatpush1.bf16.xpose.msra.mxu0 0
      %1702 = vmatprep.subr.bf16.mxu0 0
      %1703 = vmatpush1.bf16.xpose.msra.mxu0 0
      %1704 = vmatprep.mubr.bf16.mxu0 0
      %1705 = vmatmul.mubr.bf16.gmra.mrb[0].mxu0 %v1667
      %v1706 = vpop.f32.mrb[0].mxu0
      %v1707 = vadd.f32 %v560, %v1706
      %v1708 = vpop.f32.mrb[0].mxu0
      %v1709 = vpop.f32.mrb[0].mxu0
      %v1710 = vpop.f32.mrb[0].mxu0
      %1711 = vdwg.mxu0
      %v1712 = vsel %vm564, %v1563, -inf
      %1713 = vmax.xlane.f32.xlu0 %v1712
      %v1714 = vpop.xlane.xlu0 %1713
      %v1715 = vsel %vm564, %v1611, -inf
      %1716 = vmax.xlane.f32.xlu0 %v1715
      %v1717 = vpop.xlane.xlu0 %1716
      %v1718 = vsel %vm564, %v1659, -inf
      %1719 = vmax.xlane.f32.xlu0 %v1718
      %v1720 = vpop.xlane.xlu0 %1719
      %v1721 = vsel %vm564, %v1707, -inf
      %1722 = vmax.xlane.f32.xlu0 %v1721
      %v1723 = vpop.xlane.xlu0 %1722
      %v1724 = vsub.f32 %v1563, %v1714
      %v1725 = vsub.f32 %v1611, %v1717
      %v1726 = vsub.f32 %v1659, %v1720
      %v1727 = vsub.f32 %v1707, %v1723
      %v1728 = vmul.f32 %v1724, 1.442695
      %v1729 = vpow.pop %v1728
      %v1730 = vmul.f32 %v1725, 1.442695
      %v1731 = vpow.pop %v1730
      %v1732 = vmul.f32 %v1726, 1.442695
      %v1733 = vpow.pop %v1732
      %v1734 = vmul.f32 %v1727, 1.442695
      %v1735 = vpow.pop %v1734
      %v1736 = vsel %vm564, %v1729, 0.0
      %1737 = vadd.xlane.f32.xlu0 %v1736
      %v1738 = vpop.xlane.xlu0 %1737
      %v1739 = vsel %vm564, %v1731, 0.0
      %1740 = vadd.xlane.f32.xlu0 %v1739
      %v1741 = vpop.xlane.xlu0 %1740
      %v1742 = vsel %vm564, %v1733, 0.0
      %1743 = vadd.xlane.f32.xlu0 %v1742
      %v1744 = vpop.xlane.xlu0 %1743
      %v1745 = vsel %vm564, %v1735, 0.0
      %1746 = vadd.xlane.f32.xlu0 %v1745
      %v1747 = vpop.xlane.xlu0 %1746
      %v1748 = vrcp.pop %v1738
      %v1749 = vrcp.pop %v1741
      %v1750 = vrcp.pop %v1744
      %v1751 = vrcp.pop %v1747
      %v1752 = vmul.f32 %v1729, %v1748
      %v1753 = vmul.f32 %v1731, %v1749
      %v1754 = vmul.f32 %v1733, %v1750
      %v1755 = vmul.f32 %v1735, %v1751
      %v1756 = vpack.c.bf16 %v1752, %v1752
      %v1757 = vpack.c.bf16 %v1753, %v1753
      %v1758 = vpack.c.bf16 %v1754, %v1754
      %v1759 = vpack.c.bf16 %v1755, %v1755
      %1760 = vrot.lane.b32.xlu0 %v1512, 64
      %v1761 = vpop.permute.xlu0 %1760
      %v1763 = vsel %vm564, %v1756, 0
      %v1766 = vsel %vm808, %v1761, 0
      %1768 = vmatprep.subr.bf16.mxu0 0
      %1769 = vmatpush1.bf16.msra.mxu0 %v1766
      %1770 = vmatprep.subr.bf16.mxu0 0
      %1771 = vmatpush1.bf16.msra.mxu0 0
      %1772 = vmatprep.subr.bf16.mxu0 0
      %1773 = vmatpush1.bf16.msra.mxu0 0
      %1774 = vmatprep.subr.bf16.mxu0 0
      %1775 = vmatpush1.bf16.msra.mxu0 0
      %1776 = vmatprep.subr.bf16.mxu0 0
      %1777 = vmatpush1.bf16.msra.mxu0 0
      %1778 = vmatprep.subr.bf16.mxu0 0
      %1779 = vmatpush1.bf16.msra.mxu0 0
      %1780 = vmatprep.subr.bf16.mxu0 0
      %1781 = vmatpush1.bf16.msra.mxu0 0
      %1782 = vmatprep.subr.bf16.mxu0 0
      %1783 = vmatpush1.bf16.msra.mxu0 0
      %1784 = vmatprep.subr.bf16.mxu0 0
      %1785 = vmatpush1.bf16.msra.mxu0 0
      %1786 = vmatprep.subr.bf16.mxu0 0
      %1787 = vmatpush1.bf16.msra.mxu0 0
      %1788 = vmatprep.subr.bf16.mxu0 0
      %1789 = vmatpush1.bf16.msra.mxu0 0
      %1790 = vmatprep.subr.bf16.mxu0 0
      %1791 = vmatpush1.bf16.msra.mxu0 0
      %1792 = vmatprep.subr.bf16.mxu0 0
      %1793 = vmatpush1.bf16.msra.mxu0 0
      %1794 = vmatprep.subr.bf16.mxu0 0
      %1795 = vmatpush1.bf16.msra.mxu0 0
      %1796 = vmatprep.subr.bf16.mxu0 0
      %1797 = vmatpush1.bf16.msra.mxu0 0
      %1798 = vmatprep.subr.bf16.mxu0 0
      %1799 = vmatpush1.bf16.msra.mxu0 0
      %1800 = vmatprep.mubr.bf16.mxu0 0
      %1801 = vmatmul.mubr.bf16.gmra.mrb[0].mxu0 %v1763
      %v1802 = vpop.f32.mrb[0].mxu0
      %v1803 = vadd.f32 0.0, %v1802
      %v1804 = vpop.f32.mrb[0].mxu0
      %v1805 = vpop.f32.mrb[0].mxu0
      %v1806 = vpop.f32.mrb[0].mxu0
      %1807 = vdwg.mxu0
      %1808 = vrot.lane.b32.xlu0 %v1515, 64
      %v1809 = vpop.permute.xlu0 %1808
      %v1811 = vsel %vm564, %v1757, 0
      %v1814 = vsel %vm808, %v1809, 0
      %1816 = vmatprep.subr.bf16.mxu0 0
      %1817 = vmatpush1.bf16.msra.mxu0 %v1814
      %1818 = vmatprep.subr.bf16.mxu0 0
      %1819 = vmatpush1.bf16.msra.mxu0 0
      %1820 = vmatprep.subr.bf16.mxu0 0
      %1821 = vmatpush1.bf16.msra.mxu0 0
      %1822 = vmatprep.subr.bf16.mxu0 0
      %1823 = vmatpush1.bf16.msra.mxu0 0
      %1824 = vmatprep.subr.bf16.mxu0 0
      %1825 = vmatpush1.bf16.msra.mxu0 0
      %1826 = vmatprep.subr.bf16.mxu0 0
      %1827 = vmatpush1.bf16.msra.mxu0 0
      %1828 = vmatprep.subr.bf16.mxu0 0
      %1829 = vmatpush1.bf16.msra.mxu0 0
      %1830 = vmatprep.subr.bf16.mxu0 0
      %1831 = vmatpush1.bf16.msra.mxu0 0
      %1832 = vmatprep.subr.bf16.mxu0 0
      %1833 = vmatpush1.bf16.msra.mxu0 0
      %1834 = vmatprep.subr.bf16.mxu0 0
      %1835 = vmatpush1.bf16.msra.mxu0 0
      %1836 = vmatprep.subr.bf16.mxu0 0
      %1837 = vmatpush1.bf16.msra.mxu0 0
      %1838 = vmatprep.subr.bf16.mxu0 0
      %1839 = vmatpush1.bf16.msra.mxu0 0
      %1840 = vmatprep.subr.bf16.mxu0 0
      %1841 = vmatpush1.bf16.msra.mxu0 0
      %1842 = vmatprep.subr.bf16.mxu0 0
      %1843 = vmatpush1.bf16.msra.mxu0 0
      %1844 = vmatprep.subr.bf16.mxu0 0
      %1845 = vmatpush1.bf16.msra.mxu0 0
      %1846 = vmatprep.subr.bf16.mxu0 0
      %1847 = vmatpush1.bf16.msra.mxu0 0
      %1848 = vmatprep.mubr.bf16.mxu0 0
      %1849 = vmatmul.mubr.bf16.gmra.mrb[0].mxu0 %v1811
      %v1850 = vpop.f32.mrb[0].mxu0
      %v1851 = vadd.f32 0.0, %v1850
      %v1852 = vpop.f32.mrb[0].mxu0
      %v1853 = vpop.f32.mrb[0].mxu0
      %v1854 = vpop.f32.mrb[0].mxu0
      %1855 = vdwg.mxu0
      %1856 = vrot.lane.b32.xlu0 %v1517, 64
      %v1857 = vpop.permute.xlu0 %1856
      %v1859 = vsel %vm564, %v1758, 0
      %v1862 = vsel %vm808, %v1857, 0
      %1864 = vmatprep.subr.bf16.mxu0 0
      %1865 = vmatpush1.bf16.msra.mxu0 %v1862
      %1866 = vmatprep.subr.bf16.mxu0 0
      %1867 = vmatpush1.bf16.msra.mxu0 0
      %1868 = vmatprep.subr.bf16.mxu0 0
      %1869 = vmatpush1.bf16.msra.mxu0 0
      %1870 = vmatprep.subr.bf16.mxu0 0
      %1871 = vmatpush1.bf16.msra.mxu0 0
      %1872 = vmatprep.subr.bf16.mxu0 0
      %1873 = vmatpush1.bf16.msra.mxu0 0
      %1874 = vmatprep.subr.bf16.mxu0 0
      %1875 = vmatpush1.bf16.msra.mxu0 0
      %1876 = vmatprep.subr.bf16.mxu0 0
      %1877 = vmatpush1.bf16.msra.mxu0 0
      %1878 = vmatprep.subr.bf16.mxu0 0
      %1879 = vmatpush1.bf16.msra.mxu0 0
      %1880 = vmatprep.subr.bf16.mxu0 0
      %1881 = vmatpush1.bf16.msra.mxu0 0
      %1882 = vmatprep.subr.bf16.mxu0 0
      %1883 = vmatpush1.bf16.msra.mxu0 0
      %1884 = vmatprep.subr.bf16.mxu0 0
      %1885 = vmatpush1.bf16.msra.mxu0 0
      %1886 = vmatprep.subr.bf16.mxu0 0
      %1887 = vmatpush1.bf16.msra.mxu0 0
      %1888 = vmatprep.subr.bf16.mxu0 0
      %1889 = vmatpush1.bf16.msra.mxu0 0
      %1890 = vmatprep.subr.bf16.mxu0 0
      %1891 = vmatpush1.bf16.msra.mxu0 0
      %1892 = vmatprep.subr.bf16.mxu0 0
      %1893 = vmatpush1.bf16.msra.mxu0 0
      %1894 = vmatprep.subr.bf16.mxu0 0
      %1895 = vmatpush1.bf16.msra.mxu0 0
      %1896 = vmatprep.mubr.bf16.mxu0 0
      %1897 = vmatmul.mubr.bf16.gmra.mrb[0].mxu0 %v1859
      %v1898 = vpop.f32.mrb[0].mxu0
      %v1899 = vadd.f32 0.0, %v1898
      %v1900 = vpop.f32.mrb[0].mxu0
      %v1901 = vpop.f32.mrb[0].mxu0
      %v1902 = vpop.f32.mrb[0].mxu0
      %1903 = vdwg.mxu0
      %1904 = vrot.lane.b32.xlu0 %v1519, 64
      %v1905 = vpop.permute.xlu0 %1904
      %v1907 = vsel %vm564, %v1759, 0
      %v1910 = vsel %vm808, %v1905, 0
      %1912 = vmatprep.subr.bf16.mxu0 0
      %1913 = vmatpush1.bf16.msra.mxu0 %v1910
      %1914 = vmatprep.subr.bf16.mxu0 0
      %1915 = vmatpush1.bf16.msra.mxu0 0
      %1916 = vmatprep.subr.bf16.mxu0 0
      %1917 = vmatpush1.bf16.msra.mxu0 0
      %1918 = vmatprep.subr.bf16.mxu0 0
      %1919 = vmatpush1.bf16.msra.mxu0 0
      %1920 = vmatprep.subr.bf16.mxu0 0
      %1921 = vmatpush1.bf16.msra.mxu0 0
      %1922 = vmatprep.subr.bf16.mxu0 0
      %1923 = vmatpush1.bf16.msra.mxu0 0
      %1924 = vmatprep.subr.bf16.mxu0 0
      %1925 = vmatpush1.bf16.msra.mxu0 0
      %1926 = vmatprep.subr.bf16.mxu0 0
      %1927 = vmatpush1.bf16.msra.mxu0 0
      %1928 = vmatprep.subr.bf16.mxu0 0
      %1929 = vmatpush1.bf16.msra.mxu0 0
      %1930 = vmatprep.subr.bf16.mxu0 0
      %1931 = vmatpush1.bf16.msra.mxu0 0
      %1932 = vmatprep.subr.bf16.mxu0 0
      %1933 = vmatpush1.bf16.msra.mxu0 0
      %1934 = vmatprep.subr.bf16.mxu0 0
      %1935 = vmatpush1.bf16.msra.mxu0 0
      %1936 = vmatprep.subr.bf16.mxu0 0
      %1937 = vmatpush1.bf16.msra.mxu0 0
      %1938 = vmatprep.subr.bf16.mxu0 0
      %1939 = vmatpush1.bf16.msra.mxu0 0
      %1940 = vmatprep.subr.bf16.mxu0 0
      %1941 = vmatpush1.bf16.msra.mxu0 0
      %1942 = vmatprep.subr.bf16.mxu0 0
      %1943 = vmatpush1.bf16.msra.mxu0 0
      %1944 = vmatprep.mubr.bf16.mxu0 0
      %1945 = vmatmul.mubr.bf16.gmra.mrb[0].mxu0 %v1907
      %v1946 = vpop.f32.mrb[0].mxu0
      %v1947 = vadd.f32 0.0, %v1946
      %v1948 = vpop.f32.mrb[0].mxu0
      %v1949 = vpop.f32.mrb[0].mxu0
      %v1950 = vpop.f32.mrb[0].mxu0
      %1951 = vdwg.mxu0
      %s1952 = scalar_lea.vmem %s5, 1
      %v1953 = vld [vmem:[%s1952] sm:$0x1]
      %v1954 = vpack.c.bf16 %v1803, %v1803
      %s1955 = scalar_lea.vmem %s4, 16
      %v1956 = vld [vmem:[%s1955] sm:$0xf]
      %v1958 = vsel %vm564, %v1954, 0
      %v1961 = vsel %vm808, %v1956, 0
      %1963 = vmatprep.subr.bf16.mxu0 0
      %1964 = vmatpush1.bf16.msra.mxu0 %v1961
      %1965 = vmatprep.subr.bf16.mxu0 0
      %1966 = vmatpush1.bf16.msra.mxu0 0
      %1967 = vmatprep.subr.bf16.mxu0 0
      %1968 = vmatpush1.bf16.msra.mxu0 0
      %1969 = vmatprep.subr.bf16.mxu0 0
      %1970 = vmatpush1.bf16.msra.mxu0 0
      %1971 = vmatprep.subr.bf16.mxu0 0
      %1972 = vmatpush1.bf16.msra.mxu0 0
      %1973 = vmatprep.subr.bf16.mxu0 0
      %1974 = vmatpush1.bf16.msra.mxu0 0
      %1975 = vmatprep.subr.bf16.mxu0 0
      %1976 = vmatpush1.bf16.msra.mxu0 0
      %1977 = vmatprep.subr.bf16.mxu0 0
      %1978 = vmatpush1.bf16.msra.mxu0 0
      %1979 = vmatprep.subr.bf16.mxu0 0
      %1980 = vmatpush1.bf16.msra.mxu0 0
      %1981 = vmatprep.subr.bf16.mxu0 0
      %1982 = vmatpush1.bf16.msra.mxu0 0
      %1983 = vmatprep.subr.bf16.mxu0 0
      %1984 = vmatpush1.bf16.msra.mxu0 0
      %1985 = vmatprep.subr.bf16.mxu0 0
      %1986 = vmatpush1.bf16.msra.mxu0 0
      %1987 = vmatprep.subr.bf16.mxu0 0
      %1988 = vmatpush1.bf16.msra.mxu0 0
      %1989 = vmatprep.subr.bf16.mxu0 0
      %1990 = vmatpush1.bf16.msra.mxu0 0
      %1991 = vmatprep.subr.bf16.mxu0 0
      %1992 = vmatpush1.bf16.msra.mxu0 0
      %1993 = vmatprep.subr.bf16.mxu0 0
      %1994 = vmatpush1.bf16.msra.mxu0 0
      %1995 = vmatprep.mubr.bf16.mxu0 0
      %1996 = vmatmul.mubr.bf16.gmra.mrb[0].mxu0 %v1958
      %v1997 = vpop.f32.mrb[0].mxu0
      %v1998 = vadd.f32 0.0, %v1997
      %v1999 = vpop.f32.mrb[0].mxu0
      %v2000 = vpop.f32.mrb[0].mxu0
      %v2001 = vpop.f32.mrb[0].mxu0
      %2002 = vdwg.mxu0
      %v2004 = vlaneseq
      %v2005 = vshrl.u32 %v2004, 7
      %v2006 = vsub.s32 0, %v2005
      %v2007 = vrot.slane %v1953, %v2006
      %v2009 = vadd.f32 %v2007, %v1998
      %v2010 = vpack.c.bf16 %v1851, %v1851
      %s2011 = scalar_lea.vmem %s4, 20
      %v2012 = vld [vmem:[%s2011] sm:$0xf]
      %v2014 = vsel %vm564, %v2010, 0
      %v2017 = vsel %vm808, %v2012, 0
      %2019 = vmatprep.subr.bf16.mxu0 0
      %2020 = vmatpush1.bf16.msra.mxu0 %v2017
      %2021 = vmatprep.subr.bf16.mxu0 0
      %2022 = vmatpush1.bf16.msra.mxu0 0
      %2023 = vmatprep.subr.bf16.mxu0 0
      %2024 = vmatpush1.bf16.msra.mxu0 0
      %2025 = vmatprep.subr.bf16.mxu0 0
      %2026 = vmatpush1.bf16.msra.mxu0 0
      %2027 = vmatprep.subr.bf16.mxu0 0
      %2028 = vmatpush1.bf16.msra.mxu0 0
      %2029 = vmatprep.subr.bf16.mxu0 0
      %2030 = vmatpush1.bf16.msra.mxu0 0
      %2031 = vmatprep.subr.bf16.mxu0 0
      %2032 = vmatpush1.bf16.msra.mxu0 0
      %2033 = vmatprep.subr.bf16.mxu0 0
      %2034 = vmatpush1.bf16.msra.mxu0 0
      %2035 = vmatprep.subr.bf16.mxu0 0
      %2036 = vmatpush1.bf16.msra.mxu0 0
      %2037 = vmatprep.subr.bf16.mxu0 0
      %2038 = vmatpush1.bf16.msra.mxu0 0
      %2039 = vmatprep.subr.bf16.mxu0 0
      %2040 = vmatpush1.bf16.msra.mxu0 0
      %2041 = vmatprep.subr.bf16.mxu0 0
      %2042 = vmatpush1.bf16.msra.mxu0 0
      %2043 = vmatprep.subr.bf16.mxu0 0
      %2044 = vmatpush1.bf16.msra.mxu0 0
      %2045 = vmatprep.subr.bf16.mxu0 0
      %2046 = vmatpush1.bf16.msra.mxu0 0
      %2047 = vmatprep.subr.bf16.mxu0 0
      %2048 = vmatpush1.bf16.msra.mxu0 0
      %2049 = vmatprep.subr.bf16.mxu0 0
      %2050 = vmatpush1.bf16.msra.mxu0 0
      %2051 = vmatprep.mubr.bf16.mxu0 0
      %2052 = vmatmul.mubr.bf16.gmra.mrb[0].mxu0 %v2014
      %v2053 = vpop.f32.mrb[0].mxu0
      %v2054 = vadd.f32 0.0, %v2053
      %v2055 = vpop.f32.mrb[0].mxu0
      %v2056 = vpop.f32.mrb[0].mxu0
      %v2057 = vpop.f32.mrb[0].mxu0
      %2058 = vdwg.mxu0
      %v2059 = vadd.f32 %v2009, %v2054
      %v2060 = vpack.c.bf16 %v1899, %v1899
      %s2061 = scalar_lea.vmem %s4, 24
      %v2062 = vld [vmem:[%s2061] sm:$0xf]
      %v2064 = vsel %vm564, %v2060, 0
      %v2067 = vsel %vm808, %v2062, 0
      %2069 = vmatprep.subr.bf16.mxu0 0
      %2070 = vmatpush1.bf16.msra.mxu0 %v2067
      %2071 = vmatprep.subr.bf16.mxu0 0
      %2072 = vmatpush1.bf16.msra.mxu0 0
      %2073 = vmatprep.subr.bf16.mxu0 0
      %2074 = vmatpush1.bf16.msra.mxu0 0
      %2075 = vmatprep.subr.bf16.mxu0 0
      %2076 = vmatpush1.bf16.msra.mxu0 0
      %2077 = vmatprep.subr.bf16.mxu0 0
      %2078 = vmatpush1.bf16.msra.mxu0 0
      %2079 = vmatprep.subr.bf16.mxu0 0
      %2080 = vmatpush1.bf16.msra.mxu0 0
      %2081 = vmatprep.subr.bf16.mxu0 0
      %2082 = vmatpush1.bf16.msra.mxu0 0
      %2083 = vmatprep.subr.bf16.mxu0 0
      %2084 = vmatpush1.bf16.msra.mxu0 0
      %2085 = vmatprep.subr.bf16.mxu0 0
      %2086 = vmatpush1.bf16.msra.mxu0 0
      %2087 = vmatprep.subr.bf16.mxu0 0
      %2088 = vmatpush1.bf16.msra.mxu0 0
      %2089 = vmatprep.subr.bf16.mxu0 0
      %2090 = vmatpush1.bf16.msra.mxu0 0
      %2091 = vmatprep.subr.bf16.mxu0 0
      %2092 = vmatpush1.bf16.msra.mxu0 0
      %2093 = vmatprep.subr.bf16.mxu0 0
      %2094 = vmatpush1.bf16.msra.mxu0 0
      %2095 = vmatprep.subr.bf16.mxu0 0
      %2096 = vmatpush1.bf16.msra.mxu0 0
      %2097 = vmatprep.subr.bf16.mxu0 0
      %2098 = vmatpush1.bf16.msra.mxu0 0
      %2099 = vmatprep.subr.bf16.mxu0 0
      %2100 = vmatpush1.bf16.msra.mxu0 0
      %2101 = vmatprep.mubr.bf16.mxu0 0
      %2102 = vmatmul.mubr.bf16.gmra.mrb[0].mxu0 %v2064
      %v2103 = vpop.f32.mrb[0].mxu0
      %v2104 = vadd.f32 0.0, %v2103
      %v2105 = vpop.f32.mrb[0].mxu0
      %v2106 = vpop.f32.mrb[0].mxu0
      %v2107 = vpop.f32.mrb[0].mxu0
      %2108 = vdwg.mxu0
      %v2109 = vadd.f32 %v2059, %v2104
      %v2110 = vpack.c.bf16 %v1947, %v1947
      %s2111 = scalar_lea.vmem %s4, 28
      %v2112 = vld [vmem:[%s2111] sm:$0xf]
      %v2114 = vsel %vm564, %v2110, 0
      %v2117 = vsel %vm808, %v2112, 0
      %2119 = vmatprep.subr.bf16.mxu0 0
      %2120 = vmatpush1.bf16.msra.mxu0 %v2117
      %2121 = vmatprep.subr.bf16.mxu0 0
      %2122 = vmatpush1.bf16.msra.mxu0 0
      %2123 = vmatprep.subr.bf16.mxu0 0
      %2124 = vmatpush1.bf16.msra.mxu0 0
      %2125 = vmatprep.subr.bf16.mxu0 0
      %2126 = vmatpush1.bf16.msra.mxu0 0
      %2127 = vmatprep.subr.bf16.mxu0 0
      %2128 = vmatpush1.bf16.msra.mxu0 0
      %2129 = vmatprep.subr.bf16.mxu0 0
      %2130 = vmatpush1.bf16.msra.mxu0 0
      %2131 = vmatprep.subr.bf16.mxu0 0
      %2132 = vmatpush1.bf16.msra.mxu0 0
      %2133 = vmatprep.subr.bf16.mxu0 0
      %2134 = vmatpush1.bf16.msra.mxu0 0
      %2135 = vmatprep.subr.bf16.mxu0 0
      %2136 = vmatpush1.bf16.msra.mxu0 0
      %2137 = vmatprep.subr.bf16.mxu0 0
      %2138 = vmatpush1.bf16.msra.mxu0 0
      %2139 = vmatprep.subr.bf16.mxu0 0
      %2140 = vmatpush1.bf16.msra.mxu0 0
      %2141 = vmatprep.subr.bf16.mxu0 0
      %2142 = vmatpush1.bf16.msra.mxu0 0
      %2143 = vmatprep.subr.bf16.mxu0 0
      %2144 = vmatpush1.bf16.msra.mxu0 0
      %2145 = vmatprep.subr.bf16.mxu0 0
      %2146 = vmatpush1.bf16.msra.mxu0 0
      %2147 = vmatprep.subr.bf16.mxu0 0
      %2148 = vmatpush1.bf16.msra.mxu0 0
      %2149 = vmatprep.subr.bf16.mxu0 0
      %2150 = vmatpush1.bf16.msra.mxu0 0
      %2151 = vmatprep.mubr.bf16.mxu0 0
      %2152 = vmatmul.mubr.bf16.gmra.mrb[0].mxu0 %v2114
      %v2153 = vpop.f32.mrb[0].mxu0
      %v2154 = vadd.f32 0.0, %v2153
      %v2155 = vpop.f32.mrb[0].mxu0
      %v2156 = vpop.f32.mrb[0].mxu0
      %v2157 = vpop.f32.mrb[0].mxu0
      %2158 = vdwg.mxu0
      %v2159 = vadd.f32 %v2109, %v2154
      %v2160 = vadd.f32 %v1442, %v2159
      %s2161 = scalar_lea.vmem %s6, 1
      %v2162 = vld [vmem:[%s2161] sm:$0x1]
      %s2163 = scalar_lea.vmem %s7, 1
      %v2164 = vld [vmem:[%s2163] sm:$0x1]
      %v2165 = vsel %vm504, %v2160, 0.0
      %2166 = vadd.xlane.f32.xlu0 %v2165
      %v2167 = vpop.xlane.xlu0 %2166
      %v2168 = vmul.f32 %v2167, %v1208
      %v2169 = vsub.f32 %v2160, %v2168
      %v2170 = vmul.f32 %v2169, %v2169
      %v2171 = vsel %vm504, %v2170, 0.0
      %2172 = vadd.xlane.f32.xlu0 %v2171
      %v2173 = vpop.xlane.xlu0 %2172
      %v2174 = vmul.f32 %v2173, %v1208
      %v2175 = vadd.f32 %v2174, 1e-05
      %v2176 = vrsqrt.pop %v2175
      %v2177 = vmul.f32 %v2169, %v2176
      %v2179 = vlaneseq
      %v2180 = vshrl.u32 %v2179, 7
      %v2181 = vsub.s32 0, %v2180
      %v2182 = vrot.slane %v2162, %v2181
      %v2184 = vmul.f32 %v2177, %v2182
      %v2186 = vlaneseq
      %v2187 = vshrl.u32 %v2186, 7
      %v2188 = vsub.s32 0, %v2187
      %v2189 = vrot.slane %v2164, %v2188
      %v2191 = vadd.f32 %v2184, %v2189
      %v2192 = vpack.c.bf16 %v2191, %v2191
      %s2193 = scalar_lea.vmem %s8, 16
      %v2194 = vld [vmem:[%s2193] sm:$0xf]
      %v2195 = vld [vmem:[%s2193 + $0x4] sm:$0xf]
      %v2196 = vld [vmem:[%s2193 + $0x8] sm:$0xf]
      %v2197 = vld [vmem:[%s2193 + $0xc] sm:$0xf]
      %s2198 = scalar_lea.vmem %s9, 1
      %v2199 = vld [vmem:[%s2198] sm:$0x1]
      %v2201 = vlaneseq
      %v2202 = vshrl.u32 %v2201, 7
      %v2203 = vsub.s32 0, %v2202
      %v2204 = vrot.slane %v2199, %v2203
      %v2210 = vunpack.c.l.b16 %v2194
      %v2211 = vunpack.c.l.b16 %v2195
      %v2212 = vunpack.c.l.b16 %v2196
      %v2213 = vunpack.c.l.b16 %v2197
      %v2214 = vpack.c.b16 %v2211, %v2210
      %v2215 = vpack.c.b16 %v2213, %v2212
      %v2219 = vsel %vm504, %v2192, 0
      %2221 = vmatprep.subr.bf16.mxu0 0
      %2222 = vmatpush1.bf16.msra.mxu0 %v2214
      %2223 = vmatprep.subr.bf16.mxu0 0
      %2224 = vmatpush1.bf16.msra.mxu0 %v2215
      %2225 = vmatprep.subr.bf16.mxu0 0
      %2226 = vmatpush1.bf16.msra.mxu0 0
      %2227 = vmatprep.subr.bf16.mxu0 0
      %2228 = vmatpush1.bf16.msra.mxu0 0
      %2229 = vmatprep.subr.bf16.mxu0 0
      %2230 = vmatpush1.bf16.msra.mxu0 0
      %2231 = vmatprep.subr.bf16.mxu0 0
      %2232 = vmatpush1.bf16.msra.mxu0 0
      %2233 = vmatprep.subr.bf16.mxu0 0
      %2234 = vmatpush1.bf16.msra.mxu0 0
      %2235 = vmatprep.subr.bf16.mxu0 0
      %2236 = vmatpush1.bf16.msra.mxu0 0
      %2237 = vmatprep.subr.bf16.mxu0 0
      %2238 = vmatpush1.bf16.msra.mxu0 0
      %2239 = vmatprep.subr.bf16.mxu0 0
      %2240 = vmatpush1.bf16.msra.mxu0 0
      %2241 = vmatprep.subr.bf16.mxu0 0
      %2242 = vmatpush1.bf16.msra.mxu0 0
      %2243 = vmatprep.subr.bf16.mxu0 0
      %2244 = vmatpush1.bf16.msra.mxu0 0
      %2245 = vmatprep.subr.bf16.mxu0 0
      %2246 = vmatpush1.bf16.msra.mxu0 0
      %2247 = vmatprep.subr.bf16.mxu0 0
      %2248 = vmatpush1.bf16.msra.mxu0 0
      %2249 = vmatprep.subr.bf16.mxu0 0
      %2250 = vmatpush1.bf16.msra.mxu0 0
      %2251 = vmatprep.subr.bf16.mxu0 0
      %2252 = vmatpush1.bf16.msra.mxu0 0
      %2253 = vmatprep.mubr.bf16.mxu0 0
      %2254 = vmatmul.mubr.bf16.gmra.mrb[0].mxu0 %v2219
      %v2255 = vpop.f32.mrb[0].mxu0
      %v2256 = vadd.f32 %v2204, %v2255
      %v2257 = vpop.f32.mrb[0].mxu0
      %v2258 = vpop.f32.mrb[0].mxu0
      %v2259 = vpop.f32.mrb[0].mxu0
      %2260 = vdwg.mxu0
      %v2261 = vmax.f32 %v2256, 0.0
      %v2262 = vpack.c.bf16 %v2261, %v2261
      %s2263 = scalar_lea.vmem %s10, 64
      %v2264 = vld [vmem:[%s2263] sm:$0xf]
      %v2265 = vld [vmem:[%s2263 + $0x4] sm:$0xf]
      %v2266 = vld [vmem:[%s2263 + $0x8] sm:$0xf]
      %v2267 = vld [vmem:[%s2263 + $0xc] sm:$0xf]
      %v2268 = vld [vmem:[%s2263 + $0x10] sm:$0xf]
      %v2269 = vld [vmem:[%s2263 + $0x14] sm:$0xf]
      %v2270 = vld [vmem:[%s2263 + $0x18] sm:$0xf]
      %v2271 = vld [vmem:[%s2263 + $0x1c] sm:$0xf]
      %v2272 = vld [vmem:[%s2263 + $0x20] sm:$0xf]
      %v2273 = vld [vmem:[%s2263 + $0x24] sm:$0xf]
      %v2274 = vld [vmem:[%s2263 + $0x28] sm:$0xf]
      %v2275 = vld [vmem:[%s2263 + $0x2c] sm:$0xf]
      %v2276 = vld [vmem:[%s2263 + $0x30] sm:$0xf]
      %v2277 = vld [vmem:[%s2263 + $0x34] sm:$0xf]
      %v2278 = vld [vmem:[%s2263 + $0x38] sm:$0xf]
      %v2279 = vld [vmem:[%s2263 + $0x3c] sm:$0xf]
      %s2280 = scalar_lea.vmem %s11, 1
      %v2281 = vld [vmem:[%s2280] sm:$0x1]
      %v2283 = vlaneseq
      %v2284 = vshrl.u32 %v2283, 7
      %v2285 = vsub.s32 0, %v2284
      %v2286 = vrot.slane %v2281, %v2285
      %v2304 = vunpack.c.l.b16 %v2264
      %v2305 = vunpack.c.l.b16 %v2265
      %v2306 = vunpack.c.l.b16 %v2266
      %v2307 = vunpack.c.l.b16 %v2267
      %v2308 = vunpack.c.l.b16 %v2268
      %v2309 = vunpack.c.l.b16 %v2269
      %v2310 = vunpack.c.l.b16 %v2270
      %v2311 = vunpack.c.l.b16 %v2271
      %v2312 = vunpack.c.l.b16 %v2272
      %v2313 = vunpack.c.l.b16 %v2273
      %v2314 = vunpack.c.l.b16 %v2274
      %v2315 = vunpack.c.l.b16 %v2275
      %v2316 = vunpack.c.l.b16 %v2276
      %v2317 = vunpack.c.l.b16 %v2277
      %v2318 = vunpack.c.l.b16 %v2278
      %v2319 = vunpack.c.l.b16 %v2279
      %v2320 = vpack.c.b16 %v2305, %v2304
      %v2321 = vpack.c.b16 %v2307, %v2306
      %v2322 = vpack.c.b16 %v2309, %v2308
      %v2323 = vpack.c.b16 %v2311, %v2310
      %v2324 = vpack.c.b16 %v2313, %v2312
      %v2325 = vpack.c.b16 %v2315, %v2314
      %v2326 = vpack.c.b16 %v2317, %v2316
      %v2327 = vpack.c.b16 %v2319, %v2318
      %2336 = vmatprep.subr.bf16.mxu0 0
      %2337 = vmatpush1.bf16.msra.mxu0 %v2320
      %2338 = vmatprep.subr.bf16.mxu0 0
      %2339 = vmatpush1.bf16.msra.mxu0 %v2321
      %2340 = vmatprep.subr.bf16.mxu0 0
      %2341 = vmatpush1.bf16.msra.mxu0 %v2322
      %2342 = vmatprep.subr.bf16.mxu0 0
      %2343 = vmatpush1.bf16.msra.mxu0 %v2323
      %2344 = vmatprep.subr.bf16.mxu0 0
      %2345 = vmatpush1.bf16.msra.mxu0 %v2324
      %2346 = vmatprep.subr.bf16.mxu0 0
      %2347 = vmatpush1.bf16.msra.mxu0 %v2325
      %2348 = vmatprep.subr.bf16.mxu0 0
      %2349 = vmatpush1.bf16.msra.mxu0 %v2326
      %2350 = vmatprep.subr.bf16.mxu0 0
      %2351 = vmatpush1.bf16.msra.mxu0 %v2327
      %2352 = vmatprep.subr.bf16.mxu0 0
      %2353 = vmatpush1.bf16.msra.mxu0 0
      %2354 = vmatprep.subr.bf16.mxu0 0
      %2355 = vmatpush1.bf16.msra.mxu0 0
      %2356 = vmatprep.subr.bf16.mxu0 0
      %2357 = vmatpush1.bf16.msra.mxu0 0
      %2358 = vmatprep.subr.bf16.mxu0 0
      %2359 = vmatpush1.bf16.msra.mxu0 0
      %2360 = vmatprep.subr.bf16.mxu0 0
      %2361 = vmatpush1.bf16.msra.mxu0 0
      %2362 = vmatprep.subr.bf16.mxu0 0
      %2363 = vmatpush1.bf16.msra.mxu0 0
      %2364 = vmatprep.subr.bf16.mxu0 0
      %2365 = vmatpush1.bf16.msra.mxu0 0
      %2366 = vmatprep.subr.bf16.mxu0 0
      %2367 = vmatpush1.bf16.msra.mxu0 0
      %2368 = vmatprep.mubr.bf16.mxu0 0
      %2369 = vmatmul.mubr.bf16.gmra.mrb[0].mxu0 %v2262
      %v2370 = vpop.f32.mrb[0].mxu0
      %v2371 = vadd.f32 %v2286, %v2370
      %v2372 = vpop.f32.mrb[0].mxu0
      %v2373 = vpop.f32.mrb[0].mxu0
      %v2374 = vpop.f32.mrb[0].mxu0
      %2375 = vdwg.mxu0
      %v2376 = vadd.f32 %v2191, %v2371
      %s2377 = scalar_lea.vmem %s12, 1
      %v2378 = vld [vmem:[%s2377] sm:$0x1]
      %s2379 = scalar_lea.vmem %s13, 1
      %v2380 = vld [vmem:[%s2379] sm:$0x1]
      %v2381 = vsel %vm504, %v2376, 0.0
      %2382 = vadd.xlane.f32.xlu0 %v2381
      %v2383 = vpop.xlane.xlu0 %2382
      %v2384 = vmul.f32 %v2383, %v1208
      %v2385 = vsub.f32 %v2376, %v2384
      %v2386 = vmul.f32 %v2385, %v2385
      %v2387 = vsel %vm504, %v2386, 0.0
      %2388 = vadd.xlane.f32.xlu0 %v2387
      %v2389 = vpop.xlane.xlu0 %2388
      %v2390 = vmul.f32 %v2389, %v1208
      %v2391 = vadd.f32 %v2390, 1e-05
      %v2392 = vrsqrt.pop %v2391
      %v2393 = vmul.f32 %v2385, %v2392
      %v2395 = vlaneseq
      %v2396 = vshrl.u32 %v2395, 7
      %v2397 = vsub.s32 0, %v2396
      %v2398 = vrot.slane %v2378, %v2397
      %v2400 = vmul.f32 %v2393, %v2398
      %v2402 = vlaneseq
      %v2403 = vshrl.u32 %v2402, 7
      %v2404 = vsub.s32 0, %v2403
      %v2405 = vrot.slane %v2380, %v2404
      %v2407 = vadd.f32 %v2400, %v2405
      %2408 = vst.msk [vmem:[%s476] sm:$0xff] %vm504, %v2407
      %p2409 = scmp.lt.s32.totalorder %s25, 1
      %s2410 = scalar_select %p2409, %s25, 1
      %s2411 = smul.addr %s2410, 8
      %s2412 = scalar_lea.vmem %s14, %s2411
      // Predicated region
      $region77: #{encoder_transformer_forward.1} parent=75 // pred_check
        %p2413 = pneg %p347
      $region78: #{encoder_transformer_forward.1} parent=75 // pred_check_branch
        %2415 = sbr.rel (%p2413) target = $region80
      $region79: #{encoder_transformer_forward.1} parent=75 // pred_region
        _
      $region80: #{encoder_transformer_forward.1} parent=75 // pred_fallthru
        _
    $region76: #{encoder_transformer_forward.1} parent=5 // pred_fallthru
      _
    %p2416 = scmp.le.s32.totalorder 2, %s20
    // Predicated region
    $region81: #{encoder_transformer_forward.1} parent=5 // pred_check
      %p2417 = pneg %p2416
    $region82: #{encoder_transformer_forward.1} parent=5 // pred_check_branch
      %2419 = sbr.rel (%p2417) target = $region84
    $region83: #{encoder_transformer_forward.1} parent=5 // pred_region
      %s2420 = ssub.s32 %s20, 2
      // Predicated region
      $region85: #{encoder_transformer_forward.1} parent=83 // pred_check
        %p2421 = pneg %p353
      $region86: #{encoder_transformer_forward.1} parent=83 // pred_check_branch
        %2423 = sbr.rel (%p2421) target = $region88
      $region87: #{encoder_transformer_forward.1} parent=83 // pred_region
        %p2424 = scmp.lt.s32.totalorder %s26, 1
        %s2425 = scalar_select %p2424, %s26, 1
        %s2426 = smul.addr %s2425, 8
        %s2427 = scalar_lea.vmem %s14, %s2426
      $region88: #{encoder_transformer_forward.1} parent=83 // pred_fallthru
        _
    $region84: #{encoder_transformer_forward.1} parent=5 // pred_fallthru
      _
  $region6: #{encoder_transformer_forward.1} parent=0 // loop_footer
    %s24 = sadd.s32 1, %s20
  $region7: #{encoder_transformer_forward.1} parent=0 // loop_footer_branch
    %19 = sbr.rel target = $region3
  $region8: #{encoder_transformer_forward.1} parent=0 // loop_exit
    _

</llo_original>
